<compile_context>
chip_gen: v5e
topology: v5e:2x2
jax: 0.10.0
libtpu: 0.0.40
codegen_flags: <defaults>
</compile_context>

<pallas_src>
import math

import jax
import jax.numpy as jnp
from jax import lax
from jax.experimental import pallas as pl
from jax.experimental.pallas import tpu as pltpu


def _conv_bn_relu_kernel(xa_ref, xb_ref, w_ref, scale_ref, shift_ref, o_ref):
    """One (n, depth-tile) slab: TD planes x 9 banded MXU dots + fused BN/ReLU.

    xa_ref    : (1, TD, H+2, (W+2)*Cin)        bf16  (depth planes jTD .. jTD+TD-1)
    xb_ref    : (1, 2,  H+2, (W+2)*Cin)        bf16  (halo planes jTD+TD, jTD+TD+1)
    w_ref     : (3, 3, (W+2)*Cin, W*Cout_p)    bf16  (banded conv weights)
    scale_ref : (1, W*Cout_p)                  f32   (folded BN scale, lane-tiled)
    shift_ref : (1, W*Cout_p)                  f32   (folded BN shift + conv bias)
    o_ref     : (1, TD, H, W*Cout_p)           f32
    """
    kd_taps, kh_taps = w_ref.shape[0], w_ref.shape[1]
    td = o_ref.shape[1]
    h_out = o_ref.shape[2]

    def plane(p):                      # p in [0, TD+2), static python int
        if p < td:
            return xa_ref[0, p]        # (H+2, (W+2)*Cin)
        return xb_ref[0, p - td]

    scale = scale_ref[...]             # hoisted out of the depth loop
    shift = shift_ref[...]

    for t in range(td):                # static unroll (TD is small)
        acc = None
        for kd in range(kd_taps):
            xp = plane(t + kd)                           # (H+2, (W+2)*Cin)
            for kh in range(kh_taps):
                a = xp[kh:kh + h_out, :]                 # (H, (W+2)*Cin) bf16
                d = jnp.dot(a, w_ref[kd, kh],
                            preferred_element_type=jnp.float32)
                acc = d if acc is None else acc + d
        y = jnp.maximum(acc * scale + shift, 0.0)        # folded bias+BN, ReLU
        o_ref[0, t] = y.astype(o_ref.dtype)


def _pick_depth_tile(d_sz, hp, wc_in, h_sz, wc_out,
                     vmem_budget=8 * 1024 * 1024, max_unroll=16):
    """Even depth tile that keeps the per-step blocks well inside VMEM."""
    per_plane = hp * wc_in * 2 + h_sz * wc_out * 4       # bf16 in + f32 out
    td = max(2, min(d_sz, vmem_budget // max(per_plane, 1), max_unroll))
    if td % 2:
        td += 1                                           # halo view needs TD even
    return td


def conv_bn_relu(x_ncdhw, w_conv, b_conv, bn_gamma, bn_beta, bn_mean, bn_var,
                 *, eps=1e-5, compute_dtype=jnp.bfloat16):
    """ConvBNReLU forward (eval-mode BN).

    x_ncdhw : (N, Cin, D, H, W)    float32
    w_conv  : (Cout, Cin, 3, 3, 3) float32 (PyTorch Conv3d layout)
    returns : (N, Cout, D, H, W)   float32
    """
    N, Cin, D, H, W = x_ncdhw.shape
    Cout = w_conv.shape[0]
    KD, KH, KW = w_conv.shape[2], w_conv.shape[3], w_conv.shape[4]
    assert (KD, KH, KW) == (3, 3, 3), "only ksize=3 implemented"

    Hp, Wp = H + 2, W + 2

    # Pad Cout so the output lane width W*Cout_p is a multiple of 128
    # (unmasked lane-dense stores); padding is sliced away at the end.
    lane = 128
    cmul = lane // math.gcd(W, lane)
    Cout_p = ((Cout + cmul - 1) // cmul) * cmul
    wc_out = W * Cout_p
    wc_in = Wp * Cin   # contraction width per tap (not lane-padded: padding it
                       # would inflate HBM reads; MXU handles unaligned K)

    # ---- depth tiling -------------------------------------------------------
    TD = _pick_depth_tile(D, Hp, wc_in, H, wc_out)
    nDB = -(-D // TD)                       # ceil
    Dpad = nDB * TD + 2                     # halo(1) + D + halo(1) + tile pad

    # ---- activations: channels-last, padded, (W, Cin) flattened on lanes ----
    x = jnp.transpose(x_ncdhw, (0, 2, 3, 4, 1))                   # (N,D,H,W,Cin)
    x = jnp.pad(x, ((0, 0), (1, Dpad - D - 1), (1, 1), (1, 1), (0, 0)))
    x_rows = x.reshape(N, Dpad, Hp, wc_in).astype(compute_dtype)  # (N,Dpad,Hp,Wp*Cin)

    # ---- banded weights: band[kd,kh, wp*Cin+ci, w*Cout_p+co] =
    #          w_conv[co, ci, kd, kh, wp-w]  if 0 <= wp-w < 3 else 0 ----
    w_t = jnp.transpose(w_conv, (2, 3, 4, 1, 0)).astype(jnp.float32)  # (3,3,3,Cin,Cout)
    w_t = jnp.pad(w_t, ((0, 0),) * 4 + ((0, Cout_p - Cout),))
    shift_sel = jnp.stack(
        [jnp.eye(Wp, W, k=-kw, dtype=jnp.float32) for kw in range(KW)], axis=0)
    band = jnp.einsum('qpw,dhqio->dhpiwo', shift_sel, w_t)         # (3,3,Wp,Cin,W,Cout_p)
    band = band.reshape(KD, KH, wc_in, wc_out).astype(compute_dtype)

    # ---- fold conv bias + inference BatchNorm into per-lane scale / shift ----
    scale = bn_gamma * lax.rsqrt(bn_var + eps)                     # (Cout,)
    shift = bn_beta - bn_mean * scale + b_conv * scale             # bias folded in
    scale = jnp.pad(scale.astype(jnp.float32), (0, Cout_p - Cout))
    shift = jnp.pad(shift.astype(jnp.float32), (0, Cout_p - Cout))
    scale2d = jnp.tile(scale, W).reshape(1, wc_out)
    shift2d = jnp.tile(shift, W).reshape(1, wc_out)

    half_td = TD // 2

    out_flat = pl.pallas_call(
        _conv_bn_relu_kernel,
        out_shape=jax.ShapeDtypeStruct((N, nDB * TD, H, wc_out), jnp.float32),
        grid_spec=pltpu.PrefetchScalarGridSpec(
            num_scalar_prefetch=0,
            grid=(N, nDB),
            in_specs=[
                # main TD-plane depth block [j*TD, (j+1)*TD)
                pl.BlockSpec((1, TD, Hp, wc_in), lambda n, j: (n, j, 0, 0)),
                # 2-plane halo block [(j+1)*TD, (j+1)*TD + 2)
                pl.BlockSpec((1, 2, Hp, wc_in),
                             lambda n, j: (n, (j + 1) * half_td, 0, 0)),
                # banded weights (block index constant -> DMA'd once, kept resident)
                pl.BlockSpec((KD, KH, wc_in, wc_out),
                             lambda n, j: (0, 0, 0, 0)),
                pl.BlockSpec((1, wc_out), lambda n, j: (0, 0)),     # BN scale
                pl.BlockSpec((1, wc_out), lambda n, j: (0, 0)),     # BN shift (+bias)
            ],
            out_specs=pl.BlockSpec((1, TD, H, wc_out),
                                   lambda n, j: (n, j, 0, 0)),
        ),
        compiler_params=pltpu.CompilerParams(
            dimension_semantics=("parallel", "parallel"),
            vmem_limit_bytes=32 * 1024 * 1024),
    )(x_rows, x_rows, band, scale2d, shift2d)

    out = out_flat[:, :D].reshape(N, D, H, W, Cout_p)[..., :Cout]
    return jnp.transpose(out, (0, 4, 1, 2, 3))                     # back to NCDHW


def _reference(x_ncdhw, w_conv, b_conv, gamma, beta, mean, var,
               eps=1e-5, compute_dtype=jnp.bfloat16):
    """Pure-JAX reference (same bf16-in / f32-accumulate numerics)."""
    y = lax.conv_general_dilated(
        x_ncdhw.astype(compute_dtype), w_conv.astype(compute_dtype),
        window_strides=(1, 1, 1),
        padding=((1, 1), (1, 1), (1, 1)),
        dimension_numbers=("NCDHW", "OIDHW", "NCDHW"),
        preferred_element_type=jnp.float32)
    y = y + b_conv.reshape(1, -1, 1, 1, 1)
    scale = gamma * lax.rsqrt(var + eps)
    shift = beta - mean * scale
    y = y * scale.reshape(1, -1, 1, 1, 1) + shift.reshape(1, -1, 1, 1, 1)
    return jnp.maximum(y, 0.0)


if __name__ == "__main__":
    key = jax.random.PRNGKey(0)
    k_x, k_w, k_b, k_g, k_be, k_m, k_v = jax.random.split(key, 7)

    # Shapes consistent with ConvBNReLU(nIn=4, nOut=8, ksize=3, stride=1, pad=1).
    N, Cin, Cout, D, H, W = 2, 4, 8, 8, 8, 8

    x = jax.random.normal(k_x, (N, Cin, D, H, W), dtype=jnp.float32)
    w_conv = jax.random.normal(k_w, (Cout, Cin, 3, 3, 3), dtype=jnp.float32) * 0.1
    b_conv = jax.random.normal(k_b, (Cout,), dtype=jnp.float32) * 0.1
    bn_gamma = 1.0 + 0.1 * jax.random.normal(k_g, (Cout,), dtype=jnp.float32)
    bn_beta = 0.1 * jax.random.normal(k_be, (Cout,), dtype=jnp.float32)
    bn_mean = 0.1 * jax.random.normal(k_m, (Cout,), dtype=jnp.float32)
    bn_var = jnp.abs(jax.random.normal(k_v, (Cout,), dtype=jnp.float32)) + 0.5

    out = conv_bn_relu(x, w_conv, b_conv, bn_gamma, bn_beta, bn_mean, bn_var)
    out = jax.block_until_ready(out)

    ref = _reference(x, w_conv, b_conv, bn_gamma, bn_beta, bn_mean, bn_var)
    ref = jax.block_until_ready(ref)

    assert out.shape == (N, Cout, D, H, W), out.shape
    max_err = float(jnp.max(jnp.abs(out - ref)))
    assert jnp.allclose(out, ref, atol=1e-3, rtol=1e-3), max_err

    print("KERNEL_OK")
</pallas_src>

<mosaic_0001>
module attributes {stable_mosaic.version = 11 : i64} {
  func.func @_conv_bn_relu_kernel(%arg0: i32, %arg1: i32, %arg2: memref<1x8x10x40xbf16, #tpu.memory_space<vmem>>, %arg3: memref<1x2x10x40xbf16, #tpu.memory_space<vmem>>, %arg4: memref<3x3x40x128xbf16, #tpu.memory_space<vmem>>, %arg5: memref<1x128xf32, #tpu.memory_space<vmem>>, %arg6: memref<1x128xf32, #tpu.memory_space<vmem>>, %arg7: memref<1x8x8x128xf32, #tpu.memory_space<vmem>>) attributes {dimension_semantics = [#tpu.dimension_semantics<parallel>, #tpu.dimension_semantics<parallel>], iteration_bounds = array<i64: 2, 1>, scalar_prefetch = 0 : i64, scratch_operands = 0 : i64, tpu.core_type = #tpu.core_type<tc>, window_params = [{transform_indices = @transform_0, window_bounds = array<i64: 1, 8, 10, 40>}, {transform_indices = @transform_1, window_bounds = array<i64: 1, 2, 10, 40>}, {pipeline_mode = #tpu.pipeline_mode<synchronous>, transform_indices = @transform_2, window_bounds = array<i64: 3, 3, 40, 128>}, {pipeline_mode = #tpu.pipeline_mode<synchronous>, transform_indices = @transform_3, window_bounds = array<i64: 1, 128>}, {pipeline_mode = #tpu.pipeline_mode<synchronous>, transform_indices = @transform_4, window_bounds = array<i64: 1, 128>}, {transform_indices = @transform_5, window_bounds = array<i64: 1, 8, 8, 128>}]} {
    %c0 = arith.constant 0 : index
    %c0_0 = arith.constant 0 : index
    %0 = vector.load %arg5[%c0, %c0_0] : memref<1x128xf32, #tpu.memory_space<vmem>>, vector<1x128xf32>
    %c0_1 = arith.constant 0 : index
    %c0_2 = arith.constant 0 : index
    %1 = vector.load %arg6[%c0_1, %c0_2] : memref<1x128xf32, #tpu.memory_space<vmem>>, vector<1x128xf32>
    %c0_3 = arith.constant 0 : index
    %c0_4 = arith.constant 0 : index
    %c0_5 = arith.constant 0 : index
    %c0_6 = arith.constant 0 : index
    %2 = vector.load %arg2[%c0_3, %c0_4, %c0_5, %c0_6] : memref<1x8x10x40xbf16, #tpu.memory_space<vmem>>, vector<1x1x10x40xbf16>
    %3 = vector.shape_cast %2 : vector<1x1x10x40xbf16> to vector<10x40xbf16>
    %4 = vector.extract_strided_slice %3 {offsets = [0, 0], sizes = [8, 40], strides = [1, 1]} : vector<10x40xbf16> to vector<8x40xbf16>
    %c0_7 = arith.constant 0 : index
    %c0_8 = arith.constant 0 : index
    %c0_9 = arith.constant 0 : index
    %c0_10 = arith.constant 0 : index
    %5 = vector.load %arg4[%c0_7, %c0_8, %c0_9, %c0_10] : memref<3x3x40x128xbf16, #tpu.memory_space<vmem>>, vector<1x1x40x128xbf16>
    %6 = vector.shape_cast %5 : vector<1x1x40x128xbf16> to vector<40x128xbf16>
    %cst = arith.constant dense<0.000000e+00> : vector<8x128xf32>
    %7 = tpu.matmul %4, %6, %cst {dimension_numbers = #tpu.dot_dimension_numbers<[1], [0], [0], [1], [0, 0, 1, 1], [], []>} : vector<8x40xbf16>, vector<40x128xbf16>, vector<8x128xf32> -> vector<8x128xf32>
    %8 = vector.extract_strided_slice %3 {offsets = [1, 0], sizes = [8, 40], strides = [1, 1]} : vector<10x40xbf16> to vector<8x40xbf16>
    %c0_11 = arith.constant 0 : index
    %c1 = arith.constant 1 : index
    %c0_12 = arith.constant 0 : index
    %c0_13 = arith.constant 0 : index
    %9 = vector.load %arg4[%c0_11, %c1, %c0_12, %c0_13] : memref<3x3x40x128xbf16, #tpu.memory_space<vmem>>, vector<1x1x40x128xbf16>
    %10 = vector.shape_cast %9 : vector<1x1x40x128xbf16> to vector<40x128xbf16>
    %cst_14 = arith.constant dense<0.000000e+00> : vector<8x128xf32>
    %11 = tpu.matmul %8, %10, %cst_14 {dimension_numbers = #tpu.dot_dimension_numbers<[1], [0], [0], [1], [0, 0, 1, 1], [], []>} : vector<8x40xbf16>, vector<40x128xbf16>, vector<8x128xf32> -> vector<8x128xf32>
    %12 = arith.addf %7, %11 : vector<8x128xf32>
    %13 = vector.extract_strided_slice %3 {offsets = [2, 0], sizes = [8, 40], strides = [1, 1]} : vector<10x40xbf16> to vector<8x40xbf16>
    %c0_15 = arith.constant 0 : index
    %c2 = arith.constant 2 : index
    %c0_16 = arith.constant 0 : index
    %c0_17 = arith.constant 0 : index
    %14 = vector.load %arg4[%c0_15, %c2, %c0_16, %c0_17] : memref<3x3x40x128xbf16, #tpu.memory_space<vmem>>, vector<1x1x40x128xbf16>
    %15 = vector.shape_cast %14 : vector<1x1x40x128xbf16> to vector<40x128xbf16>
    %cst_18 = arith.constant dense<0.000000e+00> : vector<8x128xf32>
    %16 = tpu.matmul %13, %15, %cst_18 {dimension_numbers = #tpu.dot_dimension_numbers<[1], [0], [0], [1], [0, 0, 1, 1], [], []>} : vector<8x40xbf16>, vector<40x128xbf16>, vector<8x128xf32> -> vector<8x128xf32>
    %17 = arith.addf %12, %16 : vector<8x128xf32>
    %c0_19 = arith.constant 0 : index
    %c1_20 = arith.constant 1 : index
    %c0_21 = arith.constant 0 : index
    %c0_22 = arith.constant 0 : index
    %18 = vector.load %arg2[%c0_19, %c1_20, %c0_21, %c0_22] : memref<1x8x10x40xbf16, #tpu.memory_space<vmem>>, vector<1x1x10x40xbf16>
    %19 = vector.shape_cast %18 : vector<1x1x10x40xbf16> to vector<10x40xbf16>
    %20 = vector.extract_strided_slice %19 {offsets = [0, 0], sizes = [8, 40], strides = [1, 1]} : vector<10x40xbf16> to vector<8x40xbf16>
    %c1_23 = arith.constant 1 : index
    %c0_24 = arith.constant 0 : index
    %c0_25 = arith.constant 0 : index
    %c0_26 = arith.constant 0 : index
    %21 = vector.load %arg4[%c1_23, %c0_24, %c0_25, %c0_26] : memref<3x3x40x128xbf16, #tpu.memory_space<vmem>>, vector<1x1x40x128xbf16>
    %22 = vector.shape_cast %21 : vector<1x1x40x128xbf16> to vector<40x128xbf16>
    %cst_27 = arith.constant dense<0.000000e+00> : vector<8x128xf32>
    %23 = tpu.matmul %20, %22, %cst_27 {dimension_numbers = #tpu.dot_dimension_numbers<[1], [0], [0], [1], [0, 0, 1, 1], [], []>} : vector<8x40xbf16>, vector<40x128xbf16>, vector<8x128xf32> -> vector<8x128xf32>
    %24 = arith.addf %17, %23 : vector<8x128xf32>
    %25 = vector.extract_strided_slice %19 {offsets = [1, 0], sizes = [8, 40], strides = [1, 1]} : vector<10x40xbf16> to vector<8x40xbf16>
    %c1_28 = arith.constant 1 : index
    %c1_29 = arith.constant 1 : index
    %c0_30 = arith.constant 0 : index
    %c0_31 = arith.constant 0 : index
    %26 = vector.load %arg4[%c1_28, %c1_29, %c0_30, %c0_31] : memref<3x3x40x128xbf16, #tpu.memory_space<vmem>>, vector<1x1x40x128xbf16>
    %27 = vector.shape_cast %26 : vector<1x1x40x128xbf16> to vector<40x128xbf16>
    %cst_32 = arith.constant dense<0.000000e+00> : vector<8x128xf32>
    %28 = tpu.matmul %25, %27, %cst_32 {dimension_numbers = #tpu.dot_dimension_numbers<[1], [0], [0], [1], [0, 0, 1, 1], [], []>} : vector<8x40xbf16>, vector<40x128xbf16>, vector<8x128xf32> -> vector<8x128xf32>
    %29 = arith.addf %24, %28 : vector<8x128xf32>
    %30 = vector.extract_strided_slice %19 {offsets = [2, 0], sizes = [8, 40], strides = [1, 1]} : vector<10x40xbf16> to vector<8x40xbf16>
    %c1_33 = arith.constant 1 : index
    %c2_34 = arith.constant 2 : index
    %c0_35 = arith.constant 0 : index
    %c0_36 = arith.constant 0 : index
    %31 = vector.load %arg4[%c1_33, %c2_34, %c0_35, %c0_36] : memref<3x3x40x128xbf16, #tpu.memory_space<vmem>>, vector<1x1x40x128xbf16>
    %32 = vector.shape_cast %31 : vector<1x1x40x128xbf16> to vector<40x128xbf16>
    %cst_37 = arith.constant dense<0.000000e+00> : vector<8x128xf32>
    %33 = tpu.matmul %30, %32, %cst_37 {dimension_numbers = #tpu.dot_dimension_numbers<[1], [0], [0], [1], [0, 0, 1, 1], [], []>} : vector<8x40xbf16>, vector<40x128xbf16>, vector<8x128xf32> -> vector<8x128xf32>
    %34 = arith.addf %29, %33 : vector<8x128xf32>
    %c0_38 = arith.constant 0 : index
    %c2_39 = arith.constant 2 : index
    %c0_40 = arith.constant 0 : index
    %c0_41 = arith.constant 0 : index
    %35 = vector.load %arg2[%c0_38, %c2_39, %c0_40, %c0_41] : memref<1x8x10x40xbf16, #tpu.memory_space<vmem>>, vector<1x1x10x40xbf16>
    %36 = vector.shape_cast %35 : vector<1x1x10x40xbf16> to vector<10x40xbf16>
    %37 = vector.extract_strided_slice %36 {offsets = [0, 0], sizes = [8, 40], strides = [1, 1]} : vector<10x40xbf16> to vector<8x40xbf16>
    %c2_42 = arith.constant 2 : index
    %c0_43 = arith.constant 0 : index
    %c0_44 = arith.constant 0 : index
    %c0_45 = arith.constant 0 : index
    %38 = vector.load %arg4[%c2_42, %c0_43, %c0_44, %c0_45] : memref<3x3x40x128xbf16, #tpu.memory_space<vmem>>, vector<1x1x40x128xbf16>
    %39 = vector.shape_cast %38 : vector<1x1x40x128xbf16> to vector<40x128xbf16>
    %cst_46 = arith.constant dense<0.000000e+00> : vector<8x128xf32>
    %40 = tpu.matmul %37, %39, %cst_46 {dimension_numbers = #tpu.dot_dimension_numbers<[1], [0], [0], [1], [0, 0, 1, 1], [], []>} : vector<8x40xbf16>, vector<40x128xbf16>, vector<8x128xf32> -> vector<8x128xf32>
    %41 = arith.addf %34, %40 : vector<8x128xf32>
    %42 = vector.extract_strided_slice %36 {offsets = [1, 0], sizes = [8, 40], strides = [1, 1]} : vector<10x40xbf16> to vector<8x40xbf16>
    %c2_47 = arith.constant 2 : index
    %c1_48 = arith.constant 1 : index
    %c0_49 = arith.constant 0 : index
    %c0_50 = arith.constant 0 : index
    %43 = vector.load %arg4[%c2_47, %c1_48, %c0_49, %c0_50] : memref<3x3x40x128xbf16, #tpu.memory_space<vmem>>, vector<1x1x40x128xbf16>
    %44 = vector.shape_cast %43 : vector<1x1x40x128xbf16> to vector<40x128xbf16>
    %cst_51 = arith.constant dense<0.000000e+00> : vector<8x128xf32>
    %45 = tpu.matmul %42, %44, %cst_51 {dimension_numbers = #tpu.dot_dimension_numbers<[1], [0], [0], [1], [0, 0, 1, 1], [], []>} : vector<8x40xbf16>, vector<40x128xbf16>, vector<8x128xf32> -> vector<8x128xf32>
    %46 = arith.addf %41, %45 : vector<8x128xf32>
    %47 = vector.extract_strided_slice %36 {offsets = [2, 0], sizes = [8, 40], strides = [1, 1]} : vector<10x40xbf16> to vector<8x40xbf16>
    %c2_52 = arith.constant 2 : index
    %c2_53 = arith.constant 2 : index
    %c0_54 = arith.constant 0 : index
    %c0_55 = arith.constant 0 : index
    %48 = vector.load %arg4[%c2_52, %c2_53, %c0_54, %c0_55] : memref<3x3x40x128xbf16, #tpu.memory_space<vmem>>, vector<1x1x40x128xbf16>
    %49 = vector.shape_cast %48 : vector<1x1x40x128xbf16> to vector<40x128xbf16>
    %cst_56 = arith.constant dense<0.000000e+00> : vector<8x128xf32>
    %50 = tpu.matmul %47, %49, %cst_56 {dimension_numbers = #tpu.dot_dimension_numbers<[1], [0], [0], [1], [0, 0, 1, 1], [], []>} : vector<8x40xbf16>, vector<40x128xbf16>, vector<8x128xf32> -> vector<8x128xf32>
    %51 = arith.addf %46, %50 : vector<8x128xf32>
    %52 = vector.broadcast %0 : vector<1x128xf32> to vector<8x128xf32>
    %53 = arith.mulf %51, %52 : vector<8x128xf32>
    %54 = vector.broadcast %1 : vector<1x128xf32> to vector<8x128xf32>
    %55 = arith.addf %53, %54 : vector<8x128xf32>
    %cst_57 = arith.constant 0.000000e+00 : f32
    %56 = vector.broadcast %cst_57 : f32 to vector<8x128xf32>
    %57 = arith.maximumf %55, %56 : vector<8x128xf32>
    %c0_58 = arith.constant 0 : index
    %c0_59 = arith.constant 0 : index
    %c0_60 = arith.constant 0 : index
    %c0_61 = arith.constant 0 : index
    %58 = vector.load %arg7[%c0_58, %c0_59, %c0_60, %c0_61] : memref<1x8x8x128xf32, #tpu.memory_space<vmem>>, vector<1x1x8x128xf32>
    %59 = vector.shape_cast %58 : vector<1x1x8x128xf32> to vector<8x128xf32>
    %60 = vector.shape_cast %57 : vector<8x128xf32> to vector<1x1x8x128xf32>
    tpu.vector_store %arg7[%c0_58, %c0_59, %c0_60, %c0_61], %60 {strides = array<i32>} : memref<1x8x8x128xf32, #tpu.memory_space<vmem>>, vector<1x1x8x128xf32>,
    %c0_62 = arith.constant 0 : index
    %c1_63 = arith.constant 1 : index
    %c0_64 = arith.constant 0 : index
    %c0_65 = arith.constant 0 : index
    %61 = vector.load %arg2[%c0_62, %c1_63, %c0_64, %c0_65] : memref<1x8x10x40xbf16, #tpu.memory_space<vmem>>, vector<1x1x10x40xbf16>
    %62 = vector.shape_cast %61 : vector<1x1x10x40xbf16> to vector<10x40xbf16>
    %63 = vector.extract_strided_slice %62 {offsets = [0, 0], sizes = [8, 40], strides = [1, 1]} : vector<10x40xbf16> to vector<8x40xbf16>
    %c0_66 = arith.constant 0 : index
    %c0_67 = arith.constant 0 : index
    %c0_68 = arith.constant 0 : index
    %c0_69 = arith.constant 0 : index
    %64 = vector.load %arg4[%c0_66, %c0_67, %c0_68, %c0_69] : memref<3x3x40x128xbf16, #tpu.memory_space<vmem>>, vector<1x1x40x128xbf16>
    %65 = vector.shape_cast %64 : vector<1x1x40x128xbf16> to vector<40x128xbf16>
    %cst_70 = arith.constant dense<0.000000e+00> : vector<8x128xf32>
    %66 = tpu.matmul %63, %65, %cst_70 {dimension_numbers = #tpu.dot_dimension_numbers<[1], [0], [0], [1], [0, 0, 1, 1], [], []>} : vector<8x40xbf16>, vector<40x128xbf16>, vector<8x128xf32> -> vector<8x128xf32>
    %67 = vector.extract_strided_slice %62 {offsets = [1, 0], sizes = [8, 40], strides = [1, 1]} : vector<10x40xbf16> to vector<8x40xbf16>
    %c0_71 = arith.constant 0 : index
    %c1_72 = arith.constant 1 : index
    %c0_73 = arith.constant 0 : index
    %c0_74 = arith.constant 0 : index
    %68 = vector.load %arg4[%c0_71, %c1_72, %c0_73, %c0_74] : memref<3x3x40x128xbf16, #tpu.memory_space<vmem>>, vector<1x1x40x128xbf16>
    %69 = vector.shape_cast %68 : vector<1x1x40x128xbf16> to vector<40x128xbf16>
    %cst_75 = arith.constant dense<0.000000e+00> : vector<8x128xf32>
    %70 = tpu.matmul %67, %69, %cst_75 {dimension_numbers = #tpu.dot_dimension_numbers<[1], [0], [0], [1], [0, 0, 1, 1], [], []>} : vector<8x40xbf16>, vector<40x128xbf16>, vector<8x128xf32> -> vector<8x128xf32>
    %71 = arith.addf %66, %70 : vector<8x128xf32>
    %72 = vector.extract_strided_slice %62 {offsets = [2, 0], sizes = [8, 40], strides = [1, 1]} : vector<10x40xbf16> to vector<8x40xbf16>
    %c0_76 = arith.constant 0 : index
    %c2_77 = arith.constant 2 : index
    %c0_78 = arith.constant 0 : index
    %c0_79 = arith.constant 0 : index
    %73 = vector.load %arg4[%c0_76, %c2_77, %c0_78, %c0_79] : memref<3x3x40x128xbf16, #tpu.memory_space<vmem>>, vector<1x1x40x128xbf16>
    %74 = vector.shape_cast %73 : vector<1x1x40x128xbf16> to vector<40x128xbf16>
    %cst_80 = arith.constant dense<0.000000e+00> : vector<8x128xf32>
    %75 = tpu.matmul %72, %74, %cst_80 {dimension_numbers = #tpu.dot_dimension_numbers<[1], [0], [0], [1], [0, 0, 1, 1], [], []>} : vector<8x40xbf16>, vector<40x128xbf16>, vector<8x128xf32> -> vector<8x128xf32>
    %76 = arith.addf %71, %75 : vector<8x128xf32>
    %c0_81 = arith.constant 0 : index
    %c2_82 = arith.constant 2 : index
    %c0_83 = arith.constant 0 : index
    %c0_84 = arith.constant 0 : index
    %77 = vector.load %arg2[%c0_81, %c2_82, %c0_83, %c0_84] : memref<1x8x10x40xbf16, #tpu.memory_space<vmem>>, vector<1x1x10x40xbf16>
    %78 = vector.shape_cast %77 : vector<1x1x10x40xbf16> to vector<10x40xbf16>
    %79 = vector.extract_strided_slice %78 {offsets = [0, 0], sizes = [8, 40], strides = [1, 1]} : vector<10x40xbf16> to vector<8x40xbf16>
    %c1_85 = arith.constant 1 : index
    %c0_86 = arith.constant 0 : index
    %c0_87 = arith.constant 0 : index
    %c0_88 = arith.constant 0 : index
    %80 = vector.load %arg4[%c1_85, %c0_86, %c0_87, %c0_88] : memref<3x3x40x128xbf16, #tpu.memory_space<vmem>>, vector<1x1x40x128xbf16>
    %81 = vector.shape_cast %80 : vector<1x1x40x128xbf16> to vector<40x128xbf16>
    %cst_89 = arith.constant dense<0.000000e+00> : vector<8x128xf32>
    %82 = tpu.matmul %79, %81, %cst_89 {dimension_numbers = #tpu.dot_dimension_numbers<[1], [0], [0], [1], [0, 0, 1, 1], [], []>} : vector<8x40xbf16>, vector<40x128xbf16>, vector<8x128xf32> -> vector<8x128xf32>
    %83 = arith.addf %76, %82 : vector<8x128xf32>
    %84 = vector.extract_strided_slice %78 {offsets = [1, 0], sizes = [8, 40], strides = [1, 1]} : vector<10x40xbf16> to vector<8x40xbf16>
    %c1_90 = arith.constant 1 : index
    %c1_91 = arith.constant 1 : index
    %c0_92 = arith.constant 0 : index
    %c0_93 = arith.constant 0 : index
    %85 = vector.load %arg4[%c1_90, %c1_91, %c0_92, %c0_93] : memref<3x3x40x128xbf16, #tpu.memory_space<vmem>>, vector<1x1x40x128xbf16>
    %86 = vector.shape_cast %85 : vector<1x1x40x128xbf16> to vector<40x128xbf16>
    %cst_94 = arith.constant dense<0.000000e+00> : vector<8x128xf32>
    %87 = tpu.matmul %84, %86, %cst_94 {dimension_numbers = #tpu.dot_dimension_numbers<[1], [0], [0], [1], [0, 0, 1, 1], [], []>} : vector<8x40xbf16>, vector<40x128xbf16>, vector<8x128xf32> -> vector<8x128xf32>
    %88 = arith.addf %83, %87 : vector<8x128xf32>
    %89 = vector.extract_strided_slice %78 {offsets = [2, 0], sizes = [8, 40], strides = [1, 1]} : vector<10x40xbf16> to vector<8x40xbf16>
    %c1_95 = arith.constant 1 : index
    %c2_96 = arith.constant 2 : index
    %c0_97 = arith.constant 0 : index
    %c0_98 = arith.constant 0 : index
    %90 = vector.load %arg4[%c1_95, %c2_96, %c0_97, %c0_98] : memref<3x3x40x128xbf16, #tpu.memory_space<vmem>>, vector<1x1x40x128xbf16>
    %91 = vector.shape_cast %90 : vector<1x1x40x128xbf16> to vector<40x128xbf16>
    %cst_99 = arith.constant dense<0.000000e+00> : vector<8x128xf32>
    %92 = tpu.matmul %89, %91, %cst_99 {dimension_numbers = #tpu.dot_dimension_numbers<[1], [0], [0], [1], [0, 0, 1, 1], [], []>} : vector<8x40xbf16>, vector<40x128xbf16>, vector<8x128xf32> -> vector<8x128xf32>
    %93 = arith.addf %88, %92 : vector<8x128xf32>
    %c0_100 = arith.constant 0 : index
    %c3 = arith.constant 3 : index
    %c0_101 = arith.constant 0 : index
    %c0_102 = arith.constant 0 : index
    %94 = vector.load %arg2[%c0_100, %c3, %c0_101, %c0_102] : memref<1x8x10x40xbf16, #tpu.memory_space<vmem>>, vector<1x1x10x40xbf16>
    %95 = vector.shape_cast %94 : vector<1x1x10x40xbf16> to vector<10x40xbf16>
    %96 = vector.extract_strided_slice %95 {offsets = [0, 0], sizes = [8, 40], strides = [1, 1]} : vector<10x40xbf16> to vector<8x40xbf16>
    %c2_103 = arith.constant 2 : index
    %c0_104 = arith.constant 0 : index
    %c0_105 = arith.constant 0 : index
    %c0_106 = arith.constant 0 : index
    %97 = vector.load %arg4[%c2_103, %c0_104, %c0_105, %c0_106] : memref<3x3x40x128xbf16, #tpu.memory_space<vmem>>, vector<1x1x40x128xbf16>
    %98 = vector.shape_cast %97 : vector<1x1x40x128xbf16> to vector<40x128xbf16>
    %cst_107 = arith.constant dense<0.000000e+00> : vector<8x128xf32>
    %99 = tpu.matmul %96, %98, %cst_107 {dimension_numbers = #tpu.dot_dimension_numbers<[1], [0], [0], [1], [0, 0, 1, 1], [], []>} : vector<8x40xbf16>, vector<40x128xbf16>, vector<8x128xf32> -> vector<8x128xf32>
    %100 = arith.addf %93, %99 : vector<8x128xf32>
    %101 = vector.extract_strided_slice %95 {offsets = [1, 0], sizes = [8, 40], strides = [1, 1]} : vector<10x40xbf16> to vector<8x40xbf16>
    %c2_108 = arith.constant 2 : index
    %c1_109 = arith.constant 1 : index
    %c0_110 = arith.constant 0 : index
    %c0_111 = arith.constant 0 : index
    %102 = vector.load %arg4[%c2_108, %c1_109, %c0_110, %c0_111] : memref<3x3x40x128xbf16, #tpu.memory_space<vmem>>, vector<1x1x40x128xbf16>
    %103 = vector.shape_cast %102 : vector<1x1x40x128xbf16> to vector<40x128xbf16>
    %cst_112 = arith.constant dense<0.000000e+00> : vector<8x128xf32>
    %104 = tpu.matmul %101, %103, %cst_112 {dimension_numbers = #tpu.dot_dimension_numbers<[1], [0], [0], [1], [0, 0, 1, 1], [], []>} : vector<8x40xbf16>, vector<40x128xbf16>, vector<8x128xf32> -> vector<8x128xf32>
    %105 = arith.addf %100, %104 : vector<8x128xf32>
    %106 = vector.extract_strided_slice %95 {offsets = [2, 0], sizes = [8, 40], strides = [1, 1]} : vector<10x40xbf16> to vector<8x40xbf16>
    %c2_113 = arith.constant 2 : index
    %c2_114 = arith.constant 2 : index
    %c0_115 = arith.constant 0 : index
    %c0_116 = arith.constant 0 : index
    %107 = vector.load %arg4[%c2_113, %c2_114, %c0_115, %c0_116] : memref<3x3x40x128xbf16, #tpu.memory_space<vmem>>, vector<1x1x40x128xbf16>
    %108 = vector.shape_cast %107 : vector<1x1x40x128xbf16> to vector<40x128xbf16>
    %cst_117 = arith.constant dense<0.000000e+00> : vector<8x128xf32>
    %109 = tpu.matmul %106, %108, %cst_117 {dimension_numbers = #tpu.dot_dimension_numbers<[1], [0], [0], [1], [0, 0, 1, 1], [], []>} : vector<8x40xbf16>, vector<40x128xbf16>, vector<8x128xf32> -> vector<8x128xf32>
    %110 = arith.addf %105, %109 : vector<8x128xf32>
    %111 = vector.broadcast %0 : vector<1x128xf32> to vector<8x128xf32>
    %112 = arith.mulf %110, %111 : vector<8x128xf32>
    %113 = vector.broadcast %1 : vector<1x128xf32> to vector<8x128xf32>
    %114 = arith.addf %112, %113 : vector<8x128xf32>
    %cst_118 = arith.constant 0.000000e+00 : f32
    %115 = vector.broadcast %cst_118 : f32 to vector<8x128xf32>
    %116 = arith.maximumf %114, %115 : vector<8x128xf32>
    %c0_119 = arith.constant 0 : index
    %c1_120 = arith.constant 1 : index
    %c0_121 = arith.constant 0 : index
    %c0_122 = arith.constant 0 : index
    %117 = vector.load %arg7[%c0_119, %c1_120, %c0_121, %c0_122] : memref<1x8x8x128xf32, #tpu.memory_space<vmem>>, vector<1x1x8x128xf32>
    %118 = vector.shape_cast %117 : vector<1x1x8x128xf32> to vector<8x128xf32>
    %119 = vector.shape_cast %116 : vector<8x128xf32> to vector<1x1x8x128xf32>
    tpu.vector_store %arg7[%c0_119, %c1_120, %c0_121, %c0_122], %119 {strides = array<i32>} : memref<1x8x8x128xf32, #tpu.memory_space<vmem>>, vector<1x1x8x128xf32>,
    %c0_123 = arith.constant 0 : index
    %c2_124 = arith.constant 2 : index
    %c0_125 = arith.constant 0 : index
    %c0_126 = arith.constant 0 : index
    %120 = vector.load %arg2[%c0_123, %c2_124, %c0_125, %c0_126] : memref<1x8x10x40xbf16, #tpu.memory_space<vmem>>, vector<1x1x10x40xbf16>
    %121 = vector.shape_cast %120 : vector<1x1x10x40xbf16> to vector<10x40xbf16>
    %122 = vector.extract_strided_slice %121 {offsets = [0, 0], sizes = [8, 40], strides = [1, 1]} : vector<10x40xbf16> to vector<8x40xbf16>
    %c0_127 = arith.constant 0 : index
    %c0_128 = arith.constant 0 : index
    %c0_129 = arith.constant 0 : index
    %c0_130 = arith.constant 0 : index
    %123 = vector.load %arg4[%c0_127, %c0_128, %c0_129, %c0_130] : memref<3x3x40x128xbf16, #tpu.memory_space<vmem>>, vector<1x1x40x128xbf16>
    %124 = vector.shape_cast %123 : vector<1x1x40x128xbf16> to vector<40x128xbf16>
    %cst_131 = arith.constant dense<0.000000e+00> : vector<8x128xf32>
    %125 = tpu.matmul %122, %124, %cst_131 {dimension_numbers = #tpu.dot_dimension_numbers<[1], [0], [0], [1], [0, 0, 1, 1], [], []>} : vector<8x40xbf16>, vector<40x128xbf16>, vector<8x128xf32> -> vector<8x128xf32>
    %126 = vector.extract_strided_slice %121 {offsets = [1, 0], sizes = [8, 40], strides = [1, 1]} : vector<10x40xbf16> to vector<8x40xbf16>
    %c0_132 = arith.constant 0 : index
    %c1_133 = arith.constant 1 : index
    %c0_134 = arith.constant 0 : index
    %c0_135 = arith.constant 0 : index
    %127 = vector.load %arg4[%c0_132, %c1_133, %c0_134, %c0_135] : memref<3x3x40x128xbf16, #tpu.memory_space<vmem>>, vector<1x1x40x128xbf16>
    %128 = vector.shape_cast %127 : vector<1x1x40x128xbf16> to vector<40x128xbf16>
    %cst_136 = arith.constant dense<0.000000e+00> : vector<8x128xf32>
    %129 = tpu.matmul %126, %128, %cst_136 {dimension_numbers = #tpu.dot_dimension_numbers<[1], [0], [0], [1], [0, 0, 1, 1], [], []>} : vector<8x40xbf16>, vector<40x128xbf16>, vector<8x128xf32> -> vector<8x128xf32>
    %130 = arith.addf %125, %129 : vector<8x128xf32>
    %131 = vector.extract_strided_slice %121 {offsets = [2, 0], sizes = [8, 40], strides = [1, 1]} : vector<10x40xbf16> to vector<8x40xbf16>
    %c0_137 = arith.constant 0 : index
    %c2_138 = arith.constant 2 : index
    %c0_139 = arith.constant 0 : index
    %c0_140 = arith.constant 0 : index
    %132 = vector.load %arg4[%c0_137, %c2_138, %c0_139, %c0_140] : memref<3x3x40x128xbf16, #tpu.memory_space<vmem>>, vector<1x1x40x128xbf16>
    %133 = vector.shape_cast %132 : vector<1x1x40x128xbf16> to vector<40x128xbf16>
    %cst_141 = arith.constant dense<0.000000e+00> : vector<8x128xf32>
    %134 = tpu.matmul %131, %133, %cst_141 {dimension_numbers = #tpu.dot_dimension_numbers<[1], [0], [0], [1], [0, 0, 1, 1], [], []>} : vector<8x40xbf16>, vector<40x128xbf16>, vector<8x128xf32> -> vector<8x128xf32>
    %135 = arith.addf %130, %134 : vector<8x128xf32>
    %c0_142 = arith.constant 0 : index
    %c3_143 = arith.constant 3 : index
    %c0_144 = arith.constant 0 : index
    %c0_145 = arith.constant 0 : index
    %136 = vector.load %arg2[%c0_142, %c3_143, %c0_144, %c0_145] : memref<1x8x10x40xbf16, #tpu.memory_space<vmem>>, vector<1x1x10x40xbf16>
    %137 = vector.shape_cast %136 : vector<1x1x10x40xbf16> to vector<10x40xbf16>
    %138 = vector.extract_strided_slice %137 {offsets = [0, 0], sizes = [8, 40], strides = [1, 1]} : vector<10x40xbf16> to vector<8x40xbf16>
    %c1_146 = arith.constant 1 : index
    %c0_147 = arith.constant 0 : index
    %c0_148 = arith.constant 0 : index
    %c0_149 = arith.constant 0 : index
    %139 = vector.load %arg4[%c1_146, %c0_147, %c0_148, %c0_149] : memref<3x3x40x128xbf16, #tpu.memory_space<vmem>>, vector<1x1x40x128xbf16>
    %140 = vector.shape_cast %139 : vector<1x1x40x128xbf16> to vector<40x128xbf16>
    %cst_150 = arith.constant dense<0.000000e+00> : vector<8x128xf32>
    %141 = tpu.matmul %138, %140, %cst_150 {dimension_numbers = #tpu.dot_dimension_numbers<[1], [0], [0], [1], [0, 0, 1, 1], [], []>} : vector<8x40xbf16>, vector<40x128xbf16>, vector<8x128xf32> -> vector<8x128xf32>
    %142 = arith.addf %135, %141 : vector<8x128xf32>
    %143 = vector.extract_strided_slice %137 {offsets = [1, 0], sizes = [8, 40], strides = [1, 1]} : vector<10x40xbf16> to vector<8x40xbf16>
    %c1_151 = arith.constant 1 : index
    %c1_152 = arith.constant 1 : index
    %c0_153 = arith.constant 0 : index
    %c0_154 = arith.constant 0 : index
    %144 = vector.load %arg4[%c1_151, %c1_152, %c0_153, %c0_154] : memref<3x3x40x128xbf16, #tpu.memory_space<vmem>>, vector<1x1x40x128xbf16>
    %145 = vector.shape_cast %144 : vector<1x1x40x128xbf16> to vector<40x128xbf16>
    %cst_155 = arith.constant dense<0.000000e+00> : vector<8x128xf32>
    %146 = tpu.matmul %143, %145, %cst_155 {dimension_numbers = #tpu.dot_dimension_numbers<[1], [0], [0], [1], [0, 0, 1, 1], [], []>} : vector<8x40xbf16>, vector<40x128xbf16>, vector<8x128xf32> -> vector<8x128xf32>
    %147 = arith.addf %142, %146 : vector<8x128xf32>
    %148 = vector.extract_strided_slice %137 {offsets = [2, 0], sizes = [8, 40], strides = [1, 1]} : vector<10x40xbf16> to vector<8x40xbf16>
    %c1_156 = arith.constant 1 : index
    %c2_157 = arith.constant 2 : index
    %c0_158 = arith.constant 0 : index
    %c0_159 = arith.constant 0 : index
    %149 = vector.load %arg4[%c1_156, %c2_157, %c0_158, %c0_159] : memref<3x3x40x128xbf16, #tpu.memory_space<vmem>>, vector<1x1x40x128xbf16>
    %150 = vector.shape_cast %149 : vector<1x1x40x128xbf16> to vector<40x128xbf16>
    %cst_160 = arith.constant dense<0.000000e+00> : vector<8x128xf32>
    %151 = tpu.matmul %148, %150, %cst_160 {dimension_numbers = #tpu.dot_dimension_numbers<[1], [0], [0], [1], [0, 0, 1, 1], [], []>} : vector<8x40xbf16>, vector<40x128xbf16>, vector<8x128xf32> -> vector<8x128xf32>
    %152 = arith.addf %147, %151 : vector<8x128xf32>
    %c0_161 = arith.constant 0 : index
    %c4 = arith.constant 4 : index
    %c0_162 = arith.constant 0 : index
    %c0_163 = arith.constant 0 : index
    %153 = vector.load %arg2[%c0_161, %c4, %c0_162, %c0_163] : memref<1x8x10x40xbf16, #tpu.memory_space<vmem>>, vector<1x1x10x40xbf16>
    %154 = vector.shape_cast %153 : vector<1x1x10x40xbf16> to vector<10x40xbf16>
    %155 = vector.extract_strided_slice %154 {offsets = [0, 0], sizes = [8, 40], strides = [1, 1]} : vector<10x40xbf16> to vector<8x40xbf16>
    %c2_164 = arith.constant 2 : index
    %c0_165 = arith.constant 0 : index
    %c0_166 = arith.constant 0 : index
    %c0_167 = arith.constant 0 : index
    %156 = vector.load %arg4[%c2_164, %c0_165, %c0_166, %c0_167] : memref<3x3x40x128xbf16, #tpu.memory_space<vmem>>, vector<1x1x40x128xbf16>
    %157 = vector.shape_cast %156 : vector<1x1x40x128xbf16> to vector<40x128xbf16>
    %cst_168 = arith.constant dense<0.000000e+00> : vector<8x128xf32>
    %158 = tpu.matmul %155, %157, %cst_168 {dimension_numbers = #tpu.dot_dimension_numbers<[1], [0], [0], [1], [0, 0, 1, 1], [], []>} : vector<8x40xbf16>, vector<40x128xbf16>, vector<8x128xf32> -> vector<8x128xf32>
    %159 = arith.addf %152, %158 : vector<8x128xf32>
    %160 = vector.extract_strided_slice %154 {offsets = [1, 0], sizes = [8, 40], strides = [1, 1]} : vector<10x40xbf16> to vector<8x40xbf16>
    %c2_169 = arith.constant 2 : index
    %c1_170 = arith.constant 1 : index
    %c0_171 = arith.constant 0 : index
    %c0_172 = arith.constant 0 : index
    %161 = vector.load %arg4[%c2_169, %c1_170, %c0_171, %c0_172] : memref<3x3x40x128xbf16, #tpu.memory_space<vmem>>, vector<1x1x40x128xbf16>
    %162 = vector.shape_cast %161 : vector<1x1x40x128xbf16> to vector<40x128xbf16>
    %cst_173 = arith.constant dense<0.000000e+00> : vector<8x128xf32>
    %163 = tpu.matmul %160, %162, %cst_173 {dimension_numbers = #tpu.dot_dimension_numbers<[1], [0], [0], [1], [0, 0, 1, 1], [], []>} : vector<8x40xbf16>, vector<40x128xbf16>, vector<8x128xf32> -> vector<8x128xf32>
    %164 = arith.addf %159, %163 : vector<8x128xf32>
    %165 = vector.extract_strided_slice %154 {offsets = [2, 0], sizes = [8, 40], strides = [1, 1]} : vector<10x40xbf16> to vector<8x40xbf16>
    %c2_174 = arith.constant 2 : index
    %c2_175 = arith.constant 2 : index
    %c0_176 = arith.constant 0 : index
    %c0_177 = arith.constant 0 : index
    %166 = vector.load %arg4[%c2_174, %c2_175, %c0_176, %c0_177] : memref<3x3x40x128xbf16, #tpu.memory_space<vmem>>, vector<1x1x40x128xbf16>
    %167 = vector.shape_cast %166 : vector<1x1x40x128xbf16> to vector<40x128xbf16>
    %cst_178 = arith.constant dense<0.000000e+00> : vector<8x128xf32>
    %168 = tpu.matmul %165, %167, %cst_178 {dimension_numbers = #tpu.dot_dimension_numbers<[1], [0], [0], [1], [0, 0, 1, 1], [], []>} : vector<8x40xbf16>, vector<40x128xbf16>, vector<8x128xf32> -> vector<8x128xf32>
    %169 = arith.addf %164, %168 : vector<8x128xf32>
    %170 = vector.broadcast %0 : vector<1x128xf32> to vector<8x128xf32>
    %171 = arith.mulf %169, %170 : vector<8x128xf32>
    %172 = vector.broadcast %1 : vector<1x128xf32> to vector<8x128xf32>
    %173 = arith.addf %171, %172 : vector<8x128xf32>
    %cst_179 = arith.constant 0.000000e+00 : f32
    %174 = vector.broadcast %cst_179 : f32 to vector<8x128xf32>
    %175 = arith.maximumf %173, %174 : vector<8x128xf32>
    %c0_180 = arith.constant 0 : index
    %c2_181 = arith.constant 2 : index
    %c0_182 = arith.constant 0 : index
    %c0_183 = arith.constant 0 : index
    %176 = vector.load %arg7[%c0_180, %c2_181, %c0_182, %c0_183] : memref<1x8x8x128xf32, #tpu.memory_space<vmem>>, vector<1x1x8x128xf32>
    %177 = vector.shape_cast %176 : vector<1x1x8x128xf32> to vector<8x128xf32>
    %178 = vector.shape_cast %175 : vector<8x128xf32> to vector<1x1x8x128xf32>
    tpu.vector_store %arg7[%c0_180, %c2_181, %c0_182, %c0_183], %178 {strides = array<i32>} : memref<1x8x8x128xf32, #tpu.memory_space<vmem>>, vector<1x1x8x128xf32>,
    %c0_184 = arith.constant 0 : index
    %c3_185 = arith.constant 3 : index
    %c0_186 = arith.constant 0 : index
    %c0_187 = arith.constant 0 : index
    %179 = vector.load %arg2[%c0_184, %c3_185, %c0_186, %c0_187] : memref<1x8x10x40xbf16, #tpu.memory_space<vmem>>, vector<1x1x10x40xbf16>
    %180 = vector.shape_cast %179 : vector<1x1x10x40xbf16> to vector<10x40xbf16>
    %181 = vector.extract_strided_slice %180 {offsets = [0, 0], sizes = [8, 40], strides = [1, 1]} : vector<10x40xbf16> to vector<8x40xbf16>
    %c0_188 = arith.constant 0 : index
    %c0_189 = arith.constant 0 : index
    %c0_190 = arith.constant 0 : index
    %c0_191 = arith.constant 0 : index
    %182 = vector.load %arg4[%c0_188, %c0_189, %c0_190, %c0_191] : memref<3x3x40x128xbf16, #tpu.memory_space<vmem>>, vector<1x1x40x128xbf16>
    %183 = vector.shape_cast %182 : vector<1x1x40x128xbf16> to vector<40x128xbf16>
    %cst_192 = arith.constant dense<0.000000e+00> : vector<8x128xf32>
    %184 = tpu.matmul %181, %183, %cst_192 {dimension_numbers = #tpu.dot_dimension_numbers<[1], [0], [0], [1], [0, 0, 1, 1], [], []>} : vector<8x40xbf16>, vector<40x128xbf16>, vector<8x128xf32> -> vector<8x128xf32>
    %185 = vector.extract_strided_slice %180 {offsets = [1, 0], sizes = [8, 40], strides = [1, 1]} : vector<10x40xbf16> to vector<8x40xbf16>
    %c0_193 = arith.constant 0 : index
    %c1_194 = arith.constant 1 : index
    %c0_195 = arith.constant 0 : index
    %c0_196 = arith.constant 0 : index
    %186 = vector.load %arg4[%c0_193, %c1_194, %c0_195, %c0_196] : memref<3x3x40x128xbf16, #tpu.memory_space<vmem>>, vector<1x1x40x128xbf16>
    %187 = vector.shape_cast %186 : vector<1x1x40x128xbf16> to vector<40x128xbf16>
    %cst_197 = arith.constant dense<0.000000e+00> : vector<8x128xf32>
    %188 = tpu.matmul %185, %187, %cst_197 {dimension_numbers = #tpu.dot_dimension_numbers<[1], [0], [0], [1], [0, 0, 1, 1], [], []>} : vector<8x40xbf16>, vector<40x128xbf16>, vector<8x128xf32> -> vector<8x128xf32>
    %189 = arith.addf %184, %188 : vector<8x128xf32>
    %190 = vector.extract_strided_slice %180 {offsets = [2, 0], sizes = [8, 40], strides = [1, 1]} : vector<10x40xbf16> to vector<8x40xbf16>
    %c0_198 = arith.constant 0 : index
    %c2_199 = arith.constant 2 : index
    %c0_200 = arith.constant 0 : index
    %c0_201 = arith.constant 0 : index
    %191 = vector.load %arg4[%c0_198, %c2_199, %c0_200, %c0_201] : memref<3x3x40x128xbf16, #tpu.memory_space<vmem>>, vector<1x1x40x128xbf16>
    %192 = vector.shape_cast %191 : vector<1x1x40x128xbf16> to vector<40x128xbf16>
    %cst_202 = arith.constant dense<0.000000e+00> : vector<8x128xf32>
    %193 = tpu.matmul %190, %192, %cst_202 {dimension_numbers = #tpu.dot_dimension_numbers<[1], [0], [0], [1], [0, 0, 1, 1], [], []>} : vector<8x40xbf16>, vector<40x128xbf16>, vector<8x128xf32> -> vector<8x128xf32>
    %194 = arith.addf %189, %193 : vector<8x128xf32>
    %c0_203 = arith.constant 0 : index
    %c4_204 = arith.constant 4 : index
    %c0_205 = arith.constant 0 : index
    %c0_206 = arith.constant 0 : index
    %195 = vector.load %arg2[%c0_203, %c4_204, %c0_205, %c0_206] : memref<1x8x10x40xbf16, #tpu.memory_space<vmem>>, vector<1x1x10x40xbf16>
    %196 = vector.shape_cast %195 : vector<1x1x10x40xbf16> to vector<10x40xbf16>
    %197 = vector.extract_strided_slice %196 {offsets = [0, 0], sizes = [8, 40], strides = [1, 1]} : vector<10x40xbf16> to vector<8x40xbf16>
    %c1_207 = arith.constant 1 : index
    %c0_208 = arith.constant 0 : index
    %c0_209 = arith.constant 0 : index
    %c0_210 = arith.constant 0 : index
    %198 = vector.load %arg4[%c1_207, %c0_208, %c0_209, %c0_210] : memref<3x3x40x128xbf16, #tpu.memory_space<vmem>>, vector<1x1x40x128xbf16>
    %199 = vector.shape_cast %198 : vector<1x1x40x128xbf16> to vector<40x128xbf16>
    %cst_211 = arith.constant dense<0.000000e+00> : vector<8x128xf32>
    %200 = tpu.matmul %197, %199, %cst_211 {dimension_numbers = #tpu.dot_dimension_numbers<[1], [0], [0], [1], [0, 0, 1, 1], [], []>} : vector<8x40xbf16>, vector<40x128xbf16>, vector<8x128xf32> -> vector<8x128xf32>
    %201 = arith.addf %194, %200 : vector<8x128xf32>
    %202 = vector.extract_strided_slice %196 {offsets = [1, 0], sizes = [8, 40], strides = [1, 1]} : vector<10x40xbf16> to vector<8x40xbf16>
    %c1_212 = arith.constant 1 : index
    %c1_213 = arith.constant 1 : index
    %c0_214 = arith.constant 0 : index
    %c0_215 = arith.constant 0 : index
    %203 = vector.load %arg4[%c1_212, %c1_213, %c0_214, %c0_215] : memref<3x3x40x128xbf16, #tpu.memory_space<vmem>>, vector<1x1x40x128xbf16>
    %204 = vector.shape_cast %203 : vector<1x1x40x128xbf16> to vector<40x128xbf16>
    %cst_216 = arith.constant dense<0.000000e+00> : vector<8x128xf32>
    %205 = tpu.matmul %202, %204, %cst_216 {dimension_numbers = #tpu.dot_dimension_numbers<[1], [0], [0], [1], [0, 0, 1, 1], [], []>} : vector<8x40xbf16>, vector<40x128xbf16>, vector<8x128xf32> -> vector<8x128xf32>
    %206 = arith.addf %201, %205 : vector<8x128xf32>
    %207 = vector.extract_strided_slice %196 {offsets = [2, 0], sizes = [8, 40], strides = [1, 1]} : vector<10x40xbf16> to vector<8x40xbf16>
    %c1_217 = arith.constant 1 : index
    %c2_218 = arith.constant 2 : index
    %c0_219 = arith.constant 0 : index
    %c0_220 = arith.constant 0 : index
    %208 = vector.load %arg4[%c1_217, %c2_218, %c0_219, %c0_220] : memref<3x3x40x128xbf16, #tpu.memory_space<vmem>>, vector<1x1x40x128xbf16>
    %209 = vector.shape_cast %208 : vector<1x1x40x128xbf16> to vector<40x128xbf16>
    %cst_221 = arith.constant dense<0.000000e+00> : vector<8x128xf32>
    %210 = tpu.matmul %207, %209, %cst_221 {dimension_numbers = #tpu.dot_dimension_numbers<[1], [0], [0], [1], [0, 0, 1, 1], [], []>} : vector<8x40xbf16>, vector<40x128xbf16>, vector<8x128xf32> -> vector<8x128xf32>
    %211 = arith.addf %206, %210 : vector<8x128xf32>
    %c0_222 = arith.constant 0 : index
    %c5 = arith.constant 5 : index
    %c0_223 = arith.constant 0 : index
    %c0_224 = arith.constant 0 : index
    %212 = vector.load %arg2[%c0_222, %c5, %c0_223, %c0_224] : memref<1x8x10x40xbf16, #tpu.memory_space<vmem>>, vector<1x1x10x40xbf16>
    %213 = vector.shape_cast %212 : vector<1x1x10x40xbf16> to vector<10x40xbf16>
    %214 = vector.extract_strided_slice %213 {offsets = [0, 0], sizes = [8, 40], strides = [1, 1]} : vector<10x40xbf16> to vector<8x40xbf16>
    %c2_225 = arith.constant 2 : index
    %c0_226 = arith.constant 0 : index
    %c0_227 = arith.constant 0 : index
    %c0_228 = arith.constant 0 : index
    %215 = vector.load %arg4[%c2_225, %c0_226, %c0_227, %c0_228] : memref<3x3x40x128xbf16, #tpu.memory_space<vmem>>, vector<1x1x40x128xbf16>
    %216 = vector.shape_cast %215 : vector<1x1x40x128xbf16> to vector<40x128xbf16>
    %cst_229 = arith.constant dense<0.000000e+00> : vector<8x128xf32>
    %217 = tpu.matmul %214, %216, %cst_229 {dimension_numbers = #tpu.dot_dimension_numbers<[1], [0], [0], [1], [0, 0, 1, 1], [], []>} : vector<8x40xbf16>, vector<40x128xbf16>, vector<8x128xf32> -> vector<8x128xf32>
    %218 = arith.addf %211, %217 : vector<8x128xf32>
    %219 = vector.extract_strided_slice %213 {offsets = [1, 0], sizes = [8, 40], strides = [1, 1]} : vector<10x40xbf16> to vector<8x40xbf16>
    %c2_230 = arith.constant 2 : index
    %c1_231 = arith.constant 1 : index
    %c0_232 = arith.constant 0 : index
    %c0_233 = arith.constant 0 : index
    %220 = vector.load %arg4[%c2_230, %c1_231, %c0_232, %c0_233] : memref<3x3x40x128xbf16, #tpu.memory_space<vmem>>, vector<1x1x40x128xbf16>
    %221 = vector.shape_cast %220 : vector<1x1x40x128xbf16> to vector<40x128xbf16>
    %cst_234 = arith.constant dense<0.000000e+00> : vector<8x128xf32>
    %222 = tpu.matmul %219, %221, %cst_234 {dimension_numbers = #tpu.dot_dimension_numbers<[1], [0], [0], [1], [0, 0, 1, 1], [], []>} : vector<8x40xbf16>, vector<40x128xbf16>, vector<8x128xf32> -> vector<8x128xf32>
    %223 = arith.addf %218, %222 : vector<8x128xf32>
    %224 = vector.extract_strided_slice %213 {offsets = [2, 0], sizes = [8, 40], strides = [1, 1]} : vector<10x40xbf16> to vector<8x40xbf16>
    %c2_235 = arith.constant 2 : index
    %c2_236 = arith.constant 2 : index
    %c0_237 = arith.constant 0 : index
    %c0_238 = arith.constant 0 : index
    %225 = vector.load %arg4[%c2_235, %c2_236, %c0_237, %c0_238] : memref<3x3x40x128xbf16, #tpu.memory_space<vmem>>, vector<1x1x40x128xbf16>
    %226 = vector.shape_cast %225 : vector<1x1x40x128xbf16> to vector<40x128xbf16>
    %cst_239 = arith.constant dense<0.000000e+00> : vector<8x128xf32>
    %227 = tpu.matmul %224, %226, %cst_239 {dimension_numbers = #tpu.dot_dimension_numbers<[1], [0], [0], [1], [0, 0, 1, 1], [], []>} : vector<8x40xbf16>, vector<40x128xbf16>, vector<8x128xf32> -> vector<8x128xf32>
    %228 = arith.addf %223, %227 : vector<8x128xf32>
    %229 = vector.broadcast %0 : vector<1x128xf32> to vector<8x128xf32>
    %230 = arith.mulf %228, %229 : vector<8x128xf32>
    %231 = vector.broadcast %1 : vector<1x128xf32> to vector<8x128xf32>
    %232 = arith.addf %230, %231 : vector<8x128xf32>
    %cst_240 = arith.constant 0.000000e+00 : f32
    %233 = vector.broadcast %cst_240 : f32 to vector<8x128xf32>
    %234 = arith.maximumf %232, %233 : vector<8x128xf32>
    %c0_241 = arith.constant 0 : index
    %c3_242 = arith.constant 3 : index
    %c0_243 = arith.constant 0 : index
    %c0_244 = arith.constant 0 : index
    %235 = vector.load %arg7[%c0_241, %c3_242, %c0_243, %c0_244] : memref<1x8x8x128xf32, #tpu.memory_space<vmem>>, vector<1x1x8x128xf32>
    %236 = vector.shape_cast %235 : vector<1x1x8x128xf32> to vector<8x128xf32>
    %237 = vector.shape_cast %234 : vector<8x128xf32> to vector<1x1x8x128xf32>
    tpu.vector_store %arg7[%c0_241, %c3_242, %c0_243, %c0_244], %237 {strides = array<i32>} : memref<1x8x8x128xf32, #tpu.memory_space<vmem>>, vector<1x1x8x128xf32>,
    %c0_245 = arith.constant 0 : index
    %c4_246 = arith.constant 4 : index
    %c0_247 = arith.constant 0 : index
    %c0_248 = arith.constant 0 : index
    %238 = vector.load %arg2[%c0_245, %c4_246, %c0_247, %c0_248] : memref<1x8x10x40xbf16, #tpu.memory_space<vmem>>, vector<1x1x10x40xbf16>
    %239 = vector.shape_cast %238 : vector<1x1x10x40xbf16> to vector<10x40xbf16>
    %240 = vector.extract_strided_slice %239 {offsets = [0, 0], sizes = [8, 40], strides = [1, 1]} : vector<10x40xbf16> to vector<8x40xbf16>
    %c0_249 = arith.constant 0 : index
    %c0_250 = arith.constant 0 : index
    %c0_251 = arith.constant 0 : index
    %c0_252 = arith.constant 0 : index
    %241 = vector.load %arg4[%c0_249, %c0_250, %c0_251, %c0_252] : memref<3x3x40x128xbf16, #tpu.memory_space<vmem>>, vector<1x1x40x128xbf16>
    %242 = vector.shape_cast %241 : vector<1x1x40x128xbf16> to vector<40x128xbf16>
    %cst_253 = arith.constant dense<0.000000e+00> : vector<8x128xf32>
    %243 = tpu.matmul %240, %242, %cst_253 {dimension_numbers = #tpu.dot_dimension_numbers<[1], [0], [0], [1], [0, 0, 1, 1], [], []>} : vector<8x40xbf16>, vector<40x128xbf16>, vector<8x128xf32> -> vector<8x128xf32>
    %244 = vector.extract_strided_slice %239 {offsets = [1, 0], sizes = [8, 40], strides = [1, 1]} : vector<10x40xbf16> to vector<8x40xbf16>
    %c0_254 = arith.constant 0 : index
    %c1_255 = arith.constant 1 : index
    %c0_256 = arith.constant 0 : index
    %c0_257 = arith.constant 0 : index
    %245 = vector.load %arg4[%c0_254, %c1_255, %c0_256, %c0_257] : memref<3x3x40x128xbf16, #tpu.memory_space<vmem>>, vector<1x1x40x128xbf16>
    %246 = vector.shape_cast %245 : vector<1x1x40x128xbf16> to vector<40x128xbf16>
    %cst_258 = arith.constant dense<0.000000e+00> : vector<8x128xf32>
    %247 = tpu.matmul %244, %246, %cst_258 {dimension_numbers = #tpu.dot_dimension_numbers<[1], [0], [0], [1], [0, 0, 1, 1], [], []>} : vector<8x40xbf16>, vector<40x128xbf16>, vector<8x128xf32> -> vector<8x128xf32>
    %248 = arith.addf %243, %247 : vector<8x128xf32>
    %249 = vector.extract_strided_slice %239 {offsets = [2, 0], sizes = [8, 40], strides = [1, 1]} : vector<10x40xbf16> to vector<8x40xbf16>
    %c0_259 = arith.constant 0 : index
    %c2_260 = arith.constant 2 : index
    %c0_261 = arith.constant 0 : index
    %c0_262 = arith.constant 0 : index
    %250 = vector.load %arg4[%c0_259, %c2_260, %c0_261, %c0_262] : memref<3x3x40x128xbf16, #tpu.memory_space<vmem>>, vector<1x1x40x128xbf16>
    %251 = vector.shape_cast %250 : vector<1x1x40x128xbf16> to vector<40x128xbf16>
    %cst_263 = arith.constant dense<0.000000e+00> : vector<8x128xf32>
    %252 = tpu.matmul %249, %251, %cst_263 {dimension_numbers = #tpu.dot_dimension_numbers<[1], [0], [0], [1], [0, 0, 1, 1], [], []>} : vector<8x40xbf16>, vector<40x128xbf16>, vector<8x128xf32> -> vector<8x128xf32>
    %253 = arith.addf %248, %252 : vector<8x128xf32>
    %c0_264 = arith.constant 0 : index
    %c5_265 = arith.constant 5 : index
    %c0_266 = arith.constant 0 : index
    %c0_267 = arith.constant 0 : index
    %254 = vector.load %arg2[%c0_264, %c5_265, %c0_266, %c0_267] : memref<1x8x10x40xbf16, #tpu.memory_space<vmem>>, vector<1x1x10x40xbf16>
    %255 = vector.shape_cast %254 : vector<1x1x10x40xbf16> to vector<10x40xbf16>
    %256 = vector.extract_strided_slice %255 {offsets = [0, 0], sizes = [8, 40], strides = [1, 1]} : vector<10x40xbf16> to vector<8x40xbf16>
    %c1_268 = arith.constant 1 : index
    %c0_269 = arith.constant 0 : index
    %c0_270 = arith.constant 0 : index
    %c0_271 = arith.constant 0 : index
    %257 = vector.load %arg4[%c1_268, %c0_269, %c0_270, %c0_271] : memref<3x3x40x128xbf16, #tpu.memory_space<vmem>>, vector<1x1x40x128xbf16>
    %258 = vector.shape_cast %257 : vector<1x1x40x128xbf16> to vector<40x128xbf16>
    %cst_272 = arith.constant dense<0.000000e+00> : vector<8x128xf32>
    %259 = tpu.matmul %256, %258, %cst_272 {dimension_numbers = #tpu.dot_dimension_numbers<[1], [0], [0], [1], [0, 0, 1, 1], [], []>} : vector<8x40xbf16>, vector<40x128xbf16>, vector<8x128xf32> -> vector<8x128xf32>
    %260 = arith.addf %253, %259 : vector<8x128xf32>
    %261 = vector.extract_strided_slice %255 {offsets = [1, 0], sizes = [8, 40], strides = [1, 1]} : vector<10x40xbf16> to vector<8x40xbf16>
    %c1_273 = arith.constant 1 : index
    %c1_274 = arith.constant 1 : index
    %c0_275 = arith.constant 0 : index
    %c0_276 = arith.constant 0 : index
    %262 = vector.load %arg4[%c1_273, %c1_274, %c0_275, %c0_276] : memref<3x3x40x128xbf16, #tpu.memory_space<vmem>>, vector<1x1x40x128xbf16>
    %263 = vector.shape_cast %262 : vector<1x1x40x128xbf16> to vector<40x128xbf16>
    %cst_277 = arith.constant dense<0.000000e+00> : vector<8x128xf32>
    %264 = tpu.matmul %261, %263, %cst_277 {dimension_numbers = #tpu.dot_dimension_numbers<[1], [0], [0], [1], [0, 0, 1, 1], [], []>} : vector<8x40xbf16>, vector<40x128xbf16>, vector<8x128xf32> -> vector<8x128xf32>
    %265 = arith.addf %260, %264 : vector<8x128xf32>
    %266 = vector.extract_strided_slice %255 {offsets = [2, 0], sizes = [8, 40], strides = [1, 1]} : vector<10x40xbf16> to vector<8x40xbf16>
    %c1_278 = arith.constant 1 : index
    %c2_279 = arith.constant 2 : index
    %c0_280 = arith.constant 0 : index
    %c0_281 = arith.constant 0 : index
    %267 = vector.load %arg4[%c1_278, %c2_279, %c0_280, %c0_281] : memref<3x3x40x128xbf16, #tpu.memory_space<vmem>>, vector<1x1x40x128xbf16>
    %268 = vector.shape_cast %267 : vector<1x1x40x128xbf16> to vector<40x128xbf16>
    %cst_282 = arith.constant dense<0.000000e+00> : vector<8x128xf32>
    %269 = tpu.matmul %266, %268, %cst_282 {dimension_numbers = #tpu.dot_dimension_numbers<[1], [0], [0], [1], [0, 0, 1, 1], [], []>} : vector<8x40xbf16>, vector<40x128xbf16>, vector<8x128xf32> -> vector<8x128xf32>
    %270 = arith.addf %265, %269 : vector<8x128xf32>
    %c0_283 = arith.constant 0 : index
    %c6 = arith.constant 6 : index
    %c0_284 = arith.constant 0 : index
    %c0_285 = arith.constant 0 : index
    %271 = vector.load %arg2[%c0_283, %c6, %c0_284, %c0_285] : memref<1x8x10x40xbf16, #tpu.memory_space<vmem>>, vector<1x1x10x40xbf16>
    %272 = vector.shape_cast %271 : vector<1x1x10x40xbf16> to vector<10x40xbf16>
    %273 = vector.extract_strided_slice %272 {offsets = [0, 0], sizes = [8, 40], strides = [1, 1]} : vector<10x40xbf16> to vector<8x40xbf16>
    %c2_286 = arith.constant 2 : index
    %c0_287 = arith.constant 0 : index
    %c0_288 = arith.constant 0 : index
    %c0_289 = arith.constant 0 : index
    %274 = vector.load %arg4[%c2_286, %c0_287, %c0_288, %c0_289] : memref<3x3x40x128xbf16, #tpu.memory_space<vmem>>, vector<1x1x40x128xbf16>
    %275 = vector.shape_cast %274 : vector<1x1x40x128xbf16> to vector<40x128xbf16>
    %cst_290 = arith.constant dense<0.000000e+00> : vector<8x128xf32>
    %276 = tpu.matmul %273, %275, %cst_290 {dimension_numbers = #tpu.dot_dimension_numbers<[1], [0], [0], [1], [0, 0, 1, 1], [], []>} : vector<8x40xbf16>, vector<40x128xbf16>, vector<8x128xf32> -> vector<8x128xf32>
    %277 = arith.addf %270, %276 : vector<8x128xf32>
    %278 = vector.extract_strided_slice %272 {offsets = [1, 0], sizes = [8, 40], strides = [1, 1]} : vector<10x40xbf16> to vector<8x40xbf16>
    %c2_291 = arith.constant 2 : index
    %c1_292 = arith.constant 1 : index
    %c0_293 = arith.constant 0 : index
    %c0_294 = arith.constant 0 : index
    %279 = vector.load %arg4[%c2_291, %c1_292, %c0_293, %c0_294] : memref<3x3x40x128xbf16, #tpu.memory_space<vmem>>, vector<1x1x40x128xbf16>
    %280 = vector.shape_cast %279 : vector<1x1x40x128xbf16> to vector<40x128xbf16>
    %cst_295 = arith.constant dense<0.000000e+00> : vector<8x128xf32>
    %281 = tpu.matmul %278, %280, %cst_295 {dimension_numbers = #tpu.dot_dimension_numbers<[1], [0], [0], [1], [0, 0, 1, 1], [], []>} : vector<8x40xbf16>, vector<40x128xbf16>, vector<8x128xf32> -> vector<8x128xf32>
    %282 = arith.addf %277, %281 : vector<8x128xf32>
    %283 = vector.extract_strided_slice %272 {offsets = [2, 0], sizes = [8, 40], strides = [1, 1]} : vector<10x40xbf16> to vector<8x40xbf16>
    %c2_296 = arith.constant 2 : index
    %c2_297 = arith.constant 2 : index
    %c0_298 = arith.constant 0 : index
    %c0_299 = arith.constant 0 : index
    %284 = vector.load %arg4[%c2_296, %c2_297, %c0_298, %c0_299] : memref<3x3x40x128xbf16, #tpu.memory_space<vmem>>, vector<1x1x40x128xbf16>
    %285 = vector.shape_cast %284 : vector<1x1x40x128xbf16> to vector<40x128xbf16>
    %cst_300 = arith.constant dense<0.000000e+00> : vector<8x128xf32>
    %286 = tpu.matmul %283, %285, %cst_300 {dimension_numbers = #tpu.dot_dimension_numbers<[1], [0], [0], [1], [0, 0, 1, 1], [], []>} : vector<8x40xbf16>, vector<40x128xbf16>, vector<8x128xf32> -> vector<8x128xf32>
    %287 = arith.addf %282, %286 : vector<8x128xf32>
    %288 = vector.broadcast %0 : vector<1x128xf32> to vector<8x128xf32>
    %289 = arith.mulf %287, %288 : vector<8x128xf32>
    %290 = vector.broadcast %1 : vector<1x128xf32> to vector<8x128xf32>
    %291 = arith.addf %289, %290 : vector<8x128xf32>
    %cst_301 = arith.constant 0.000000e+00 : f32
    %292 = vector.broadcast %cst_301 : f32 to vector<8x128xf32>
    %293 = arith.maximumf %291, %292 : vector<8x128xf32>
    %c0_302 = arith.constant 0 : index
    %c4_303 = arith.constant 4 : index
    %c0_304 = arith.constant 0 : index
    %c0_305 = arith.constant 0 : index
    %294 = vector.load %arg7[%c0_302, %c4_303, %c0_304, %c0_305] : memref<1x8x8x128xf32, #tpu.memory_space<vmem>>, vector<1x1x8x128xf32>
    %295 = vector.shape_cast %294 : vector<1x1x8x128xf32> to vector<8x128xf32>
    %296 = vector.shape_cast %293 : vector<8x128xf32> to vector<1x1x8x128xf32>
    tpu.vector_store %arg7[%c0_302, %c4_303, %c0_304, %c0_305], %296 {strides = array<i32>} : memref<1x8x8x128xf32, #tpu.memory_space<vmem>>, vector<1x1x8x128xf32>,
    %c0_306 = arith.constant 0 : index
    %c5_307 = arith.constant 5 : index
    %c0_308 = arith.constant 0 : index
    %c0_309 = arith.constant 0 : index
    %297 = vector.load %arg2[%c0_306, %c5_307, %c0_308, %c0_309] : memref<1x8x10x40xbf16, #tpu.memory_space<vmem>>, vector<1x1x10x40xbf16>
    %298 = vector.shape_cast %297 : vector<1x1x10x40xbf16> to vector<10x40xbf16>
    %299 = vector.extract_strided_slice %298 {offsets = [0, 0], sizes = [8, 40], strides = [1, 1]} : vector<10x40xbf16> to vector<8x40xbf16>
    %c0_310 = arith.constant 0 : index
    %c0_311 = arith.constant 0 : index
    %c0_312 = arith.constant 0 : index
    %c0_313 = arith.constant 0 : index
    %300 = vector.load %arg4[%c0_310, %c0_311, %c0_312, %c0_313] : memref<3x3x40x128xbf16, #tpu.memory_space<vmem>>, vector<1x1x40x128xbf16>
    %301 = vector.shape_cast %300 : vector<1x1x40x128xbf16> to vector<40x128xbf16>
    %cst_314 = arith.constant dense<0.000000e+00> : vector<8x128xf32>
    %302 = tpu.matmul %299, %301, %cst_314 {dimension_numbers = #tpu.dot_dimension_numbers<[1], [0], [0], [1], [0, 0, 1, 1], [], []>} : vector<8x40xbf16>, vector<40x128xbf16>, vector<8x128xf32> -> vector<8x128xf32>
    %303 = vector.extract_strided_slice %298 {offsets = [1, 0], sizes = [8, 40], strides = [1, 1]} : vector<10x40xbf16> to vector<8x40xbf16>
    %c0_315 = arith.constant 0 : index
    %c1_316 = arith.constant 1 : index
    %c0_317 = arith.constant 0 : index
    %c0_318 = arith.constant 0 : index
    %304 = vector.load %arg4[%c0_315, %c1_316, %c0_317, %c0_318] : memref<3x3x40x128xbf16, #tpu.memory_space<vmem>>, vector<1x1x40x128xbf16>
    %305 = vector.shape_cast %304 : vector<1x1x40x128xbf16> to vector<40x128xbf16>
    %cst_319 = arith.constant dense<0.000000e+00> : vector<8x128xf32>
    %306 = tpu.matmul %303, %305, %cst_319 {dimension_numbers = #tpu.dot_dimension_numbers<[1], [0], [0], [1], [0, 0, 1, 1], [], []>} : vector<8x40xbf16>, vector<40x128xbf16>, vector<8x128xf32> -> vector<8x128xf32>
    %307 = arith.addf %302, %306 : vector<8x128xf32>
    %308 = vector.extract_strided_slice %298 {offsets = [2, 0], sizes = [8, 40], strides = [1, 1]} : vector<10x40xbf16> to vector<8x40xbf16>
    %c0_320 = arith.constant 0 : index
    %c2_321 = arith.constant 2 : index
    %c0_322 = arith.constant 0 : index
    %c0_323 = arith.constant 0 : index
    %309 = vector.load %arg4[%c0_320, %c2_321, %c0_322, %c0_323] : memref<3x3x40x128xbf16, #tpu.memory_space<vmem>>, vector<1x1x40x128xbf16>
    %310 = vector.shape_cast %309 : vector<1x1x40x128xbf16> to vector<40x128xbf16>
    %cst_324 = arith.constant dense<0.000000e+00> : vector<8x128xf32>
    %311 = tpu.matmul %308, %310, %cst_324 {dimension_numbers = #tpu.dot_dimension_numbers<[1], [0], [0], [1], [0, 0, 1, 1], [], []>} : vector<8x40xbf16>, vector<40x128xbf16>, vector<8x128xf32> -> vector<8x128xf32>
    %312 = arith.addf %307, %311 : vector<8x128xf32>
    %c0_325 = arith.constant 0 : index
    %c6_326 = arith.constant 6 : index
    %c0_327 = arith.constant 0 : index
    %c0_328 = arith.constant 0 : index
    %313 = vector.load %arg2[%c0_325, %c6_326, %c0_327, %c0_328] : memref<1x8x10x40xbf16, #tpu.memory_space<vmem>>, vector<1x1x10x40xbf16>
    %314 = vector.shape_cast %313 : vector<1x1x10x40xbf16> to vector<10x40xbf16>
    %315 = vector.extract_strided_slice %314 {offsets = [0, 0], sizes = [8, 40], strides = [1, 1]} : vector<10x40xbf16> to vector<8x40xbf16>
    %c1_329 = arith.constant 1 : index
    %c0_330 = arith.constant 0 : index
    %c0_331 = arith.constant 0 : index
    %c0_332 = arith.constant 0 : index
    %316 = vector.load %arg4[%c1_329, %c0_330, %c0_331, %c0_332] : memref<3x3x40x128xbf16, #tpu.memory_space<vmem>>, vector<1x1x40x128xbf16>
    %317 = vector.shape_cast %316 : vector<1x1x40x128xbf16> to vector<40x128xbf16>
    %cst_333 = arith.constant dense<0.000000e+00> : vector<8x128xf32>
    %318 = tpu.matmul %315, %317, %cst_333 {dimension_numbers = #tpu.dot_dimension_numbers<[1], [0], [0], [1], [0, 0, 1, 1], [], []>} : vector<8x40xbf16>, vector<40x128xbf16>, vector<8x128xf32> -> vector<8x128xf32>
    %319 = arith.addf %312, %318 : vector<8x128xf32>
    %320 = vector.extract_strided_slice %314 {offsets = [1, 0], sizes = [8, 40], strides = [1, 1]} : vector<10x40xbf16> to vector<8x40xbf16>
    %c1_334 = arith.constant 1 : index
    %c1_335 = arith.constant 1 : index
    %c0_336 = arith.constant 0 : index
    %c0_337 = arith.constant 0 : index
    %321 = vector.load %arg4[%c1_334, %c1_335, %c0_336, %c0_337] : memref<3x3x40x128xbf16, #tpu.memory_space<vmem>>, vector<1x1x40x128xbf16>
    %322 = vector.shape_cast %321 : vector<1x1x40x128xbf16> to vector<40x128xbf16>
    %cst_338 = arith.constant dense<0.000000e+00> : vector<8x128xf32>
    %323 = tpu.matmul %320, %322, %cst_338 {dimension_numbers = #tpu.dot_dimension_numbers<[1], [0], [0], [1], [0, 0, 1, 1], [], []>} : vector<8x40xbf16>, vector<40x128xbf16>, vector<8x128xf32> -> vector<8x128xf32>
    %324 = arith.addf %319, %323 : vector<8x128xf32>
    %325 = vector.extract_strided_slice %314 {offsets = [2, 0], sizes = [8, 40], strides = [1, 1]} : vector<10x40xbf16> to vector<8x40xbf16>
    %c1_339 = arith.constant 1 : index
    %c2_340 = arith.constant 2 : index
    %c0_341 = arith.constant 0 : index
    %c0_342 = arith.constant 0 : index
    %326 = vector.load %arg4[%c1_339, %c2_340, %c0_341, %c0_342] : memref<3x3x40x128xbf16, #tpu.memory_space<vmem>>, vector<1x1x40x128xbf16>
    %327 = vector.shape_cast %326 : vector<1x1x40x128xbf16> to vector<40x128xbf16>
    %cst_343 = arith.constant dense<0.000000e+00> : vector<8x128xf32>
    %328 = tpu.matmul %325, %327, %cst_343 {dimension_numbers = #tpu.dot_dimension_numbers<[1], [0], [0], [1], [0, 0, 1, 1], [], []>} : vector<8x40xbf16>, vector<40x128xbf16>, vector<8x128xf32> -> vector<8x128xf32>
    %329 = arith.addf %324, %328 : vector<8x128xf32>
    %c0_344 = arith.constant 0 : index
    %c7 = arith.constant 7 : index
    %c0_345 = arith.constant 0 : index
    %c0_346 = arith.constant 0 : index
    %330 = vector.load %arg2[%c0_344, %c7, %c0_345, %c0_346] : memref<1x8x10x40xbf16, #tpu.memory_space<vmem>>, vector<1x1x10x40xbf16>
    %331 = vector.shape_cast %330 : vector<1x1x10x40xbf16> to vector<10x40xbf16>
    %332 = vector.extract_strided_slice %331 {offsets = [0, 0], sizes = [8, 40], strides = [1, 1]} : vector<10x40xbf16> to vector<8x40xbf16>
    %c2_347 = arith.constant 2 : index
    %c0_348 = arith.constant 0 : index
    %c0_349 = arith.constant 0 : index
    %c0_350 = arith.constant 0 : index
    %333 = vector.load %arg4[%c2_347, %c0_348, %c0_349, %c0_350] : memref<3x3x40x128xbf16, #tpu.memory_space<vmem>>, vector<1x1x40x128xbf16>
    %334 = vector.shape_cast %333 : vector<1x1x40x128xbf16> to vector<40x128xbf16>
    %cst_351 = arith.constant dense<0.000000e+00> : vector<8x128xf32>
    %335 = tpu.matmul %332, %334, %cst_351 {dimension_numbers = #tpu.dot_dimension_numbers<[1], [0], [0], [1], [0, 0, 1, 1], [], []>} : vector<8x40xbf16>, vector<40x128xbf16>, vector<8x128xf32> -> vector<8x128xf32>
    %336 = arith.addf %329, %335 : vector<8x128xf32>
    %337 = vector.extract_strided_slice %331 {offsets = [1, 0], sizes = [8, 40], strides = [1, 1]} : vector<10x40xbf16> to vector<8x40xbf16>
    %c2_352 = arith.constant 2 : index
    %c1_353 = arith.constant 1 : index
    %c0_354 = arith.constant 0 : index
    %c0_355 = arith.constant 0 : index
    %338 = vector.load %arg4[%c2_352, %c1_353, %c0_354, %c0_355] : memref<3x3x40x128xbf16, #tpu.memory_space<vmem>>, vector<1x1x40x128xbf16>
    %339 = vector.shape_cast %338 : vector<1x1x40x128xbf16> to vector<40x128xbf16>
    %cst_356 = arith.constant dense<0.000000e+00> : vector<8x128xf32>
    %340 = tpu.matmul %337, %339, %cst_356 {dimension_numbers = #tpu.dot_dimension_numbers<[1], [0], [0], [1], [0, 0, 1, 1], [], []>} : vector<8x40xbf16>, vector<40x128xbf16>, vector<8x128xf32> -> vector<8x128xf32>
    %341 = arith.addf %336, %340 : vector<8x128xf32>
    %342 = vector.extract_strided_slice %331 {offsets = [2, 0], sizes = [8, 40], strides = [1, 1]} : vector<10x40xbf16> to vector<8x40xbf16>
    %c2_357 = arith.constant 2 : index
    %c2_358 = arith.constant 2 : index
    %c0_359 = arith.constant 0 : index
    %c0_360 = arith.constant 0 : index
    %343 = vector.load %arg4[%c2_357, %c2_358, %c0_359, %c0_360] : memref<3x3x40x128xbf16, #tpu.memory_space<vmem>>, vector<1x1x40x128xbf16>
    %344 = vector.shape_cast %343 : vector<1x1x40x128xbf16> to vector<40x128xbf16>
    %cst_361 = arith.constant dense<0.000000e+00> : vector<8x128xf32>
    %345 = tpu.matmul %342, %344, %cst_361 {dimension_numbers = #tpu.dot_dimension_numbers<[1], [0], [0], [1], [0, 0, 1, 1], [], []>} : vector<8x40xbf16>, vector<40x128xbf16>, vector<8x128xf32> -> vector<8x128xf32>
    %346 = arith.addf %341, %345 : vector<8x128xf32>
    %347 = vector.broadcast %0 : vector<1x128xf32> to vector<8x128xf32>
    %348 = arith.mulf %346, %347 : vector<8x128xf32>
    %349 = vector.broadcast %1 : vector<1x128xf32> to vector<8x128xf32>
    %350 = arith.addf %348, %349 : vector<8x128xf32>
    %cst_362 = arith.constant 0.000000e+00 : f32
    %351 = vector.broadcast %cst_362 : f32 to vector<8x128xf32>
    %352 = arith.maximumf %350, %351 : vector<8x128xf32>
    %c0_363 = arith.constant 0 : index
    %c5_364 = arith.constant 5 : index
    %c0_365 = arith.constant 0 : index
    %c0_366 = arith.constant 0 : index
    %353 = vector.load %arg7[%c0_363, %c5_364, %c0_365, %c0_366] : memref<1x8x8x128xf32, #tpu.memory_space<vmem>>, vector<1x1x8x128xf32>
    %354 = vector.shape_cast %353 : vector<1x1x8x128xf32> to vector<8x128xf32>
    %355 = vector.shape_cast %352 : vector<8x128xf32> to vector<1x1x8x128xf32>
    tpu.vector_store %arg7[%c0_363, %c5_364, %c0_365, %c0_366], %355 {strides = array<i32>} : memref<1x8x8x128xf32, #tpu.memory_space<vmem>>, vector<1x1x8x128xf32>,
    %c0_367 = arith.constant 0 : index
    %c6_368 = arith.constant 6 : index
    %c0_369 = arith.constant 0 : index
    %c0_370 = arith.constant 0 : index
    %356 = vector.load %arg2[%c0_367, %c6_368, %c0_369, %c0_370] : memref<1x8x10x40xbf16, #tpu.memory_space<vmem>>, vector<1x1x10x40xbf16>
    %357 = vector.shape_cast %356 : vector<1x1x10x40xbf16> to vector<10x40xbf16>
    %358 = vector.extract_strided_slice %357 {offsets = [0, 0], sizes = [8, 40], strides = [1, 1]} : vector<10x40xbf16> to vector<8x40xbf16>
    %c0_371 = arith.constant 0 : index
    %c0_372 = arith.constant 0 : index
    %c0_373 = arith.constant 0 : index
    %c0_374 = arith.constant 0 : index
    %359 = vector.load %arg4[%c0_371, %c0_372, %c0_373, %c0_374] : memref<3x3x40x128xbf16, #tpu.memory_space<vmem>>, vector<1x1x40x128xbf16>
    %360 = vector.shape_cast %359 : vector<1x1x40x128xbf16> to vector<40x128xbf16>
    %cst_375 = arith.constant dense<0.000000e+00> : vector<8x128xf32>
    %361 = tpu.matmul %358, %360, %cst_375 {dimension_numbers = #tpu.dot_dimension_numbers<[1], [0], [0], [1], [0, 0, 1, 1], [], []>} : vector<8x40xbf16>, vector<40x128xbf16>, vector<8x128xf32> -> vector<8x128xf32>
    %362 = vector.extract_strided_slice %357 {offsets = [1, 0], sizes = [8, 40], strides = [1, 1]} : vector<10x40xbf16> to vector<8x40xbf16>
    %c0_376 = arith.constant 0 : index
    %c1_377 = arith.constant 1 : index
    %c0_378 = arith.constant 0 : index
    %c0_379 = arith.constant 0 : index
    %363 = vector.load %arg4[%c0_376, %c1_377, %c0_378, %c0_379] : memref<3x3x40x128xbf16, #tpu.memory_space<vmem>>, vector<1x1x40x128xbf16>
    %364 = vector.shape_cast %363 : vector<1x1x40x128xbf16> to vector<40x128xbf16>
    %cst_380 = arith.constant dense<0.000000e+00> : vector<8x128xf32>
    %365 = tpu.matmul %362, %364, %cst_380 {dimension_numbers = #tpu.dot_dimension_numbers<[1], [0], [0], [1], [0, 0, 1, 1], [], []>} : vector<8x40xbf16>, vector<40x128xbf16>, vector<8x128xf32> -> vector<8x128xf32>
    %366 = arith.addf %361, %365 : vector<8x128xf32>
    %367 = vector.extract_strided_slice %357 {offsets = [2, 0], sizes = [8, 40], strides = [1, 1]} : vector<10x40xbf16> to vector<8x40xbf16>
    %c0_381 = arith.constant 0 : index
    %c2_382 = arith.constant 2 : index
    %c0_383 = arith.constant 0 : index
    %c0_384 = arith.constant 0 : index
    %368 = vector.load %arg4[%c0_381, %c2_382, %c0_383, %c0_384] : memref<3x3x40x128xbf16, #tpu.memory_space<vmem>>, vector<1x1x40x128xbf16>
    %369 = vector.shape_cast %368 : vector<1x1x40x128xbf16> to vector<40x128xbf16>
    %cst_385 = arith.constant dense<0.000000e+00> : vector<8x128xf32>
    %370 = tpu.matmul %367, %369, %cst_385 {dimension_numbers = #tpu.dot_dimension_numbers<[1], [0], [0], [1], [0, 0, 1, 1], [], []>} : vector<8x40xbf16>, vector<40x128xbf16>, vector<8x128xf32> -> vector<8x128xf32>
    %371 = arith.addf %366, %370 : vector<8x128xf32>
    %c0_386 = arith.constant 0 : index
    %c7_387 = arith.constant 7 : index
    %c0_388 = arith.constant 0 : index
    %c0_389 = arith.constant 0 : index
    %372 = vector.load %arg2[%c0_386, %c7_387, %c0_388, %c0_389] : memref<1x8x10x40xbf16, #tpu.memory_space<vmem>>, vector<1x1x10x40xbf16>
    %373 = vector.shape_cast %372 : vector<1x1x10x40xbf16> to vector<10x40xbf16>
    %374 = vector.extract_strided_slice %373 {offsets = [0, 0], sizes = [8, 40], strides = [1, 1]} : vector<10x40xbf16> to vector<8x40xbf16>
    %c1_390 = arith.constant 1 : index
    %c0_391 = arith.constant 0 : index
    %c0_392 = arith.constant 0 : index
    %c0_393 = arith.constant 0 : index
    %375 = vector.load %arg4[%c1_390, %c0_391, %c0_392, %c0_393] : memref<3x3x40x128xbf16, #tpu.memory_space<vmem>>, vector<1x1x40x128xbf16>
    %376 = vector.shape_cast %375 : vector<1x1x40x128xbf16> to vector<40x128xbf16>
    %cst_394 = arith.constant dense<0.000000e+00> : vector<8x128xf32>
    %377 = tpu.matmul %374, %376, %cst_394 {dimension_numbers = #tpu.dot_dimension_numbers<[1], [0], [0], [1], [0, 0, 1, 1], [], []>} : vector<8x40xbf16>, vector<40x128xbf16>, vector<8x128xf32> -> vector<8x128xf32>
    %378 = arith.addf %371, %377 : vector<8x128xf32>
    %379 = vector.extract_strided_slice %373 {offsets = [1, 0], sizes = [8, 40], strides = [1, 1]} : vector<10x40xbf16> to vector<8x40xbf16>
    %c1_395 = arith.constant 1 : index
    %c1_396 = arith.constant 1 : index
    %c0_397 = arith.constant 0 : index
    %c0_398 = arith.constant 0 : index
    %380 = vector.load %arg4[%c1_395, %c1_396, %c0_397, %c0_398] : memref<3x3x40x128xbf16, #tpu.memory_space<vmem>>, vector<1x1x40x128xbf16>
    %381 = vector.shape_cast %380 : vector<1x1x40x128xbf16> to vector<40x128xbf16>
    %cst_399 = arith.constant dense<0.000000e+00> : vector<8x128xf32>
    %382 = tpu.matmul %379, %381, %cst_399 {dimension_numbers = #tpu.dot_dimension_numbers<[1], [0], [0], [1], [0, 0, 1, 1], [], []>} : vector<8x40xbf16>, vector<40x128xbf16>, vector<8x128xf32> -> vector<8x128xf32>
    %383 = arith.addf %378, %382 : vector<8x128xf32>
    %384 = vector.extract_strided_slice %373 {offsets = [2, 0], sizes = [8, 40], strides = [1, 1]} : vector<10x40xbf16> to vector<8x40xbf16>
    %c1_400 = arith.constant 1 : index
    %c2_401 = arith.constant 2 : index
    %c0_402 = arith.constant 0 : index
    %c0_403 = arith.constant 0 : index
    %385 = vector.load %arg4[%c1_400, %c2_401, %c0_402, %c0_403] : memref<3x3x40x128xbf16, #tpu.memory_space<vmem>>, vector<1x1x40x128xbf16>
    %386 = vector.shape_cast %385 : vector<1x1x40x128xbf16> to vector<40x128xbf16>
    %cst_404 = arith.constant dense<0.000000e+00> : vector<8x128xf32>
    %387 = tpu.matmul %384, %386, %cst_404 {dimension_numbers = #tpu.dot_dimension_numbers<[1], [0], [0], [1], [0, 0, 1, 1], [], []>} : vector<8x40xbf16>, vector<40x128xbf16>, vector<8x128xf32> -> vector<8x128xf32>
    %388 = arith.addf %383, %387 : vector<8x128xf32>
    %c0_405 = arith.constant 0 : index
    %c0_406 = arith.constant 0 : index
    %c0_407 = arith.constant 0 : index
    %c0_408 = arith.constant 0 : index
    %389 = vector.load %arg3[%c0_405, %c0_406, %c0_407, %c0_408] : memref<1x2x10x40xbf16, #tpu.memory_space<vmem>>, vector<1x1x10x40xbf16>
    %390 = vector.shape_cast %389 : vector<1x1x10x40xbf16> to vector<10x40xbf16>
    %391 = vector.extract_strided_slice %390 {offsets = [0, 0], sizes = [8, 40], strides = [1, 1]} : vector<10x40xbf16> to vector<8x40xbf16>
    %c2_409 = arith.constant 2 : index
    %c0_410 = arith.constant 0 : index
    %c0_411 = arith.constant 0 : index
    %c0_412 = arith.constant 0 : index
    %392 = vector.load %arg4[%c2_409, %c0_410, %c0_411, %c0_412] : memref<3x3x40x128xbf16, #tpu.memory_space<vmem>>, vector<1x1x40x128xbf16>
    %393 = vector.shape_cast %392 : vector<1x1x40x128xbf16> to vector<40x128xbf16>
    %cst_413 = arith.constant dense<0.000000e+00> : vector<8x128xf32>
    %394 = tpu.matmul %391, %393, %cst_413 {dimension_numbers = #tpu.dot_dimension_numbers<[1], [0], [0], [1], [0, 0, 1, 1], [], []>} : vector<8x40xbf16>, vector<40x128xbf16>, vector<8x128xf32> -> vector<8x128xf32>
    %395 = arith.addf %388, %394 : vector<8x128xf32>
    %396 = vector.extract_strided_slice %390 {offsets = [1, 0], sizes = [8, 40], strides = [1, 1]} : vector<10x40xbf16> to vector<8x40xbf16>
    %c2_414 = arith.constant 2 : index
    %c1_415 = arith.constant 1 : index
    %c0_416 = arith.constant 0 : index
    %c0_417 = arith.constant 0 : index
    %397 = vector.load %arg4[%c2_414, %c1_415, %c0_416, %c0_417] : memref<3x3x40x128xbf16, #tpu.memory_space<vmem>>, vector<1x1x40x128xbf16>
    %398 = vector.shape_cast %397 : vector<1x1x40x128xbf16> to vector<40x128xbf16>
    %cst_418 = arith.constant dense<0.000000e+00> : vector<8x128xf32>
    %399 = tpu.matmul %396, %398, %cst_418 {dimension_numbers = #tpu.dot_dimension_numbers<[1], [0], [0], [1], [0, 0, 1, 1], [], []>} : vector<8x40xbf16>, vector<40x128xbf16>, vector<8x128xf32> -> vector<8x128xf32>
    %400 = arith.addf %395, %399 : vector<8x128xf32>
    %401 = vector.extract_strided_slice %390 {offsets = [2, 0], sizes = [8, 40], strides = [1, 1]} : vector<10x40xbf16> to vector<8x40xbf16>
    %c2_419 = arith.constant 2 : index
    %c2_420 = arith.constant 2 : index
    %c0_421 = arith.constant 0 : index
    %c0_422 = arith.constant 0 : index
    %402 = vector.load %arg4[%c2_419, %c2_420, %c0_421, %c0_422] : memref<3x3x40x128xbf16, #tpu.memory_space<vmem>>, vector<1x1x40x128xbf16>
    %403 = vector.shape_cast %402 : vector<1x1x40x128xbf16> to vector<40x128xbf16>
    %cst_423 = arith.constant dense<0.000000e+00> : vector<8x128xf32>
    %404 = tpu.matmul %401, %403, %cst_423 {dimension_numbers = #tpu.dot_dimension_numbers<[1], [0], [0], [1], [0, 0, 1, 1], [], []>} : vector<8x40xbf16>, vector<40x128xbf16>, vector<8x128xf32> -> vector<8x128xf32>
    %405 = arith.addf %400, %404 : vector<8x128xf32>
    %406 = vector.broadcast %0 : vector<1x128xf32> to vector<8x128xf32>
    %407 = arith.mulf %405, %406 : vector<8x128xf32>
    %408 = vector.broadcast %1 : vector<1x128xf32> to vector<8x128xf32>
    %409 = arith.addf %407, %408 : vector<8x128xf32>
    %cst_424 = arith.constant 0.000000e+00 : f32
    %410 = vector.broadcast %cst_424 : f32 to vector<8x128xf32>
    %411 = arith.maximumf %409, %410 : vector<8x128xf32>
    %c0_425 = arith.constant 0 : index
    %c6_426 = arith.constant 6 : index
    %c0_427 = arith.constant 0 : index
    %c0_428 = arith.constant 0 : index
    %412 = vector.load %arg7[%c0_425, %c6_426, %c0_427, %c0_428] : memref<1x8x8x128xf32, #tpu.memory_space<vmem>>, vector<1x1x8x128xf32>
    %413 = vector.shape_cast %412 : vector<1x1x8x128xf32> to vector<8x128xf32>
    %414 = vector.shape_cast %411 : vector<8x128xf32> to vector<1x1x8x128xf32>
    tpu.vector_store %arg7[%c0_425, %c6_426, %c0_427, %c0_428], %414 {strides = array<i32>} : memref<1x8x8x128xf32, #tpu.memory_space<vmem>>, vector<1x1x8x128xf32>,
    %c0_429 = arith.constant 0 : index
    %c7_430 = arith.constant 7 : index
    %c0_431 = arith.constant 0 : index
    %c0_432 = arith.constant 0 : index
    %415 = vector.load %arg2[%c0_429, %c7_430, %c0_431, %c0_432] : memref<1x8x10x40xbf16, #tpu.memory_space<vmem>>, vector<1x1x10x40xbf16>
    %416 = vector.shape_cast %415 : vector<1x1x10x40xbf16> to vector<10x40xbf16>
    %417 = vector.extract_strided_slice %416 {offsets = [0, 0], sizes = [8, 40], strides = [1, 1]} : vector<10x40xbf16> to vector<8x40xbf16>
    %c0_433 = arith.constant 0 : index
    %c0_434 = arith.constant 0 : index
    %c0_435 = arith.constant 0 : index
    %c0_436 = arith.constant 0 : index
    %418 = vector.load %arg4[%c0_433, %c0_434, %c0_435, %c0_436] : memref<3x3x40x128xbf16, #tpu.memory_space<vmem>>, vector<1x1x40x128xbf16>
    %419 = vector.shape_cast %418 : vector<1x1x40x128xbf16> to vector<40x128xbf16>
    %cst_437 = arith.constant dense<0.000000e+00> : vector<8x128xf32>
    %420 = tpu.matmul %417, %419, %cst_437 {dimension_numbers = #tpu.dot_dimension_numbers<[1], [0], [0], [1], [0, 0, 1, 1], [], []>} : vector<8x40xbf16>, vector<40x128xbf16>, vector<8x128xf32> -> vector<8x128xf32>
    %421 = vector.extract_strided_slice %416 {offsets = [1, 0], sizes = [8, 40], strides = [1, 1]} : vector<10x40xbf16> to vector<8x40xbf16>
    %c0_438 = arith.constant 0 : index
    %c1_439 = arith.constant 1 : index
    %c0_440 = arith.constant 0 : index
    %c0_441 = arith.constant 0 : index
    %422 = vector.load %arg4[%c0_438, %c1_439, %c0_440, %c0_441] : memref<3x3x40x128xbf16, #tpu.memory_space<vmem>>, vector<1x1x40x128xbf16>
    %423 = vector.shape_cast %422 : vector<1x1x40x128xbf16> to vector<40x128xbf16>
    %cst_442 = arith.constant dense<0.000000e+00> : vector<8x128xf32>
    %424 = tpu.matmul %421, %423, %cst_442 {dimension_numbers = #tpu.dot_dimension_numbers<[1], [0], [0], [1], [0, 0, 1, 1], [], []>} : vector<8x40xbf16>, vector<40x128xbf16>, vector<8x128xf32> -> vector<8x128xf32>
    %425 = arith.addf %420, %424 : vector<8x128xf32>
    %426 = vector.extract_strided_slice %416 {offsets = [2, 0], sizes = [8, 40], strides = [1, 1]} : vector<10x40xbf16> to vector<8x40xbf16>
    %c0_443 = arith.constant 0 : index
    %c2_444 = arith.constant 2 : index
    %c0_445 = arith.constant 0 : index
    %c0_446 = arith.constant 0 : index
    %427 = vector.load %arg4[%c0_443, %c2_444, %c0_445, %c0_446] : memref<3x3x40x128xbf16, #tpu.memory_space<vmem>>, vector<1x1x40x128xbf16>
    %428 = vector.shape_cast %427 : vector<1x1x40x128xbf16> to vector<40x128xbf16>
    %cst_447 = arith.constant dense<0.000000e+00> : vector<8x128xf32>
    %429 = tpu.matmul %426, %428, %cst_447 {dimension_numbers = #tpu.dot_dimension_numbers<[1], [0], [0], [1], [0, 0, 1, 1], [], []>} : vector<8x40xbf16>, vector<40x128xbf16>, vector<8x128xf32> -> vector<8x128xf32>
    %430 = arith.addf %425, %429 : vector<8x128xf32>
    %c0_448 = arith.constant 0 : index
    %c0_449 = arith.constant 0 : index
    %c0_450 = arith.constant 0 : index
    %c0_451 = arith.constant 0 : index
    %431 = vector.load %arg3[%c0_448, %c0_449, %c0_450, %c0_451] : memref<1x2x10x40xbf16, #tpu.memory_space<vmem>>, vector<1x1x10x40xbf16>
    %432 = vector.shape_cast %431 : vector<1x1x10x40xbf16> to vector<10x40xbf16>
    %433 = vector.extract_strided_slice %432 {offsets = [0, 0], sizes = [8, 40], strides = [1, 1]} : vector<10x40xbf16> to vector<8x40xbf16>
    %c1_452 = arith.constant 1 : index
    %c0_453 = arith.constant 0 : index
    %c0_454 = arith.constant 0 : index
    %c0_455 = arith.constant 0 : index
    %434 = vector.load %arg4[%c1_452, %c0_453, %c0_454, %c0_455] : memref<3x3x40x128xbf16, #tpu.memory_space<vmem>>, vector<1x1x40x128xbf16>
    %435 = vector.shape_cast %434 : vector<1x1x40x128xbf16> to vector<40x128xbf16>
    %cst_456 = arith.constant dense<0.000000e+00> : vector<8x128xf32>
    %436 = tpu.matmul %433, %435, %cst_456 {dimension_numbers = #tpu.dot_dimension_numbers<[1], [0], [0], [1], [0, 0, 1, 1], [], []>} : vector<8x40xbf16>, vector<40x128xbf16>, vector<8x128xf32> -> vector<8x128xf32>
    %437 = arith.addf %430, %436 : vector<8x128xf32>
    %438 = vector.extract_strided_slice %432 {offsets = [1, 0], sizes = [8, 40], strides = [1, 1]} : vector<10x40xbf16> to vector<8x40xbf16>
    %c1_457 = arith.constant 1 : index
    %c1_458 = arith.constant 1 : index
    %c0_459 = arith.constant 0 : index
    %c0_460 = arith.constant 0 : index
    %439 = vector.load %arg4[%c1_457, %c1_458, %c0_459, %c0_460] : memref<3x3x40x128xbf16, #tpu.memory_space<vmem>>, vector<1x1x40x128xbf16>
    %440 = vector.shape_cast %439 : vector<1x1x40x128xbf16> to vector<40x128xbf16>
    %cst_461 = arith.constant dense<0.000000e+00> : vector<8x128xf32>
    %441 = tpu.matmul %438, %440, %cst_461 {dimension_numbers = #tpu.dot_dimension_numbers<[1], [0], [0], [1], [0, 0, 1, 1], [], []>} : vector<8x40xbf16>, vector<40x128xbf16>, vector<8x128xf32> -> vector<8x128xf32>
    %442 = arith.addf %437, %441 : vector<8x128xf32>
    %443 = vector.extract_strided_slice %432 {offsets = [2, 0], sizes = [8, 40], strides = [1, 1]} : vector<10x40xbf16> to vector<8x40xbf16>
    %c1_462 = arith.constant 1 : index
    %c2_463 = arith.constant 2 : index
    %c0_464 = arith.constant 0 : index
    %c0_465 = arith.constant 0 : index
    %444 = vector.load %arg4[%c1_462, %c2_463, %c0_464, %c0_465] : memref<3x3x40x128xbf16, #tpu.memory_space<vmem>>, vector<1x1x40x128xbf16>
    %445 = vector.shape_cast %444 : vector<1x1x40x128xbf16> to vector<40x128xbf16>
    %cst_466 = arith.constant dense<0.000000e+00> : vector<8x128xf32>
    %446 = tpu.matmul %443, %445, %cst_466 {dimension_numbers = #tpu.dot_dimension_numbers<[1], [0], [0], [1], [0, 0, 1, 1], [], []>} : vector<8x40xbf16>, vector<40x128xbf16>, vector<8x128xf32> -> vector<8x128xf32>
    %447 = arith.addf %442, %446 : vector<8x128xf32>
    %c0_467 = arith.constant 0 : index
    %c1_468 = arith.constant 1 : index
    %c0_469 = arith.constant 0 : index
    %c0_470 = arith.constant 0 : index
    %448 = vector.load %arg3[%c0_467, %c1_468, %c0_469, %c0_470] : memref<1x2x10x40xbf16, #tpu.memory_space<vmem>>, vector<1x1x10x40xbf16>
    %449 = vector.shape_cast %448 : vector<1x1x10x40xbf16> to vector<10x40xbf16>
    %450 = vector.extract_strided_slice %449 {offsets = [0, 0], sizes = [8, 40], strides = [1, 1]} : vector<10x40xbf16> to vector<8x40xbf16>
    %c2_471 = arith.constant 2 : index
    %c0_472 = arith.constant 0 : index
    %c0_473 = arith.constant 0 : index
    %c0_474 = arith.constant 0 : index
    %451 = vector.load %arg4[%c2_471, %c0_472, %c0_473, %c0_474] : memref<3x3x40x128xbf16, #tpu.memory_space<vmem>>, vector<1x1x40x128xbf16>
    %452 = vector.shape_cast %451 : vector<1x1x40x128xbf16> to vector<40x128xbf16>
    %cst_475 = arith.constant dense<0.000000e+00> : vector<8x128xf32>
    %453 = tpu.matmul %450, %452, %cst_475 {dimension_numbers = #tpu.dot_dimension_numbers<[1], [0], [0], [1], [0, 0, 1, 1], [], []>} : vector<8x40xbf16>, vector<40x128xbf16>, vector<8x128xf32> -> vector<8x128xf32>
    %454 = arith.addf %447, %453 : vector<8x128xf32>
    %455 = vector.extract_strided_slice %449 {offsets = [1, 0], sizes = [8, 40], strides = [1, 1]} : vector<10x40xbf16> to vector<8x40xbf16>
    %c2_476 = arith.constant 2 : index
    %c1_477 = arith.constant 1 : index
    %c0_478 = arith.constant 0 : index
    %c0_479 = arith.constant 0 : index
    %456 = vector.load %arg4[%c2_476, %c1_477, %c0_478, %c0_479] : memref<3x3x40x128xbf16, #tpu.memory_space<vmem>>, vector<1x1x40x128xbf16>
    %457 = vector.shape_cast %456 : vector<1x1x40x128xbf16> to vector<40x128xbf16>
    %cst_480 = arith.constant dense<0.000000e+00> : vector<8x128xf32>
    %458 = tpu.matmul %455, %457, %cst_480 {dimension_numbers = #tpu.dot_dimension_numbers<[1], [0], [0], [1], [0, 0, 1, 1], [], []>} : vector<8x40xbf16>, vector<40x128xbf16>, vector<8x128xf32> -> vector<8x128xf32>
    %459 = arith.addf %454, %458 : vector<8x128xf32>
    %460 = vector.extract_strided_slice %449 {offsets = [2, 0], sizes = [8, 40], strides = [1, 1]} : vector<10x40xbf16> to vector<8x40xbf16>
    %c2_481 = arith.constant 2 : index
    %c2_482 = arith.constant 2 : index
    %c0_483 = arith.constant 0 : index
    %c0_484 = arith.constant 0 : index
    %461 = vector.load %arg4[%c2_481, %c2_482, %c0_483, %c0_484] : memref<3x3x40x128xbf16, #tpu.memory_space<vmem>>, vector<1x1x40x128xbf16>
    %462 = vector.shape_cast %461 : vector<1x1x40x128xbf16> to vector<40x128xbf16>
    %cst_485 = arith.constant dense<0.000000e+00> : vector<8x128xf32>
    %463 = tpu.matmul %460, %462, %cst_485 {dimension_numbers = #tpu.dot_dimension_numbers<[1], [0], [0], [1], [0, 0, 1, 1], [], []>} : vector<8x40xbf16>, vector<40x128xbf16>, vector<8x128xf32> -> vector<8x128xf32>
    %464 = arith.addf %459, %463 : vector<8x128xf32>
    %465 = vector.broadcast %0 : vector<1x128xf32> to vector<8x128xf32>
    %466 = arith.mulf %464, %465 : vector<8x128xf32>
    %467 = vector.broadcast %1 : vector<1x128xf32> to vector<8x128xf32>
    %468 = arith.addf %466, %467 : vector<8x128xf32>
    %cst_486 = arith.constant 0.000000e+00 : f32
    %469 = vector.broadcast %cst_486 : f32 to vector<8x128xf32>
    %470 = arith.maximumf %468, %469 : vector<8x128xf32>
    %c0_487 = arith.constant 0 : index
    %c7_488 = arith.constant 7 : index
    %c0_489 = arith.constant 0 : index
    %c0_490 = arith.constant 0 : index
    %471 = vector.load %arg7[%c0_487, %c7_488, %c0_489, %c0_490] : memref<1x8x8x128xf32, #tpu.memory_space<vmem>>, vector<1x1x8x128xf32>
    %472 = vector.shape_cast %471 : vector<1x1x8x128xf32> to vector<8x128xf32>
    %473 = vector.shape_cast %470 : vector<8x128xf32> to vector<1x1x8x128xf32>
    tpu.vector_store %arg7[%c0_487, %c7_488, %c0_489, %c0_490], %473 {strides = array<i32>} : memref<1x8x8x128xf32, #tpu.memory_space<vmem>>, vector<1x1x8x128xf32>,
    return
  }
  func.func @transform_0(%arg0: i32, %arg1: i32) -> (i32, i32, i32, i32) {
    %c0_i32 = arith.constant 0 : i32
    %c0_i32_0 = arith.constant 0 : i32
    %c0_i32_1 = arith.constant 0 : i32
    return %arg0, %arg1, %c0_i32, %c0_i32_0 : i32, i32, i32, i32
  }
  func.func @transform_1(%arg0: i32, %arg1: i32) -> (i32, i32, i32, i32) {
    %c1_i32 = arith.constant 1 : i32
    %0 = arith.addi %arg1, %c1_i32 : i32
    %c4_i32 = arith.constant 4 : i32
    %1 = arith.muli %0, %c4_i32 : i32
    %c0_i32 = arith.constant 0 : i32
    %c0_i32_0 = arith.constant 0 : i32
    %c0_i32_1 = arith.constant 0 : i32
    return %arg0, %1, %c0_i32, %c0_i32_0 : i32, i32, i32, i32
  }
  func.func @transform_2(%arg0: i32, %arg1: i32) -> (i32, i32, i32, i32) {
    %c0_i32 = arith.constant 0 : i32
    %c0_i32_0 = arith.constant 0 : i32
    %c0_i32_1 = arith.constant 0 : i32
    %c0_i32_2 = arith.constant 0 : i32
    %c0_i32_3 = arith.constant 0 : i32
    return %c0_i32, %c0_i32_0, %c0_i32_1, %c0_i32_2 : i32, i32, i32, i32
  }
  func.func @transform_3(%arg0: i32, %arg1: i32) -> (i32, i32) {
    %c0_i32 = arith.constant 0 : i32
    %c0_i32_0 = arith.constant 0 : i32
    %c0_i32_1 = arith.constant 0 : i32
    return %c0_i32, %c0_i32_0 : i32, i32
  }
  func.func @transform_4(%arg0: i32, %arg1: i32) -> (i32, i32) {
    %c0_i32 = arith.constant 0 : i32
    %c0_i32_0 = arith.constant 0 : i32
    %c0_i32_1 = arith.constant 0 : i32
    return %c0_i32, %c0_i32_0 : i32, i32
  }
  func.func @transform_5(%arg0: i32, %arg1: i32) -> (i32, i32, i32, i32) {
    %c0_i32 = arith.constant 0 : i32
    %c0_i32_0 = arith.constant 0 : i32
    %c0_i32_1 = arith.constant 0 : i32
    return %arg0, %arg1, %c0_i32, %c0_i32_0 : i32, i32, i32, i32
  }
}

</mosaic_0001>

<llo_original>
// kernel: tpu_custom_call.1
$region0: #{tpu_custom_call.1}
  #allocation0 [shape = 'u32[]', space=smem, size = 0x4, offset = 0x4, fixed_abs, tag = 'smem constant byte address 0x4 - core index']
  #allocation1 [shape = 'u32[72,128]{1,0:T(1,128)}', space=vmem, size = 0x9000, scoped, tag = 'internal scratch']
  %s0 = inlined_call_operand.vmem [shape: bf16[2,10,10,40], index: 0, kind: input, shape index: {}]
  %s1 = inlined_call_operand.vmem [shape: bf16[2,10,10,40], index: 1, kind: input, shape index: {}]
  %s2 = inlined_call_operand.vmem [shape: bf16[3,3,40,128], index: 2, kind: input, shape index: {}]
  %s3 = inlined_call_operand.vmem [shape: f32[1,128], index: 3, kind: input, shape index: {}]
  %s4 = inlined_call_operand.vmem [shape: f32[1,128], index: 4, kind: input, shape index: {}]
  %s5 = inlined_call_operand.hbm [shape: f32[2,8,8,128], index: 5, kind: output, shape index: {}]
  %s6 = sld [smem:[#allocation0]]
  $region53: #{tpu_custom_call.1} parent=0
    _
  %s8 = ssub.s32 1, %s6
  %s9 = scalar_select 0, %s8, %s6
  $region1: #{tpu_custom_call.1} parent=0
    #allocation2 [shape = 'u8[65536]{0}', space=vmem, size = 0x10000, scoped, tag = 'output window, operand 0']
    #allocation3 [shape = 's32[2]{0}', space=sflag, size = 0x8, scoped, tag = 'scoped memory for tpu_custom_call.1']
    %10 = vsyncpa [#allocation3], 0
    %s11 = scalar_lea.sflag [#allocation3], 1
    %12 = vsyncpa %s11, 0
    loop: start=0, step=1, limit=4
    $region2: #{tpu_custom_call.1} parent=1 // loop_pre_header
      _
    $region3: #{tpu_custom_call.1} parent=1 // loop_header
      %s14 = sphi 0, %s18
      %p15 = scmp.ge.s32.totalorder %s14, 4
      %s21 = sphi 0, %s33
      %s22 = sphi 0, %s29
      %s23 = sphi 0, %s21
      %s24 = sphi 0, %s22
      %s25 = sphi 0, %s23
      %s26 = sphi 0, %s24
      %s38 = sphi 0, %s40
      %s41 = sphi 0, %s38
      %s42 = sphi 0, %s41
      %s58 = sphi 0, %s42
      %s70 = sphi 0, %s72
      %s73 = sphi 0, %s70
      %s74 = sphi 0, %s73
      %s90 = sphi 0, %s74
      %s94 = sphi 0, %s94
      %s96 = sphi 0, %s94
      %s97 = sphi 0, %s96
      %s111 = sphi 0, %s97
      %s115 = sphi 0, %s115
      %s117 = sphi 0, %s115
      %s118 = sphi 0, %s117
      %s132 = sphi 0, %s118
      %s136 = sphi 0, %s136
      %s138 = sphi 0, %s136
      %s139 = sphi 0, %s138
      %s153 = sphi 0, %s139
      %s161 = sphi 0, %s163
      %s164 = sphi 0, %s161
      %s165 = sphi 0, %s164
      %s181 = sphi 0, %s165
    $region4: #{tpu_custom_call.1} parent=1 // loop_header_branch
      %17 = sbr.rel (%p15) target = $region8
    $region5: #{tpu_custom_call.1} parent=1 // loop_body
      %s19 = ssub.s32 %s14, 1
      %s20 = ssub.s32 %s14, 2
      %s27 = sadd.s32 1, %s22
      %p28 = scmp.ge.s32.totalorder %s27, 1
      %s29 = scalar_select %p28, 0, %s27
      %s30 = sadd.s32 1, %s21
      %s31 = scalar_select %p28, %s30, %s21
      %p32 = scmp.ge.s32.totalorder %s31, 2
      %s33 = scalar_select %p32, 0, %s31
      %s34 = ssub.s32 %s21, %s33
      %s35 = ssub.s32 %s22, %s29
      %s36 = sor.u32 %s34, %s35
      %p37 = scmp.eq.s32.totalorder %s36, 0
      %s39 = sadd.s32 %s38, 1
      %s40 = scalar_select %p37, %s38, %s39
      %p43 = pneg %p37
      %p44 = scmp.eq.s32.totalorder %s14, 1
      %p45 = por %p43, %p44
      %p46 = scmp.ne.s32.totalorder %s38, %s41
      %p47 = scmp.eq.s32.totalorder %s14, 0
      %p48 = por %p46, %p47
      %p49 = scmp.ne.s32.totalorder %s38, %s41
      %p50 = scmp.eq.s32.totalorder %s19, 1
      %p51 = por %p49, %p50
      %p52 = scmp.ne.s32.totalorder %s41, %s42
      %p53 = scmp.eq.s32.totalorder %s19, 0
      %p54 = por %p52, %p53
      %p55 = scmp.ne.s32.totalorder %s41, %s42
      %p56 = scmp.eq.s32.totalorder %s20, 1
      %p57 = por %p55, %p56
      %p59 = scmp.ne.s32.totalorder %s42, %s58
      %p60 = scmp.eq.s32.totalorder %s20, 0
      %p61 = por %p59, %p60
      %s62 = sadd.s32 %s22, 1
      %s63 = smul.u32 %s62, 4
      %s64 = sadd.s32 %s29, 1
      %s65 = smul.u32 %s64, 4
      %s66 = ssub.s32 %s21, %s33
      %s67 = ssub.s32 %s63, %s65
      %s68 = sor.u32 %s66, %s67
      %p69 = scmp.eq.s32.totalorder %s68, 0
      %s71 = sadd.s32 %s70, 1
      %s72 = scalar_select %p69, %s70, %s71
      %p75 = pneg %p69
      %p76 = scmp.eq.s32.totalorder %s14, 1
      %p77 = por %p75, %p76
      %p78 = scmp.ne.s32.totalorder %s70, %s73
      %p79 = scmp.eq.s32.totalorder %s14, 0
      %p80 = por %p78, %p79
      %p81 = scmp.ne.s32.totalorder %s70, %s73
      %p82 = scmp.eq.s32.totalorder %s19, 1
      %p83 = por %p81, %p82
      %p84 = scmp.ne.s32.totalorder %s73, %s74
      %p85 = scmp.eq.s32.totalorder %s19, 0
      %p86 = por %p84, %p85
      %p87 = scmp.ne.s32.totalorder %s73, %s74
      %p88 = scmp.eq.s32.totalorder %s20, 1
      %p89 = por %p87, %p88
      %p91 = scmp.ne.s32.totalorder %s74, %s90
      %p92 = scmp.eq.s32.totalorder %s20, 0
      %p93 = por %p91, %p92
      %s95 = sadd.s32 %s94, 1
      %p98 = scmp.eq.s32.totalorder %s14, 1
      %p99 = scmp.ne.s32.totalorder %s94, %s96
      %p100 = scmp.eq.s32.totalorder %s14, 0
      %p101 = por %p99, %p100
      %p102 = scmp.ne.s32.totalorder %s94, %s96
      %p103 = scmp.eq.s32.totalorder %s19, 1
      %p104 = por %p102, %p103
      %p105 = scmp.ne.s32.totalorder %s96, %s97
      %p106 = scmp.eq.s32.totalorder %s19, 0
      %p107 = por %p105, %p106
      %p108 = scmp.ne.s32.totalorder %s96, %s97
      %p109 = scmp.eq.s32.totalorder %s20, 1
      %p110 = por %p108, %p109
      %p112 = scmp.ne.s32.totalorder %s97, %s111
      %p113 = scmp.eq.s32.totalorder %s20, 0
      %p114 = por %p112, %p113
      %s116 = sadd.s32 %s115, 1
      %p119 = scmp.eq.s32.totalorder %s14, 1
      %p120 = scmp.ne.s32.totalorder %s115, %s117
      %p121 = scmp.eq.s32.totalorder %s14, 0
      %p122 = por %p120, %p121
      %p123 = scmp.ne.s32.totalorder %s115, %s117
      %p124 = scmp.eq.s32.totalorder %s19, 1
      %p125 = por %p123, %p124
      %p126 = scmp.ne.s32.totalorder %s117, %s118
      %p127 = scmp.eq.s32.totalorder %s19, 0
      %p128 = por %p126, %p127
      %p129 = scmp.ne.s32.totalorder %s117, %s118
      %p130 = scmp.eq.s32.totalorder %s20, 1
      %p131 = por %p129, %p130
      %p133 = scmp.ne.s32.totalorder %s118, %s132
      %p134 = scmp.eq.s32.totalorder %s20, 0
      %p135 = por %p133, %p134
      %s137 = sadd.s32 %s136, 1
      %p140 = scmp.eq.s32.totalorder %s14, 1
      %p141 = scmp.ne.s32.totalorder %s136, %s138
      %p142 = scmp.eq.s32.totalorder %s14, 0
      %p143 = por %p141, %p142
      %p144 = scmp.ne.s32.totalorder %s136, %s138
      %p145 = scmp.eq.s32.totalorder %s19, 1
      %p146 = por %p144, %p145
      %p147 = scmp.ne.s32.totalorder %s138, %s139
      %p148 = scmp.eq.s32.totalorder %s19, 0
      %p149 = por %p147, %p148
      %p150 = scmp.ne.s32.totalorder %s138, %s139
      %p151 = scmp.eq.s32.totalorder %s20, 1
      %p152 = por %p150, %p151
      %p154 = scmp.ne.s32.totalorder %s139, %s153
      %p155 = scmp.eq.s32.totalorder %s20, 0
      %p156 = por %p154, %p155
      %s157 = ssub.s32 %s21, %s33
      %s158 = ssub.s32 %s22, %s29
      %s159 = sor.u32 %s157, %s158
      %p160 = scmp.eq.s32.totalorder %s159, 0
      %s162 = sadd.s32 %s161, 1
      %s163 = scalar_select %p160, %s161, %s162
      %p166 = pneg %p160
      %p167 = scmp.eq.s32.totalorder %s14, 1
      %p168 = por %p166, %p167
      %p169 = scmp.ne.s32.totalorder %s161, %s164
      %p170 = scmp.eq.s32.totalorder %s14, 0
      %p171 = por %p169, %p170
      %p172 = scmp.ne.s32.totalorder %s161, %s164
      %p173 = scmp.eq.s32.totalorder %s19, 1
      %p174 = por %p172, %p173
      %p175 = scmp.ne.s32.totalorder %s164, %s165
      %p176 = scmp.eq.s32.totalorder %s19, 0
      %p177 = por %p175, %p176
      %p178 = scmp.ne.s32.totalorder %s164, %s165
      %p179 = scmp.eq.s32.totalorder %s20, 1
      %p180 = por %p178, %p179
      %p182 = scmp.ne.s32.totalorder %s165, %s181
      %p183 = scmp.eq.s32.totalorder %s20, 0
      %p184 = por %p182, %p183
      %p185 = scmp.le.s32.totalorder 1, %s14
      %p186 = scmp.lt.s32.totalorder %s14, 3
      %p187 = pnand %p185, %p186
      %p188 = pneg %p187
      // Predicated region
      $region9: #{tpu_custom_call.1} parent=5 // pred_check
        _
      $region10: #{tpu_custom_call.1} parent=5 // pred_check_branch
        %190 = sbr.rel (%p187) target = $region12
      $region11: #{tpu_custom_call.1} parent=5 // pred_region
        %s191 = ssub.s32 %s14, 1
        // Predicated region
        $region13: #{tpu_custom_call.1} parent=11 // pred_check
          %p192 = pneg %p107
        $region14: #{tpu_custom_call.1} parent=11 // pred_check_branch
          %194 = sbr.rel (%p192) target = $region16
        $region15: #{tpu_custom_call.1} parent=11 // pred_region
          _
        $region16: #{tpu_custom_call.1} parent=11 // pred_fallthru
          _
        // Predicated region
        $region17: #{tpu_custom_call.1} parent=11 // pred_check
          %p195 = pneg %p128
        $region18: #{tpu_custom_call.1} parent=11 // pred_check_branch
          %197 = sbr.rel (%p195) target = $region20
        $region19: #{tpu_custom_call.1} parent=11 // pred_region
          _
        $region20: #{tpu_custom_call.1} parent=11 // pred_fallthru
          _
        // Predicated region
        $region21: #{tpu_custom_call.1} parent=11 // pred_check
          %p198 = pneg %p149
        $region22: #{tpu_custom_call.1} parent=11 // pred_check_branch
          %200 = sbr.rel (%p198) target = $region24
        $region23: #{tpu_custom_call.1} parent=11 // pred_region
          _
        $region24: #{tpu_custom_call.1} parent=11 // pred_fallthru
          _
      $region12: #{tpu_custom_call.1} parent=5 // pred_fallthru
        _
      %p201 = scmp.lt.s32.totalorder %s14, 2
      // Predicated region
      $region25: #{tpu_custom_call.1} parent=5 // pred_check
        %p202 = pneg %p201
      $region26: #{tpu_custom_call.1} parent=5 // pred_check_branch
        %204 = sbr.rel (%p202) target = $region28
      $region27: #{tpu_custom_call.1} parent=5 // pred_region
        // Predicated region
        $region29: #{tpu_custom_call.1} parent=27 // pred_check
          %p205 = pneg %p48
        $region30: #{tpu_custom_call.1} parent=27 // pred_check_branch
          %207 = sbr.rel (%p205) target = $region32
        $region31: #{tpu_custom_call.1} parent=27 // pred_region
          %s208 = smul.u32 8, %s22
          %s209 = ssub.s32 10, %s208
          %p210 = scmp.lt.s32.totalorder %s209, 8
          %s211 = scalar_select %p210, %s209, 8
          %s212 = smul.u32 4, %s211
          %s213 = smul.u32 %s212, 2
          %p214 = scmp.lt.s32.totalorder %s21, 1
          %s215 = scalar_select %p214, %s21, 1
          %p216 = scmp.lt.s32.totalorder %s208, 9
          %s217 = scalar_select %p216, %s208, 9
          %s218 = smul.addr %s217, 2
          %s219 = smul.addr %s215, 20
          %s220 = sadd.s32 %s218, %s219
          %s221 = smul.addr %s220, 4
          %s222 = scalar_lea.vmem %s0, %s221
          %s223 = smul.u32 8, %s22
          %s224 = ssub.s32 10, %s223
          %p225 = scmp.lt.s32.totalorder %s224, 8
          %s226 = scalar_select %p225, %s224, 8
          %s227 = smul.u32 4, %s226
          %s228 = smul.u32 %s227, 2
        $region32: #{tpu_custom_call.1} parent=27 // pred_fallthru
          _
        // Predicated region
        $region33: #{tpu_custom_call.1} parent=27 // pred_check
          %p229 = pneg %p80
        $region34: #{tpu_custom_call.1} parent=27 // pred_check_branch
          %231 = sbr.rel (%p229) target = $region36
        $region35: #{tpu_custom_call.1} parent=27 // pred_region
          %s232 = sadd.s32 %s22, 1
          %s233 = smul.u32 %s232, 4
          %s234 = smul.u32 2, %s233
          %p235 = scmp.lt.s32.totalorder %s21, 1
          %s236 = scalar_select %p235, %s21, 1
          %p237 = scmp.lt.s32.totalorder %s234, 9
          %s238 = scalar_select %p237, %s234, 9
          %s239 = smul.addr %s238, 2
          %s240 = smul.addr %s236, 20
          %s241 = sadd.s32 %s239, %s240
          %s242 = smul.addr %s241, 4
          %s243 = scalar_lea.vmem %s1, %s242
          %s244 = sadd.s32 %s22, 1
          %s245 = smul.u32 %s244, 4
          %s246 = smul.u32 2, %s245
        $region36: #{tpu_custom_call.1} parent=27 // pred_fallthru
          _
      $region28: #{tpu_custom_call.1} parent=5 // pred_fallthru
        _
      %p247 = scmp.le.s32.totalorder 1, %s14
      %p248 = scmp.lt.s32.totalorder %s14, 3
      %p249 = pnand %p247, %p248
      %p250 = pneg %p249
      // Predicated region
      $region37: #{tpu_custom_call.1} parent=5 // pred_check
        _
      $region38: #{tpu_custom_call.1} parent=5 // pred_check_branch
        %252 = sbr.rel (%p249) target = $region40
      $region39: #{tpu_custom_call.1} parent=5 // pred_region
        %s253 = ssub.s32 %s14, 1
        %s254 = smul.u32 8, %s24
        %s255 = ssub.s32 10, %s254
        %p256 = scmp.lt.s32.totalorder %s255, 8
        %s257 = scalar_select %p256, %s255, 8
        %s258 = smul.u32 4, %s257
        %s259 = smul.u32 %s258, 2
        %p260 = scmp.lt.s32.totalorder %s23, 1
        %s261 = scalar_select %p260, %s23, 1
        %p262 = scmp.lt.s32.totalorder %s254, 9
        %s263 = scalar_select %p262, %s254, 9
        %s264 = smul.addr %s263, 2
        %s265 = smul.addr %s261, 20
        %s266 = sadd.s32 %s264, %s265
        %s267 = smul.addr %s266, 4
        %s268 = scalar_lea.vmem %s0, %s267
        %p269 = pneg %p54
        %p270 = pneg %p51
        %s271 = sadd.s32 %s24, 1
        %s272 = smul.u32 %s271, 4
        %s273 = smul.u32 2, %s272
        %p274 = scmp.lt.s32.totalorder %s23, 1
        %s275 = scalar_select %p274, %s23, 1
        %p276 = scmp.lt.s32.totalorder %s273, 9
        %s277 = scalar_select %p276, %s273, 9
        %s278 = smul.addr %s277, 2
        %s279 = smul.addr %s275, 20
        %s280 = sadd.s32 %s278, %s279
        %s281 = smul.addr %s280, 4
        %s282 = scalar_lea.vmem %s1, %s281
        %p283 = pneg %p86
        %p284 = pneg %p83
        %p285 = pneg %p107
        %p286 = pneg %p104
        %p287 = pneg %p128
        %p288 = pneg %p125
        %p289 = pneg %p149
        %p290 = pneg %p146
        %p291 = pneg %p177
        %p292 = pneg %p174
        %s293 = sand.u32 %s164, 1
        %s294 = scalar_lea.sflag [#allocation3], %s293
        %s295 = sand.u32 %s164, 1
        %s296 = smul.addr %s295, 64
        %s297 = scalar_lea.vmem [#allocation2], %s296
        %s298 = smul.u32 8, %s24
        %s299 = ssub.s32 10, %s298
        %p300 = scmp.lt.s32.totalorder %s299, 8
        %s301 = scalar_select %p300, %s299, 8
        %s302 = smul.u32 4, %s301
        %s303 = smul.u32 %s302, 2
        %p304 = scmp.lt.s32.totalorder %s23, 1
        %s305 = scalar_select %p304, %s23, 1
        %p306 = scmp.lt.s32.totalorder %s298, 9
        %s307 = scalar_select %p306, %s298, 9
        %s308 = smul.addr %s307, 2
        %s309 = smul.addr %s305, 20
        %s310 = sadd.s32 %s308, %s309
        %s311 = smul.addr %s310, 4
        %s312 = scalar_lea.vmem %s0, %s311
        %s313 = smul.u32 8, %s24
        %s314 = ssub.s32 10, %s313
        %p315 = scmp.lt.s32.totalorder %s314, 8
        %s316 = scalar_select %p315, %s314, 8
        %s317 = smul.u32 4, %s316
        %s318 = smul.u32 %s317, 2
        %s319 = sadd.s32 %s24, 1
        %s320 = smul.u32 %s319, 4
        %s321 = smul.u32 2, %s320
        %p322 = scmp.lt.s32.totalorder %s23, 1
        %s323 = scalar_select %p322, %s23, 1
        %p324 = scmp.lt.s32.totalorder %s321, 9
        %s325 = scalar_select %p324, %s321, 9
        %s326 = smul.addr %s325, 2
        %s327 = smul.addr %s323, 20
        %s328 = sadd.s32 %s326, %s327
        %s329 = smul.addr %s328, 4
        %s330 = scalar_lea.vmem %s1, %s329
        %s331 = sadd.s32 %s24, 1
        %s332 = smul.u32 %s331, 4
        %s333 = smul.u32 2, %s332
        %s334 = smul.u32 8, %s24
        %v336 = vld [vmem:[%s3] sm:$0x1]
        %v337 = vld [vmem:[%s4] sm:$0x1]
        %v338 = vld [vmem:[%s312] sm:$0xf]
        %v339 = vld [vmem:[%s312 + $0x4] sm:$0x1]
        %v340 = vld [vmem:[%s2] sm:$0xf]
        %v341 = vld [vmem:[%s2 + $0x4] sm:$0xf]
        %v342 = vld [vmem:[%s2 + $0x8] sm:$0xf]
        %v343 = vld [vmem:[%s2 + $0xc] sm:$0xf]
        %v344 = vld [vmem:[%s2 + $0x10] sm:$0xf]
        %s345 = scalar_lea.vmem %s2, 20
        %v346 = vld [vmem:[%s345] sm:$0xf]
        %v347 = vld [vmem:[%s345 + $0x4] sm:$0xf]
        %v348 = vld [vmem:[%s345 + $0x8] sm:$0xf]
        %v349 = vld [vmem:[%s345 + $0xc] sm:$0xf]
        %v350 = vld [vmem:[%s345 + $0x10] sm:$0xf]
        %v353 = vunpack.c.l.b16 %v338
        %v354 = vunpack.c.l.b16 %v339
        %v355 = vpack.c.b16 %v354, %v353
        %v357 = vshrl.u32 %v355, 16
        %v359 = vshll.u32 %v355, 16
        %v361 = vrot.slane %v359, 1
        %v362 = vor.u32 %v357, %v361
        %v368 = vunpack.c.l.b16 %v346
        %v369 = vunpack.c.l.b16 %v347
        %v370 = vunpack.c.l.b16 %v348
        %v371 = vunpack.c.l.b16 %v349
        %v372 = vunpack.c.l.b16 %v350
        %v373 = vpack.c.b16 %v369, %v368
        %v374 = vpack.c.b16 %v371, %v370
        %v375 = vpack.c.b16 %v372, %v372
        %vm378 = vcmask 326656
        %v380 = vsel %vm378, %v362, 0
        %vm382 = vcmask 1043456
        %v384 = vsel %vm382, %v375, 0
        %386 = vmatpush.bf16.msra.mxu0 0
        %387 = vmatpush.bf16.msra.mxu0 0
        %388 = vmatpush.bf16.msra.mxu0 0
        %389 = vmatpush.bf16.msra.mxu0 0
        %390 = vmatpush.bf16.msra.mxu0 0
        %391 = vmatpush.bf16.msra.mxu0 %v384
        %392 = vmatpush.bf16.msra.mxu0 %v374
        %393 = vmatpush.bf16.msra.mxu0 %v373
        %394 = vmatmul.bf16.gmra.mxu0 %v380
        %v395 = vpop.f32.mrf.mxu0
        %v396 = vadd.f32 0.0, %v395
        %v397 = vpop.f32.mrf.mxu0
        %398 = vdwg.mxu0
        %v404 = vunpack.c.l.b16 %v340
        %v405 = vunpack.c.l.b16 %v341
        %v406 = vunpack.c.l.b16 %v342
        %v407 = vunpack.c.l.b16 %v343
        %v408 = vunpack.c.l.b16 %v344
        %v409 = vpack.c.b16 %v405, %v404
        %v410 = vpack.c.b16 %v407, %v406
        %v411 = vpack.c.b16 %v408, %v408
        %v415 = vsel %vm378, %v338, 0
        %v418 = vsel %vm382, %v411, 0
        %420 = vmatpush.bf16.msra.mxu0 0
        %421 = vmatpush.bf16.msra.mxu0 0
        %422 = vmatpush.bf16.msra.mxu0 0
        %423 = vmatpush.bf16.msra.mxu0 0
        %424 = vmatpush.bf16.msra.mxu0 0
        %425 = vmatpush.bf16.msra.mxu0 %v418
        %426 = vmatpush.bf16.msra.mxu0 %v410
        %427 = vmatpush.bf16.msra.mxu0 %v409
        %428 = vmatmul.bf16.gmra.mxu0 %v415
        %v429 = vpop.f32.mrf.mxu0
        %v430 = vadd.f32 %v396, %v429
        %v431 = vpop.f32.mrf.mxu0
        %432 = vdwg.mxu0
        %s433 = scalar_lea.vmem %s2, 40
        %v434 = vld [vmem:[%s433] sm:$0xf]
        %v435 = vld [vmem:[%s433 + $0x4] sm:$0xf]
        %v436 = vld [vmem:[%s433 + $0x8] sm:$0xf]
        %v437 = vld [vmem:[%s433 + $0xc] sm:$0xf]
        %v438 = vld [vmem:[%s433 + $0x10] sm:$0xf]
        %v439 = vrot.slane %v355, 1
        %v445 = vunpack.c.l.b16 %v434
        %v446 = vunpack.c.l.b16 %v435
        %v447 = vunpack.c.l.b16 %v436
        %v448 = vunpack.c.l.b16 %v437
        %v449 = vunpack.c.l.b16 %v438
        %v450 = vpack.c.b16 %v446, %v445
        %v451 = vpack.c.b16 %v448, %v447
        %v452 = vpack.c.b16 %v449, %v449
        %v456 = vsel %vm378, %v439, 0
        %v459 = vsel %vm382, %v452, 0
        %461 = vmatpush.bf16.msra.mxu0 0
        %462 = vmatpush.bf16.msra.mxu0 0
        %463 = vmatpush.bf16.msra.mxu0 0
        %464 = vmatpush.bf16.msra.mxu0 0
        %465 = vmatpush.bf16.msra.mxu0 0
        %466 = vmatpush.bf16.msra.mxu0 %v459
        %467 = vmatpush.bf16.msra.mxu0 %v451
        %468 = vmatpush.bf16.msra.mxu0 %v450
        %469 = vmatmul.bf16.gmra.mxu0 %v456
        %v470 = vpop.f32.mrf.mxu0
        %v471 = vadd.f32 0.0, %v470
        %v472 = vpop.f32.mrf.mxu0
        %473 = vdwg.mxu0
        %v474 = vadd.f32 %v430, %v471
        %s475 = scalar_lea.vmem %s312, 8
        %v476 = vld [vmem:[%s475] sm:$0xf]
        %v477 = vld [vmem:[%s475 + $0x4] sm:$0x1]
        %s478 = scalar_lea.vmem %s2, 60
        %v479 = vld [vmem:[%s478] sm:$0xf]
        %v480 = vld [vmem:[%s478 + $0x4] sm:$0xf]
        %v481 = vld [vmem:[%s478 + $0x8] sm:$0xf]
        %v482 = vld [vmem:[%s478 + $0xc] sm:$0xf]
        %v483 = vld [vmem:[%s478 + $0x10] sm:$0xf]
        %v489 = vunpack.c.l.b16 %v479
        %v490 = vunpack.c.l.b16 %v480
        %v491 = vunpack.c.l.b16 %v481
        %v492 = vunpack.c.l.b16 %v482
        %v493 = vunpack.c.l.b16 %v483
        %v494 = vpack.c.b16 %v490, %v489
        %v495 = vpack.c.b16 %v492, %v491
        %v496 = vpack.c.b16 %v493, %v493
        %v500 = vsel %vm378, %v476, 0
        %v503 = vsel %vm382, %v496, 0
        %505 = vmatpush.bf16.msra.mxu0 0
        %506 = vmatpush.bf16.msra.mxu0 0
        %507 = vmatpush.bf16.msra.mxu0 0
        %508 = vmatpush.bf16.msra.mxu0 0
        %509 = vmatpush.bf16.msra.mxu0 0
        %510 = vmatpush.bf16.msra.mxu0 %v503
        %511 = vmatpush.bf16.msra.mxu0 %v495
        %512 = vmatpush.bf16.msra.mxu0 %v494
        %513 = vmatmul.bf16.gmra.mxu0 %v500
        %v514 = vpop.f32.mrf.mxu0
        %v515 = vadd.f32 0.0, %v514
        %v516 = vpop.f32.mrf.mxu0
        %517 = vdwg.mxu0
        %v518 = vadd.f32 %v474, %v515
        %s519 = scalar_lea.vmem %s2, 80
        %v520 = vld [vmem:[%s519] sm:$0xf]
        %v521 = vld [vmem:[%s519 + $0x4] sm:$0xf]
        %v522 = vld [vmem:[%s519 + $0x8] sm:$0xf]
        %v523 = vld [vmem:[%s519 + $0xc] sm:$0xf]
        %v524 = vld [vmem:[%s519 + $0x10] sm:$0xf]
        %v527 = vunpack.c.l.b16 %v476
        %v528 = vunpack.c.l.b16 %v477
        %v529 = vpack.c.b16 %v528, %v527
        %v531 = vshrl.u32 %v529, 16
        %v533 = vshll.u32 %v529, 16
        %v535 = vrot.slane %v533, 1
        %v536 = vor.u32 %v531, %v535
        %v542 = vunpack.c.l.b16 %v520
        %v543 = vunpack.c.l.b16 %v521
        %v544 = vunpack.c.l.b16 %v522
        %v545 = vunpack.c.l.b16 %v523
        %v546 = vunpack.c.l.b16 %v524
        %v547 = vpack.c.b16 %v543, %v542
        %v548 = vpack.c.b16 %v545, %v544
        %v549 = vpack.c.b16 %v546, %v546
        %v553 = vsel %vm378, %v536, 0
        %v556 = vsel %vm382, %v549, 0
        %558 = vmatpush.bf16.msra.mxu0 0
        %559 = vmatpush.bf16.msra.mxu0 0
        %560 = vmatpush.bf16.msra.mxu0 0
        %561 = vmatpush.bf16.msra.mxu0 0
        %562 = vmatpush.bf16.msra.mxu0 0
        %563 = vmatpush.bf16.msra.mxu0 %v556
        %564 = vmatpush.bf16.msra.mxu0 %v548
        %565 = vmatpush.bf16.msra.mxu0 %v547
        %566 = vmatmul.bf16.gmra.mxu0 %v553
        %v567 = vpop.f32.mrf.mxu0
        %v568 = vadd.f32 0.0, %v567
        %v569 = vpop.f32.mrf.mxu0
        %570 = vdwg.mxu0
        %v571 = vadd.f32 %v518, %v568
        %s572 = scalar_lea.vmem %s2, 100
        %v573 = vld [vmem:[%s572] sm:$0xf]
        %v574 = vld [vmem:[%s572 + $0x4] sm:$0xf]
        %v575 = vld [vmem:[%s572 + $0x8] sm:$0xf]
        %v576 = vld [vmem:[%s572 + $0xc] sm:$0xf]
        %v577 = vld [vmem:[%s572 + $0x10] sm:$0xf]
        %v578 = vrot.slane %v529, 1
        %v584 = vunpack.c.l.b16 %v573
        %v585 = vunpack.c.l.b16 %v574
        %v586 = vunpack.c.l.b16 %v575
        %v587 = vunpack.c.l.b16 %v576
        %v588 = vunpack.c.l.b16 %v577
        %v589 = vpack.c.b16 %v585, %v584
        %v590 = vpack.c.b16 %v587, %v586
        %v591 = vpack.c.b16 %v588, %v588
        %v595 = vsel %vm378, %v578, 0
        %v598 = vsel %vm382, %v591, 0
        %600 = vmatpush.bf16.msra.mxu0 0
        %601 = vmatpush.bf16.msra.mxu0 0
        %602 = vmatpush.bf16.msra.mxu0 0
        %603 = vmatpush.bf16.msra.mxu0 0
        %604 = vmatpush.bf16.msra.mxu0 0
        %605 = vmatpush.bf16.msra.mxu0 %v598
        %606 = vmatpush.bf16.msra.mxu0 %v590
        %607 = vmatpush.bf16.msra.mxu0 %v589
        %608 = vmatmul.bf16.gmra.mxu0 %v595
        %v609 = vpop.f32.mrf.mxu0
        %v610 = vadd.f32 0.0, %v609
        %v611 = vpop.f32.mrf.mxu0
        %612 = vdwg.mxu0
        %v613 = vadd.f32 %v571, %v610
        %s614 = scalar_lea.vmem %s312, 16
        %v615 = vld [vmem:[%s614] sm:$0xf]
        %v616 = vld [vmem:[%s614 + $0x4] sm:$0x1]
        %s617 = scalar_lea.vmem %s2, 120
        %v618 = vld [vmem:[%s617] sm:$0xf]
        %v619 = vld [vmem:[%s617 + $0x4] sm:$0xf]
        %v620 = vld [vmem:[%s617 + $0x8] sm:$0xf]
        %v621 = vld [vmem:[%s617 + $0xc] sm:$0xf]
        %v622 = vld [vmem:[%s617 + $0x10] sm:$0xf]
        %v628 = vunpack.c.l.b16 %v618
        %v629 = vunpack.c.l.b16 %v619
        %v630 = vunpack.c.l.b16 %v620
        %v631 = vunpack.c.l.b16 %v621
        %v632 = vunpack.c.l.b16 %v622
        %v633 = vpack.c.b16 %v629, %v628
        %v634 = vpack.c.b16 %v631, %v630
        %v635 = vpack.c.b16 %v632, %v632
        %v639 = vsel %vm378, %v615, 0
        %v642 = vsel %vm382, %v635, 0
        %644 = vmatpush.bf16.msra.mxu0 0
        %645 = vmatpush.bf16.msra.mxu0 0
        %646 = vmatpush.bf16.msra.mxu0 0
        %647 = vmatpush.bf16.msra.mxu0 0
        %648 = vmatpush.bf16.msra.mxu0 0
        %649 = vmatpush.bf16.msra.mxu0 %v642
        %650 = vmatpush.bf16.msra.mxu0 %v634
        %651 = vmatpush.bf16.msra.mxu0 %v633
        %652 = vmatmul.bf16.gmra.mxu0 %v639
        %v653 = vpop.f32.mrf.mxu0
        %v654 = vadd.f32 0.0, %v653
        %v655 = vpop.f32.mrf.mxu0
        %656 = vdwg.mxu0
        %v657 = vadd.f32 %v613, %v654
        %s658 = scalar_lea.vmem %s2, 140
        %v659 = vld [vmem:[%s658] sm:$0xf]
        %v660 = vld [vmem:[%s658 + $0x4] sm:$0xf]
        %v661 = vld [vmem:[%s658 + $0x8] sm:$0xf]
        %v662 = vld [vmem:[%s658 + $0xc] sm:$0xf]
        %v663 = vld [vmem:[%s658 + $0x10] sm:$0xf]
        %v666 = vunpack.c.l.b16 %v615
        %v667 = vunpack.c.l.b16 %v616
        %v668 = vpack.c.b16 %v667, %v666
        %v670 = vshrl.u32 %v668, 16
        %v672 = vshll.u32 %v668, 16
        %v674 = vrot.slane %v672, 1
        %v675 = vor.u32 %v670, %v674
        %v681 = vunpack.c.l.b16 %v659
        %v682 = vunpack.c.l.b16 %v660
        %v683 = vunpack.c.l.b16 %v661
        %v684 = vunpack.c.l.b16 %v662
        %v685 = vunpack.c.l.b16 %v663
        %v686 = vpack.c.b16 %v682, %v681
        %v687 = vpack.c.b16 %v684, %v683
        %v688 = vpack.c.b16 %v685, %v685
        %v692 = vsel %vm378, %v675, 0
        %v695 = vsel %vm382, %v688, 0
        %697 = vmatpush.bf16.msra.mxu0 0
        %698 = vmatpush.bf16.msra.mxu0 0
        %699 = vmatpush.bf16.msra.mxu0 0
        %700 = vmatpush.bf16.msra.mxu0 0
        %701 = vmatpush.bf16.msra.mxu0 0
        %702 = vmatpush.bf16.msra.mxu0 %v695
        %703 = vmatpush.bf16.msra.mxu0 %v687
        %704 = vmatpush.bf16.msra.mxu0 %v686
        %705 = vmatmul.bf16.gmra.mxu0 %v692
        %v706 = vpop.f32.mrf.mxu0
        %v707 = vadd.f32 0.0, %v706
        %v708 = vpop.f32.mrf.mxu0
        %709 = vdwg.mxu0
        %v710 = vadd.f32 %v657, %v707
        %s711 = scalar_lea.vmem %s2, 160
        %v712 = vld [vmem:[%s711] sm:$0xf]
        %v713 = vld [vmem:[%s711 + $0x4] sm:$0xf]
        %v714 = vld [vmem:[%s711 + $0x8] sm:$0xf]
        %v715 = vld [vmem:[%s711 + $0xc] sm:$0xf]
        %v716 = vld [vmem:[%s711 + $0x10] sm:$0xf]
        %v717 = vrot.slane %v668, 1
        %v723 = vunpack.c.l.b16 %v712
        %v724 = vunpack.c.l.b16 %v713
        %v725 = vunpack.c.l.b16 %v714
        %v726 = vunpack.c.l.b16 %v715
        %v727 = vunpack.c.l.b16 %v716
        %v728 = vpack.c.b16 %v724, %v723
        %v729 = vpack.c.b16 %v726, %v725
        %v730 = vpack.c.b16 %v727, %v727
        %v734 = vsel %vm378, %v717, 0
        %v737 = vsel %vm382, %v730, 0
        %739 = vmatpush.bf16.msra.mxu0 0
        %740 = vmatpush.bf16.msra.mxu0 0
        %741 = vmatpush.bf16.msra.mxu0 0
        %742 = vmatpush.bf16.msra.mxu0 0
        %743 = vmatpush.bf16.msra.mxu0 0
        %744 = vmatpush.bf16.msra.mxu0 %v737
        %745 = vmatpush.bf16.msra.mxu0 %v729
        %746 = vmatpush.bf16.msra.mxu0 %v728
        %747 = vmatmul.bf16.gmra.mxu0 %v734
        %v748 = vpop.f32.mrf.mxu0
        %v749 = vadd.f32 0.0, %v748
        %v750 = vpop.f32.mrf.mxu0
        %751 = vdwg.mxu0
        %v752 = vadd.f32 %v710, %v749
        %v754 = vperm.slane %v336, 0
        %v756 = vmul.f32 %v752, %v754
        %v758 = vperm.slane %v337, 0
        %v760 = vadd.f32 %v756, %v758
        %v761 = vmax.f32 %v760, 0.0
        %762 = vst [vmem:[%s297] sm:$0xff] %v761
        %v763 = vld [vmem:[%s475] sm:$0xf]
        %v764 = vld [vmem:[%s475 + $0x4] sm:$0x1]
        %v765 = vld [vmem:[%s2] sm:$0xf]
        %v766 = vld [vmem:[%s2 + $0x4] sm:$0xf]
        %v767 = vld [vmem:[%s2 + $0x8] sm:$0xf]
        %v768 = vld [vmem:[%s2 + $0xc] sm:$0xf]
        %v769 = vld [vmem:[%s2 + $0x10] sm:$0xf]
        %v770 = vld [vmem:[%s345] sm:$0xf]
        %v771 = vld [vmem:[%s345 + $0x4] sm:$0xf]
        %v772 = vld [vmem:[%s345 + $0x8] sm:$0xf]
        %v773 = vld [vmem:[%s345 + $0xc] sm:$0xf]
        %v774 = vld [vmem:[%s345 + $0x10] sm:$0xf]
        %v777 = vunpack.c.l.b16 %v763
        %v778 = vunpack.c.l.b16 %v764
        %v779 = vpack.c.b16 %v778, %v777
        %v781 = vshrl.u32 %v779, 16
        %v783 = vshll.u32 %v779, 16
        %v785 = vrot.slane %v783, 1
        %v786 = vor.u32 %v781, %v785
        %v792 = vunpack.c.l.b16 %v770
        %v793 = vunpack.c.l.b16 %v771
        %v794 = vunpack.c.l.b16 %v772
        %v795 = vunpack.c.l.b16 %v773
        %v796 = vunpack.c.l.b16 %v774
        %v797 = vpack.c.b16 %v793, %v792
        %v798 = vpack.c.b16 %v795, %v794
        %v799 = vpack.c.b16 %v796, %v796
        %v803 = vsel %vm378, %v786, 0
        %v806 = vsel %vm382, %v799, 0
        %808 = vmatpush.bf16.msra.mxu0 0
        %809 = vmatpush.bf16.msra.mxu0 0
        %810 = vmatpush.bf16.msra.mxu0 0
        %811 = vmatpush.bf16.msra.mxu0 0
        %812 = vmatpush.bf16.msra.mxu0 0
        %813 = vmatpush.bf16.msra.mxu0 %v806
        %814 = vmatpush.bf16.msra.mxu0 %v798
        %815 = vmatpush.bf16.msra.mxu0 %v797
        %816 = vmatmul.bf16.gmra.mxu0 %v803
        %v817 = vpop.f32.mrf.mxu0
        %v818 = vadd.f32 0.0, %v817
        %v819 = vpop.f32.mrf.mxu0
        %820 = vdwg.mxu0
        %v826 = vunpack.c.l.b16 %v765
        %v827 = vunpack.c.l.b16 %v766
        %v828 = vunpack.c.l.b16 %v767
        %v829 = vunpack.c.l.b16 %v768
        %v830 = vunpack.c.l.b16 %v769
        %v831 = vpack.c.b16 %v827, %v826
        %v832 = vpack.c.b16 %v829, %v828
        %v833 = vpack.c.b16 %v830, %v830
        %v837 = vsel %vm378, %v763, 0
        %v840 = vsel %vm382, %v833, 0
        %842 = vmatpush.bf16.msra.mxu0 0
        %843 = vmatpush.bf16.msra.mxu0 0
        %844 = vmatpush.bf16.msra.mxu0 0
        %845 = vmatpush.bf16.msra.mxu0 0
        %846 = vmatpush.bf16.msra.mxu0 0
        %847 = vmatpush.bf16.msra.mxu0 %v840
        %848 = vmatpush.bf16.msra.mxu0 %v832
        %849 = vmatpush.bf16.msra.mxu0 %v831
        %850 = vmatmul.bf16.gmra.mxu0 %v837
        %v851 = vpop.f32.mrf.mxu0
        %v852 = vadd.f32 %v818, %v851
        %v853 = vpop.f32.mrf.mxu0
        %854 = vdwg.mxu0
        %v855 = vld [vmem:[%s433] sm:$0xf]
        %v856 = vld [vmem:[%s433 + $0x4] sm:$0xf]
        %v857 = vld [vmem:[%s433 + $0x8] sm:$0xf]
        %v858 = vld [vmem:[%s433 + $0xc] sm:$0xf]
        %v859 = vld [vmem:[%s433 + $0x10] sm:$0xf]
        %v860 = vrot.slane %v779, 1
        %v866 = vunpack.c.l.b16 %v855
        %v867 = vunpack.c.l.b16 %v856
        %v868 = vunpack.c.l.b16 %v857
        %v869 = vunpack.c.l.b16 %v858
        %v870 = vunpack.c.l.b16 %v859
        %v871 = vpack.c.b16 %v867, %v866
        %v872 = vpack.c.b16 %v869, %v868
        %v873 = vpack.c.b16 %v870, %v870
        %v877 = vsel %vm378, %v860, 0
        %v880 = vsel %vm382, %v873, 0
        %882 = vmatpush.bf16.msra.mxu0 0
        %883 = vmatpush.bf16.msra.mxu0 0
        %884 = vmatpush.bf16.msra.mxu0 0
        %885 = vmatpush.bf16.msra.mxu0 0
        %886 = vmatpush.bf16.msra.mxu0 0
        %887 = vmatpush.bf16.msra.mxu0 %v880
        %888 = vmatpush.bf16.msra.mxu0 %v872
        %889 = vmatpush.bf16.msra.mxu0 %v871
        %890 = vmatmul.bf16.gmra.mxu0 %v877
        %v891 = vpop.f32.mrf.mxu0
        %v892 = vadd.f32 0.0, %v891
        %v893 = vpop.f32.mrf.mxu0
        %894 = vdwg.mxu0
        %v895 = vadd.f32 %v852, %v892
        %v896 = vld [vmem:[%s614] sm:$0xf]
        %v897 = vld [vmem:[%s614 + $0x4] sm:$0x1]
        %v898 = vld [vmem:[%s478] sm:$0xf]
        %v899 = vld [vmem:[%s478 + $0x4] sm:$0xf]
        %v900 = vld [vmem:[%s478 + $0x8] sm:$0xf]
        %v901 = vld [vmem:[%s478 + $0xc] sm:$0xf]
        %v902 = vld [vmem:[%s478 + $0x10] sm:$0xf]
        %v908 = vunpack.c.l.b16 %v898
        %v909 = vunpack.c.l.b16 %v899
        %v910 = vunpack.c.l.b16 %v900
        %v911 = vunpack.c.l.b16 %v901
        %v912 = vunpack.c.l.b16 %v902
        %v913 = vpack.c.b16 %v909, %v908
        %v914 = vpack.c.b16 %v911, %v910
        %v915 = vpack.c.b16 %v912, %v912
        %v919 = vsel %vm378, %v896, 0
        %v922 = vsel %vm382, %v915, 0
        %924 = vmatpush.bf16.msra.mxu0 0
        %925 = vmatpush.bf16.msra.mxu0 0
        %926 = vmatpush.bf16.msra.mxu0 0
        %927 = vmatpush.bf16.msra.mxu0 0
        %928 = vmatpush.bf16.msra.mxu0 0
        %929 = vmatpush.bf16.msra.mxu0 %v922
        %930 = vmatpush.bf16.msra.mxu0 %v914
        %931 = vmatpush.bf16.msra.mxu0 %v913
        %932 = vmatmul.bf16.gmra.mxu0 %v919
        %v933 = vpop.f32.mrf.mxu0
        %v934 = vadd.f32 0.0, %v933
        %v935 = vpop.f32.mrf.mxu0
        %936 = vdwg.mxu0
        %v937 = vadd.f32 %v895, %v934
        %v938 = vld [vmem:[%s519] sm:$0xf]
        %v939 = vld [vmem:[%s519 + $0x4] sm:$0xf]
        %v940 = vld [vmem:[%s519 + $0x8] sm:$0xf]
        %v941 = vld [vmem:[%s519 + $0xc] sm:$0xf]
        %v942 = vld [vmem:[%s519 + $0x10] sm:$0xf]
        %v945 = vunpack.c.l.b16 %v896
        %v946 = vunpack.c.l.b16 %v897
        %v947 = vpack.c.b16 %v946, %v945
        %v949 = vshrl.u32 %v947, 16
        %v951 = vshll.u32 %v947, 16
        %v953 = vrot.slane %v951, 1
        %v954 = vor.u32 %v949, %v953
        %v960 = vunpack.c.l.b16 %v938
        %v961 = vunpack.c.l.b16 %v939
        %v962 = vunpack.c.l.b16 %v940
        %v963 = vunpack.c.l.b16 %v941
        %v964 = vunpack.c.l.b16 %v942
        %v965 = vpack.c.b16 %v961, %v960
        %v966 = vpack.c.b16 %v963, %v962
        %v967 = vpack.c.b16 %v964, %v964
        %v971 = vsel %vm378, %v954, 0
        %v974 = vsel %vm382, %v967, 0
        %976 = vmatpush.bf16.msra.mxu0 0
        %977 = vmatpush.bf16.msra.mxu0 0
        %978 = vmatpush.bf16.msra.mxu0 0
        %979 = vmatpush.bf16.msra.mxu0 0
        %980 = vmatpush.bf16.msra.mxu0 0
        %981 = vmatpush.bf16.msra.mxu0 %v974
        %982 = vmatpush.bf16.msra.mxu0 %v966
        %983 = vmatpush.bf16.msra.mxu0 %v965
        %984 = vmatmul.bf16.gmra.mxu0 %v971
        %v985 = vpop.f32.mrf.mxu0
        %v986 = vadd.f32 0.0, %v985
        %v987 = vpop.f32.mrf.mxu0
        %988 = vdwg.mxu0
        %v989 = vadd.f32 %v937, %v986
        %v990 = vld [vmem:[%s572] sm:$0xf]
        %v991 = vld [vmem:[%s572 + $0x4] sm:$0xf]
        %v992 = vld [vmem:[%s572 + $0x8] sm:$0xf]
        %v993 = vld [vmem:[%s572 + $0xc] sm:$0xf]
        %v994 = vld [vmem:[%s572 + $0x10] sm:$0xf]
        %v995 = vrot.slane %v947, 1
        %v1001 = vunpack.c.l.b16 %v990
        %v1002 = vunpack.c.l.b16 %v991
        %v1003 = vunpack.c.l.b16 %v992
        %v1004 = vunpack.c.l.b16 %v993
        %v1005 = vunpack.c.l.b16 %v994
        %v1006 = vpack.c.b16 %v1002, %v1001
        %v1007 = vpack.c.b16 %v1004, %v1003
        %v1008 = vpack.c.b16 %v1005, %v1005
        %v1012 = vsel %vm378, %v995, 0
        %v1015 = vsel %vm382, %v1008, 0
        %1017 = vmatpush.bf16.msra.mxu0 0
        %1018 = vmatpush.bf16.msra.mxu0 0
        %1019 = vmatpush.bf16.msra.mxu0 0
        %1020 = vmatpush.bf16.msra.mxu0 0
        %1021 = vmatpush.bf16.msra.mxu0 0
        %1022 = vmatpush.bf16.msra.mxu0 %v1015
        %1023 = vmatpush.bf16.msra.mxu0 %v1007
        %1024 = vmatpush.bf16.msra.mxu0 %v1006
        %1025 = vmatmul.bf16.gmra.mxu0 %v1012
        %v1026 = vpop.f32.mrf.mxu0
        %v1027 = vadd.f32 0.0, %v1026
        %v1028 = vpop.f32.mrf.mxu0
        %1029 = vdwg.mxu0
        %v1030 = vadd.f32 %v989, %v1027
        %s1031 = scalar_lea.vmem %s312, 24
        %v1032 = vld [vmem:[%s1031] sm:$0xf]
        %v1033 = vld [vmem:[%s1031 + $0x4] sm:$0x1]
        %v1034 = vld [vmem:[%s617] sm:$0xf]
        %v1035 = vld [vmem:[%s617 + $0x4] sm:$0xf]
        %v1036 = vld [vmem:[%s617 + $0x8] sm:$0xf]
        %v1037 = vld [vmem:[%s617 + $0xc] sm:$0xf]
        %v1038 = vld [vmem:[%s617 + $0x10] sm:$0xf]
        %v1044 = vunpack.c.l.b16 %v1034
        %v1045 = vunpack.c.l.b16 %v1035
        %v1046 = vunpack.c.l.b16 %v1036
        %v1047 = vunpack.c.l.b16 %v1037
        %v1048 = vunpack.c.l.b16 %v1038
        %v1049 = vpack.c.b16 %v1045, %v1044
        %v1050 = vpack.c.b16 %v1047, %v1046
        %v1051 = vpack.c.b16 %v1048, %v1048
        %v1055 = vsel %vm378, %v1032, 0
        %v1058 = vsel %vm382, %v1051, 0
        %1060 = vmatpush.bf16.msra.mxu0 0
        %1061 = vmatpush.bf16.msra.mxu0 0
        %1062 = vmatpush.bf16.msra.mxu0 0
        %1063 = vmatpush.bf16.msra.mxu0 0
        %1064 = vmatpush.bf16.msra.mxu0 0
        %1065 = vmatpush.bf16.msra.mxu0 %v1058
        %1066 = vmatpush.bf16.msra.mxu0 %v1050
        %1067 = vmatpush.bf16.msra.mxu0 %v1049
        %1068 = vmatmul.bf16.gmra.mxu0 %v1055
        %v1069 = vpop.f32.mrf.mxu0
        %v1070 = vadd.f32 0.0, %v1069
        %v1071 = vpop.f32.mrf.mxu0
        %1072 = vdwg.mxu0
        %v1073 = vadd.f32 %v1030, %v1070
        %v1074 = vld [vmem:[%s658] sm:$0xf]
        %v1075 = vld [vmem:[%s658 + $0x4] sm:$0xf]
        %v1076 = vld [vmem:[%s658 + $0x8] sm:$0xf]
        %v1077 = vld [vmem:[%s658 + $0xc] sm:$0xf]
        %v1078 = vld [vmem:[%s658 + $0x10] sm:$0xf]
        %v1081 = vunpack.c.l.b16 %v1032
        %v1082 = vunpack.c.l.b16 %v1033
        %v1083 = vpack.c.b16 %v1082, %v1081
        %v1085 = vshrl.u32 %v1083, 16
        %v1087 = vshll.u32 %v1083, 16
        %v1089 = vrot.slane %v1087, 1
        %v1090 = vor.u32 %v1085, %v1089
        %v1096 = vunpack.c.l.b16 %v1074
        %v1097 = vunpack.c.l.b16 %v1075
        %v1098 = vunpack.c.l.b16 %v1076
        %v1099 = vunpack.c.l.b16 %v1077
        %v1100 = vunpack.c.l.b16 %v1078
        %v1101 = vpack.c.b16 %v1097, %v1096
        %v1102 = vpack.c.b16 %v1099, %v1098
        %v1103 = vpack.c.b16 %v1100, %v1100
        %v1107 = vsel %vm378, %v1090, 0
        %v1110 = vsel %vm382, %v1103, 0
        %1112 = vmatpush.bf16.msra.mxu0 0
        %1113 = vmatpush.bf16.msra.mxu0 0
        %1114 = vmatpush.bf16.msra.mxu0 0
        %1115 = vmatpush.bf16.msra.mxu0 0
        %1116 = vmatpush.bf16.msra.mxu0 0
        %1117 = vmatpush.bf16.msra.mxu0 %v1110
        %1118 = vmatpush.bf16.msra.mxu0 %v1102
        %1119 = vmatpush.bf16.msra.mxu0 %v1101
        %1120 = vmatmul.bf16.gmra.mxu0 %v1107
        %v1121 = vpop.f32.mrf.mxu0
        %v1122 = vadd.f32 0.0, %v1121
        %v1123 = vpop.f32.mrf.mxu0
        %1124 = vdwg.mxu0
        %v1125 = vadd.f32 %v1073, %v1122
        %v1126 = vld [vmem:[%s711] sm:$0xf]
        %v1127 = vld [vmem:[%s711 + $0x4] sm:$0xf]
        %v1128 = vld [vmem:[%s711 + $0x8] sm:$0xf]
        %v1129 = vld [vmem:[%s711 + $0xc] sm:$0xf]
        %v1130 = vld [vmem:[%s711 + $0x10] sm:$0xf]
        %v1131 = vrot.slane %v1083, 1
        %v1137 = vunpack.c.l.b16 %v1126
        %v1138 = vunpack.c.l.b16 %v1127
        %v1139 = vunpack.c.l.b16 %v1128
        %v1140 = vunpack.c.l.b16 %v1129
        %v1141 = vunpack.c.l.b16 %v1130
        %v1142 = vpack.c.b16 %v1138, %v1137
        %v1143 = vpack.c.b16 %v1140, %v1139
        %v1144 = vpack.c.b16 %v1141, %v1141
        %v1148 = vsel %vm378, %v1131, 0
        %v1151 = vsel %vm382, %v1144, 0
        %1153 = vmatpush.bf16.msra.mxu0 0
        %1154 = vmatpush.bf16.msra.mxu0 0
        %1155 = vmatpush.bf16.msra.mxu0 0
        %1156 = vmatpush.bf16.msra.mxu0 0
        %1157 = vmatpush.bf16.msra.mxu0 0
        %1158 = vmatpush.bf16.msra.mxu0 %v1151
        %1159 = vmatpush.bf16.msra.mxu0 %v1143
        %1160 = vmatpush.bf16.msra.mxu0 %v1142
        %1161 = vmatmul.bf16.gmra.mxu0 %v1148
        %v1162 = vpop.f32.mrf.mxu0
        %v1163 = vadd.f32 0.0, %v1162
        %v1164 = vpop.f32.mrf.mxu0
        %1165 = vdwg.mxu0
        %v1166 = vadd.f32 %v1125, %v1163
        %v1167 = vmul.f32 %v1166, %v754
        %v1168 = vadd.f32 %v1167, %v758
        %v1169 = vmax.f32 %v1168, 0.0
        %s1170 = scalar_lea.vmem %s297, 8 [#allocation2]
        %1171 = vst [vmem:[%s1170] sm:$0xff] %v1169
        %v1172 = vld [vmem:[%s614] sm:$0xf]
        %v1173 = vld [vmem:[%s614 + $0x4] sm:$0x1]
        %v1174 = vld [vmem:[%s2] sm:$0xf]
        %v1175 = vld [vmem:[%s2 + $0x4] sm:$0xf]
        %v1176 = vld [vmem:[%s2 + $0x8] sm:$0xf]
        %v1177 = vld [vmem:[%s2 + $0xc] sm:$0xf]
        %v1178 = vld [vmem:[%s2 + $0x10] sm:$0xf]
        %v1179 = vld [vmem:[%s345] sm:$0xf]
        %v1180 = vld [vmem:[%s345 + $0x4] sm:$0xf]
        %v1181 = vld [vmem:[%s345 + $0x8] sm:$0xf]
        %v1182 = vld [vmem:[%s345 + $0xc] sm:$0xf]
        %v1183 = vld [vmem:[%s345 + $0x10] sm:$0xf]
        %v1186 = vunpack.c.l.b16 %v1172
        %v1187 = vunpack.c.l.b16 %v1173
        %v1188 = vpack.c.b16 %v1187, %v1186
        %v1190 = vshrl.u32 %v1188, 16
        %v1192 = vshll.u32 %v1188, 16
        %v1194 = vrot.slane %v1192, 1
        %v1195 = vor.u32 %v1190, %v1194
        %v1201 = vunpack.c.l.b16 %v1179
        %v1202 = vunpack.c.l.b16 %v1180
        %v1203 = vunpack.c.l.b16 %v1181
        %v1204 = vunpack.c.l.b16 %v1182
        %v1205 = vunpack.c.l.b16 %v1183
        %v1206 = vpack.c.b16 %v1202, %v1201
        %v1207 = vpack.c.b16 %v1204, %v1203
        %v1208 = vpack.c.b16 %v1205, %v1205
        %v1212 = vsel %vm378, %v1195, 0
        %v1215 = vsel %vm382, %v1208, 0
        %1217 = vmatpush.bf16.msra.mxu0 0
        %1218 = vmatpush.bf16.msra.mxu0 0
        %1219 = vmatpush.bf16.msra.mxu0 0
        %1220 = vmatpush.bf16.msra.mxu0 0
        %1221 = vmatpush.bf16.msra.mxu0 0
        %1222 = vmatpush.bf16.msra.mxu0 %v1215
        %1223 = vmatpush.bf16.msra.mxu0 %v1207
        %1224 = vmatpush.bf16.msra.mxu0 %v1206
        %1225 = vmatmul.bf16.gmra.mxu0 %v1212
        %v1226 = vpop.f32.mrf.mxu0
        %v1227 = vadd.f32 0.0, %v1226
        %v1228 = vpop.f32.mrf.mxu0
        %1229 = vdwg.mxu0
        %v1235 = vunpack.c.l.b16 %v1174
        %v1236 = vunpack.c.l.b16 %v1175
        %v1237 = vunpack.c.l.b16 %v1176
        %v1238 = vunpack.c.l.b16 %v1177
        %v1239 = vunpack.c.l.b16 %v1178
        %v1240 = vpack.c.b16 %v1236, %v1235
        %v1241 = vpack.c.b16 %v1238, %v1237
        %v1242 = vpack.c.b16 %v1239, %v1239
        %v1246 = vsel %vm378, %v1172, 0
        %v1249 = vsel %vm382, %v1242, 0
        %1251 = vmatpush.bf16.msra.mxu0 0
        %1252 = vmatpush.bf16.msra.mxu0 0
        %1253 = vmatpush.bf16.msra.mxu0 0
        %1254 = vmatpush.bf16.msra.mxu0 0
        %1255 = vmatpush.bf16.msra.mxu0 0
        %1256 = vmatpush.bf16.msra.mxu0 %v1249
        %1257 = vmatpush.bf16.msra.mxu0 %v1241
        %1258 = vmatpush.bf16.msra.mxu0 %v1240
        %1259 = vmatmul.bf16.gmra.mxu0 %v1246
        %v1260 = vpop.f32.mrf.mxu0
        %v1261 = vadd.f32 %v1227, %v1260
        %v1262 = vpop.f32.mrf.mxu0
        %1263 = vdwg.mxu0
        %v1264 = vld [vmem:[%s433] sm:$0xf]
        %v1265 = vld [vmem:[%s433 + $0x4] sm:$0xf]
        %v1266 = vld [vmem:[%s433 + $0x8] sm:$0xf]
        %v1267 = vld [vmem:[%s433 + $0xc] sm:$0xf]
        %v1268 = vld [vmem:[%s433 + $0x10] sm:$0xf]
        %v1269 = vrot.slane %v1188, 1
        %v1275 = vunpack.c.l.b16 %v1264
        %v1276 = vunpack.c.l.b16 %v1265
        %v1277 = vunpack.c.l.b16 %v1266
        %v1278 = vunpack.c.l.b16 %v1267
        %v1279 = vunpack.c.l.b16 %v1268
        %v1280 = vpack.c.b16 %v1276, %v1275
        %v1281 = vpack.c.b16 %v1278, %v1277
        %v1282 = vpack.c.b16 %v1279, %v1279
        %v1286 = vsel %vm378, %v1269, 0
        %v1289 = vsel %vm382, %v1282, 0
        %1291 = vmatpush.bf16.msra.mxu0 0
        %1292 = vmatpush.bf16.msra.mxu0 0
        %1293 = vmatpush.bf16.msra.mxu0 0
        %1294 = vmatpush.bf16.msra.mxu0 0
        %1295 = vmatpush.bf16.msra.mxu0 0
        %1296 = vmatpush.bf16.msra.mxu0 %v1289
        %1297 = vmatpush.bf16.msra.mxu0 %v1281
        %1298 = vmatpush.bf16.msra.mxu0 %v1280
        %1299 = vmatmul.bf16.gmra.mxu0 %v1286
        %v1300 = vpop.f32.mrf.mxu0
        %v1301 = vadd.f32 0.0, %v1300
        %v1302 = vpop.f32.mrf.mxu0
        %1303 = vdwg.mxu0
        %v1304 = vadd.f32 %v1261, %v1301
        %v1305 = vld [vmem:[%s1031] sm:$0xf]
        %v1306 = vld [vmem:[%s1031 + $0x4] sm:$0x1]
        %v1307 = vld [vmem:[%s478] sm:$0xf]
        %v1308 = vld [vmem:[%s478 + $0x4] sm:$0xf]
        %v1309 = vld [vmem:[%s478 + $0x8] sm:$0xf]
        %v1310 = vld [vmem:[%s478 + $0xc] sm:$0xf]
        %v1311 = vld [vmem:[%s478 + $0x10] sm:$0xf]
        %v1317 = vunpack.c.l.b16 %v1307
        %v1318 = vunpack.c.l.b16 %v1308
        %v1319 = vunpack.c.l.b16 %v1309
        %v1320 = vunpack.c.l.b16 %v1310
        %v1321 = vunpack.c.l.b16 %v1311
        %v1322 = vpack.c.b16 %v1318, %v1317
        %v1323 = vpack.c.b16 %v1320, %v1319
        %v1324 = vpack.c.b16 %v1321, %v1321
        %v1328 = vsel %vm378, %v1305, 0
        %v1331 = vsel %vm382, %v1324, 0
        %1333 = vmatpush.bf16.msra.mxu0 0
        %1334 = vmatpush.bf16.msra.mxu0 0
        %1335 = vmatpush.bf16.msra.mxu0 0
        %1336 = vmatpush.bf16.msra.mxu0 0
        %1337 = vmatpush.bf16.msra.mxu0 0
        %1338 = vmatpush.bf16.msra.mxu0 %v1331
        %1339 = vmatpush.bf16.msra.mxu0 %v1323
        %1340 = vmatpush.bf16.msra.mxu0 %v1322
        %1341 = vmatmul.bf16.gmra.mxu0 %v1328
        %v1342 = vpop.f32.mrf.mxu0
        %v1343 = vadd.f32 0.0, %v1342
        %v1344 = vpop.f32.mrf.mxu0
        %1345 = vdwg.mxu0
        %v1346 = vadd.f32 %v1304, %v1343
        %v1347 = vld [vmem:[%s519] sm:$0xf]
        %v1348 = vld [vmem:[%s519 + $0x4] sm:$0xf]
        %v1349 = vld [vmem:[%s519 + $0x8] sm:$0xf]
        %v1350 = vld [vmem:[%s519 + $0xc] sm:$0xf]
        %v1351 = vld [vmem:[%s519 + $0x10] sm:$0xf]
        %v1354 = vunpack.c.l.b16 %v1305
        %v1355 = vunpack.c.l.b16 %v1306
        %v1356 = vpack.c.b16 %v1355, %v1354
        %v1358 = vshrl.u32 %v1356, 16
        %v1360 = vshll.u32 %v1356, 16
        %v1362 = vrot.slane %v1360, 1
        %v1363 = vor.u32 %v1358, %v1362
        %v1369 = vunpack.c.l.b16 %v1347
        %v1370 = vunpack.c.l.b16 %v1348
        %v1371 = vunpack.c.l.b16 %v1349
        %v1372 = vunpack.c.l.b16 %v1350
        %v1373 = vunpack.c.l.b16 %v1351
        %v1374 = vpack.c.b16 %v1370, %v1369
        %v1375 = vpack.c.b16 %v1372, %v1371
        %v1376 = vpack.c.b16 %v1373, %v1373
        %v1380 = vsel %vm378, %v1363, 0
        %v1383 = vsel %vm382, %v1376, 0
        %1385 = vmatpush.bf16.msra.mxu0 0
        %1386 = vmatpush.bf16.msra.mxu0 0
        %1387 = vmatpush.bf16.msra.mxu0 0
        %1388 = vmatpush.bf16.msra.mxu0 0
        %1389 = vmatpush.bf16.msra.mxu0 0
        %1390 = vmatpush.bf16.msra.mxu0 %v1383
        %1391 = vmatpush.bf16.msra.mxu0 %v1375
        %1392 = vmatpush.bf16.msra.mxu0 %v1374
        %1393 = vmatmul.bf16.gmra.mxu0 %v1380
        %v1394 = vpop.f32.mrf.mxu0
        %v1395 = vadd.f32 0.0, %v1394
        %v1396 = vpop.f32.mrf.mxu0
        %1397 = vdwg.mxu0
        %v1398 = vadd.f32 %v1346, %v1395
        %v1399 = vld [vmem:[%s572] sm:$0xf]
        %v1400 = vld [vmem:[%s572 + $0x4] sm:$0xf]
        %v1401 = vld [vmem:[%s572 + $0x8] sm:$0xf]
        %v1402 = vld [vmem:[%s572 + $0xc] sm:$0xf]
        %v1403 = vld [vmem:[%s572 + $0x10] sm:$0xf]
        %v1404 = vrot.slane %v1356, 1
        %v1410 = vunpack.c.l.b16 %v1399
        %v1411 = vunpack.c.l.b16 %v1400
        %v1412 = vunpack.c.l.b16 %v1401
        %v1413 = vunpack.c.l.b16 %v1402
        %v1414 = vunpack.c.l.b16 %v1403
        %v1415 = vpack.c.b16 %v1411, %v1410
        %v1416 = vpack.c.b16 %v1413, %v1412
        %v1417 = vpack.c.b16 %v1414, %v1414
        %v1421 = vsel %vm378, %v1404, 0
        %v1424 = vsel %vm382, %v1417, 0
        %1426 = vmatpush.bf16.msra.mxu0 0
        %1427 = vmatpush.bf16.msra.mxu0 0
        %1428 = vmatpush.bf16.msra.mxu0 0
        %1429 = vmatpush.bf16.msra.mxu0 0
        %1430 = vmatpush.bf16.msra.mxu0 0
        %1431 = vmatpush.bf16.msra.mxu0 %v1424
        %1432 = vmatpush.bf16.msra.mxu0 %v1416
        %1433 = vmatpush.bf16.msra.mxu0 %v1415
        %1434 = vmatmul.bf16.gmra.mxu0 %v1421
        %v1435 = vpop.f32.mrf.mxu0
        %v1436 = vadd.f32 0.0, %v1435
        %v1437 = vpop.f32.mrf.mxu0
        %1438 = vdwg.mxu0
        %v1439 = vadd.f32 %v1398, %v1436
        %s1440 = scalar_lea.vmem %s312, 32
        %v1441 = vld [vmem:[%s1440] sm:$0xf]
        %v1442 = vld [vmem:[%s1440 + $0x4] sm:$0x1]
        %v1443 = vld [vmem:[%s617] sm:$0xf]
        %v1444 = vld [vmem:[%s617 + $0x4] sm:$0xf]
        %v1445 = vld [vmem:[%s617 + $0x8] sm:$0xf]
        %v1446 = vld [vmem:[%s617 + $0xc] sm:$0xf]
        %v1447 = vld [vmem:[%s617 + $0x10] sm:$0xf]
        %v1453 = vunpack.c.l.b16 %v1443
        %v1454 = vunpack.c.l.b16 %v1444
        %v1455 = vunpack.c.l.b16 %v1445
        %v1456 = vunpack.c.l.b16 %v1446
        %v1457 = vunpack.c.l.b16 %v1447
        %v1458 = vpack.c.b16 %v1454, %v1453
        %v1459 = vpack.c.b16 %v1456, %v1455
        %v1460 = vpack.c.b16 %v1457, %v1457
        %v1464 = vsel %vm378, %v1441, 0
        %v1467 = vsel %vm382, %v1460, 0
        %1469 = vmatpush.bf16.msra.mxu0 0
        %1470 = vmatpush.bf16.msra.mxu0 0
        %1471 = vmatpush.bf16.msra.mxu0 0
        %1472 = vmatpush.bf16.msra.mxu0 0
        %1473 = vmatpush.bf16.msra.mxu0 0
        %1474 = vmatpush.bf16.msra.mxu0 %v1467
        %1475 = vmatpush.bf16.msra.mxu0 %v1459
        %1476 = vmatpush.bf16.msra.mxu0 %v1458
        %1477 = vmatmul.bf16.gmra.mxu0 %v1464
        %v1478 = vpop.f32.mrf.mxu0
        %v1479 = vadd.f32 0.0, %v1478
        %v1480 = vpop.f32.mrf.mxu0
        %1481 = vdwg.mxu0
        %v1482 = vadd.f32 %v1439, %v1479
        %v1483 = vld [vmem:[%s658] sm:$0xf]
        %v1484 = vld [vmem:[%s658 + $0x4] sm:$0xf]
        %v1485 = vld [vmem:[%s658 + $0x8] sm:$0xf]
        %v1486 = vld [vmem:[%s658 + $0xc] sm:$0xf]
        %v1487 = vld [vmem:[%s658 + $0x10] sm:$0xf]
        %v1490 = vunpack.c.l.b16 %v1441
        %v1491 = vunpack.c.l.b16 %v1442
        %v1492 = vpack.c.b16 %v1491, %v1490
        %v1494 = vshrl.u32 %v1492, 16
        %v1496 = vshll.u32 %v1492, 16
        %v1498 = vrot.slane %v1496, 1
        %v1499 = vor.u32 %v1494, %v1498
        %v1505 = vunpack.c.l.b16 %v1483
        %v1506 = vunpack.c.l.b16 %v1484
        %v1507 = vunpack.c.l.b16 %v1485
        %v1508 = vunpack.c.l.b16 %v1486
        %v1509 = vunpack.c.l.b16 %v1487
        %v1510 = vpack.c.b16 %v1506, %v1505
        %v1511 = vpack.c.b16 %v1508, %v1507
        %v1512 = vpack.c.b16 %v1509, %v1509
        %v1516 = vsel %vm378, %v1499, 0
        %v1519 = vsel %vm382, %v1512, 0
        %1521 = vmatpush.bf16.msra.mxu0 0
        %1522 = vmatpush.bf16.msra.mxu0 0
        %1523 = vmatpush.bf16.msra.mxu0 0
        %1524 = vmatpush.bf16.msra.mxu0 0
        %1525 = vmatpush.bf16.msra.mxu0 0
        %1526 = vmatpush.bf16.msra.mxu0 %v1519
        %1527 = vmatpush.bf16.msra.mxu0 %v1511
        %1528 = vmatpush.bf16.msra.mxu0 %v1510
        %1529 = vmatmul.bf16.gmra.mxu0 %v1516
        %v1530 = vpop.f32.mrf.mxu0
        %v1531 = vadd.f32 0.0, %v1530
        %v1532 = vpop.f32.mrf.mxu0
        %1533 = vdwg.mxu0
        %v1534 = vadd.f32 %v1482, %v1531
        %v1535 = vld [vmem:[%s711] sm:$0xf]
        %v1536 = vld [vmem:[%s711 + $0x4] sm:$0xf]
        %v1537 = vld [vmem:[%s711 + $0x8] sm:$0xf]
        %v1538 = vld [vmem:[%s711 + $0xc] sm:$0xf]
        %v1539 = vld [vmem:[%s711 + $0x10] sm:$0xf]
        %v1540 = vrot.slane %v1492, 1
        %v1546 = vunpack.c.l.b16 %v1535
        %v1547 = vunpack.c.l.b16 %v1536
        %v1548 = vunpack.c.l.b16 %v1537
        %v1549 = vunpack.c.l.b16 %v1538
        %v1550 = vunpack.c.l.b16 %v1539
        %v1551 = vpack.c.b16 %v1547, %v1546
        %v1552 = vpack.c.b16 %v1549, %v1548
        %v1553 = vpack.c.b16 %v1550, %v1550
        %v1557 = vsel %vm378, %v1540, 0
        %v1560 = vsel %vm382, %v1553, 0
        %1562 = vmatpush.bf16.msra.mxu0 0
        %1563 = vmatpush.bf16.msra.mxu0 0
        %1564 = vmatpush.bf16.msra.mxu0 0
        %1565 = vmatpush.bf16.msra.mxu0 0
        %1566 = vmatpush.bf16.msra.mxu0 0
        %1567 = vmatpush.bf16.msra.mxu0 %v1560
        %1568 = vmatpush.bf16.msra.mxu0 %v1552
        %1569 = vmatpush.bf16.msra.mxu0 %v1551
        %1570 = vmatmul.bf16.gmra.mxu0 %v1557
        %v1571 = vpop.f32.mrf.mxu0
        %v1572 = vadd.f32 0.0, %v1571
        %v1573 = vpop.f32.mrf.mxu0
        %1574 = vdwg.mxu0
        %v1575 = vadd.f32 %v1534, %v1572
        %v1576 = vmul.f32 %v1575, %v754
        %v1577 = vadd.f32 %v1576, %v758
        %v1578 = vmax.f32 %v1577, 0.0
        %s1579 = scalar_lea.vmem %s297, 16 [#allocation2]
        %1580 = vst [vmem:[%s1579] sm:$0xff] %v1578
        %v1581 = vld [vmem:[%s1031] sm:$0xf]
        %v1582 = vld [vmem:[%s1031 + $0x4] sm:$0x1]
        %v1583 = vld [vmem:[%s2] sm:$0xf]
        %v1584 = vld [vmem:[%s2 + $0x4] sm:$0xf]
        %v1585 = vld [vmem:[%s2 + $0x8] sm:$0xf]
        %v1586 = vld [vmem:[%s2 + $0xc] sm:$0xf]
        %v1587 = vld [vmem:[%s2 + $0x10] sm:$0xf]
        %v1588 = vld [vmem:[%s345] sm:$0xf]
        %v1589 = vld [vmem:[%s345 + $0x4] sm:$0xf]
        %v1590 = vld [vmem:[%s345 + $0x8] sm:$0xf]
        %v1591 = vld [vmem:[%s345 + $0xc] sm:$0xf]
        %v1592 = vld [vmem:[%s345 + $0x10] sm:$0xf]
        %v1595 = vunpack.c.l.b16 %v1581
        %v1596 = vunpack.c.l.b16 %v1582
        %v1597 = vpack.c.b16 %v1596, %v1595
        %v1599 = vshrl.u32 %v1597, 16
        %v1601 = vshll.u32 %v1597, 16
        %v1603 = vrot.slane %v1601, 1
        %v1604 = vor.u32 %v1599, %v1603
        %v1610 = vunpack.c.l.b16 %v1588
        %v1611 = vunpack.c.l.b16 %v1589
        %v1612 = vunpack.c.l.b16 %v1590
        %v1613 = vunpack.c.l.b16 %v1591
        %v1614 = vunpack.c.l.b16 %v1592
        %v1615 = vpack.c.b16 %v1611, %v1610
        %v1616 = vpack.c.b16 %v1613, %v1612
        %v1617 = vpack.c.b16 %v1614, %v1614
        %v1621 = vsel %vm378, %v1604, 0
        %v1624 = vsel %vm382, %v1617, 0
        %1626 = vmatpush.bf16.msra.mxu0 0
        %1627 = vmatpush.bf16.msra.mxu0 0
        %1628 = vmatpush.bf16.msra.mxu0 0
        %1629 = vmatpush.bf16.msra.mxu0 0
        %1630 = vmatpush.bf16.msra.mxu0 0
        %1631 = vmatpush.bf16.msra.mxu0 %v1624
        %1632 = vmatpush.bf16.msra.mxu0 %v1616
        %1633 = vmatpush.bf16.msra.mxu0 %v1615
        %1634 = vmatmul.bf16.gmra.mxu0 %v1621
        %v1635 = vpop.f32.mrf.mxu0
        %v1636 = vadd.f32 0.0, %v1635
        %v1637 = vpop.f32.mrf.mxu0
        %1638 = vdwg.mxu0
        %v1644 = vunpack.c.l.b16 %v1583
        %v1645 = vunpack.c.l.b16 %v1584
        %v1646 = vunpack.c.l.b16 %v1585
        %v1647 = vunpack.c.l.b16 %v1586
        %v1648 = vunpack.c.l.b16 %v1587
        %v1649 = vpack.c.b16 %v1645, %v1644
        %v1650 = vpack.c.b16 %v1647, %v1646
        %v1651 = vpack.c.b16 %v1648, %v1648
        %v1655 = vsel %vm378, %v1581, 0
        %v1658 = vsel %vm382, %v1651, 0
        %1660 = vmatpush.bf16.msra.mxu0 0
        %1661 = vmatpush.bf16.msra.mxu0 0
        %1662 = vmatpush.bf16.msra.mxu0 0
        %1663 = vmatpush.bf16.msra.mxu0 0
        %1664 = vmatpush.bf16.msra.mxu0 0
        %1665 = vmatpush.bf16.msra.mxu0 %v1658
        %1666 = vmatpush.bf16.msra.mxu0 %v1650
        %1667 = vmatpush.bf16.msra.mxu0 %v1649
        %1668 = vmatmul.bf16.gmra.mxu0 %v1655
        %v1669 = vpop.f32.mrf.mxu0
        %v1670 = vadd.f32 %v1636, %v1669
        %v1671 = vpop.f32.mrf.mxu0
        %1672 = vdwg.mxu0
        %v1673 = vld [vmem:[%s433] sm:$0xf]
        %v1674 = vld [vmem:[%s433 + $0x4] sm:$0xf]
        %v1675 = vld [vmem:[%s433 + $0x8] sm:$0xf]
        %v1676 = vld [vmem:[%s433 + $0xc] sm:$0xf]
        %v1677 = vld [vmem:[%s433 + $0x10] sm:$0xf]
        %v1678 = vrot.slane %v1597, 1
        %v1684 = vunpack.c.l.b16 %v1673
        %v1685 = vunpack.c.l.b16 %v1674
        %v1686 = vunpack.c.l.b16 %v1675
        %v1687 = vunpack.c.l.b16 %v1676
        %v1688 = vunpack.c.l.b16 %v1677
        %v1689 = vpack.c.b16 %v1685, %v1684
        %v1690 = vpack.c.b16 %v1687, %v1686
        %v1691 = vpack.c.b16 %v1688, %v1688
        %v1695 = vsel %vm378, %v1678, 0
        %v1698 = vsel %vm382, %v1691, 0
        %1700 = vmatpush.bf16.msra.mxu0 0
        %1701 = vmatpush.bf16.msra.mxu0 0
        %1702 = vmatpush.bf16.msra.mxu0 0
        %1703 = vmatpush.bf16.msra.mxu0 0
        %1704 = vmatpush.bf16.msra.mxu0 0
        %1705 = vmatpush.bf16.msra.mxu0 %v1698
        %1706 = vmatpush.bf16.msra.mxu0 %v1690
        %1707 = vmatpush.bf16.msra.mxu0 %v1689
        %1708 = vmatmul.bf16.gmra.mxu0 %v1695
        %v1709 = vpop.f32.mrf.mxu0
        %v1710 = vadd.f32 0.0, %v1709
        %v1711 = vpop.f32.mrf.mxu0
        %1712 = vdwg.mxu0
        %v1713 = vadd.f32 %v1670, %v1710
        %v1714 = vld [vmem:[%s1440] sm:$0xf]
        %v1715 = vld [vmem:[%s1440 + $0x4] sm:$0x1]
        %v1716 = vld [vmem:[%s478] sm:$0xf]
        %v1717 = vld [vmem:[%s478 + $0x4] sm:$0xf]
        %v1718 = vld [vmem:[%s478 + $0x8] sm:$0xf]
        %v1719 = vld [vmem:[%s478 + $0xc] sm:$0xf]
        %v1720 = vld [vmem:[%s478 + $0x10] sm:$0xf]
        %v1726 = vunpack.c.l.b16 %v1716
        %v1727 = vunpack.c.l.b16 %v1717
        %v1728 = vunpack.c.l.b16 %v1718
        %v1729 = vunpack.c.l.b16 %v1719
        %v1730 = vunpack.c.l.b16 %v1720
        %v1731 = vpack.c.b16 %v1727, %v1726
        %v1732 = vpack.c.b16 %v1729, %v1728
        %v1733 = vpack.c.b16 %v1730, %v1730
        %v1737 = vsel %vm378, %v1714, 0
        %v1740 = vsel %vm382, %v1733, 0
        %1742 = vmatpush.bf16.msra.mxu0 0
        %1743 = vmatpush.bf16.msra.mxu0 0
        %1744 = vmatpush.bf16.msra.mxu0 0
        %1745 = vmatpush.bf16.msra.mxu0 0
        %1746 = vmatpush.bf16.msra.mxu0 0
        %1747 = vmatpush.bf16.msra.mxu0 %v1740
        %1748 = vmatpush.bf16.msra.mxu0 %v1732
        %1749 = vmatpush.bf16.msra.mxu0 %v1731
        %1750 = vmatmul.bf16.gmra.mxu0 %v1737
        %v1751 = vpop.f32.mrf.mxu0
        %v1752 = vadd.f32 0.0, %v1751
        %v1753 = vpop.f32.mrf.mxu0
        %1754 = vdwg.mxu0
        %v1755 = vadd.f32 %v1713, %v1752
        %v1756 = vld [vmem:[%s519] sm:$0xf]
        %v1757 = vld [vmem:[%s519 + $0x4] sm:$0xf]
        %v1758 = vld [vmem:[%s519 + $0x8] sm:$0xf]
        %v1759 = vld [vmem:[%s519 + $0xc] sm:$0xf]
        %v1760 = vld [vmem:[%s519 + $0x10] sm:$0xf]
        %v1763 = vunpack.c.l.b16 %v1714
        %v1764 = vunpack.c.l.b16 %v1715
        %v1765 = vpack.c.b16 %v1764, %v1763
        %v1767 = vshrl.u32 %v1765, 16
        %v1769 = vshll.u32 %v1765, 16
        %v1771 = vrot.slane %v1769, 1
        %v1772 = vor.u32 %v1767, %v1771
        %v1778 = vunpack.c.l.b16 %v1756
        %v1779 = vunpack.c.l.b16 %v1757
        %v1780 = vunpack.c.l.b16 %v1758
        %v1781 = vunpack.c.l.b16 %v1759
        %v1782 = vunpack.c.l.b16 %v1760
        %v1783 = vpack.c.b16 %v1779, %v1778
        %v1784 = vpack.c.b16 %v1781, %v1780
        %v1785 = vpack.c.b16 %v1782, %v1782
        %v1789 = vsel %vm378, %v1772, 0
        %v1792 = vsel %vm382, %v1785, 0
        %1794 = vmatpush.bf16.msra.mxu0 0
        %1795 = vmatpush.bf16.msra.mxu0 0
        %1796 = vmatpush.bf16.msra.mxu0 0
        %1797 = vmatpush.bf16.msra.mxu0 0
        %1798 = vmatpush.bf16.msra.mxu0 0
        %1799 = vmatpush.bf16.msra.mxu0 %v1792
        %1800 = vmatpush.bf16.msra.mxu0 %v1784
        %1801 = vmatpush.bf16.msra.mxu0 %v1783
        %1802 = vmatmul.bf16.gmra.mxu0 %v1789
        %v1803 = vpop.f32.mrf.mxu0
        %v1804 = vadd.f32 0.0, %v1803
        %v1805 = vpop.f32.mrf.mxu0
        %1806 = vdwg.mxu0
        %v1807 = vadd.f32 %v1755, %v1804
        %v1808 = vld [vmem:[%s572] sm:$0xf]
        %v1809 = vld [vmem:[%s572 + $0x4] sm:$0xf]
        %v1810 = vld [vmem:[%s572 + $0x8] sm:$0xf]
        %v1811 = vld [vmem:[%s572 + $0xc] sm:$0xf]
        %v1812 = vld [vmem:[%s572 + $0x10] sm:$0xf]
        %v1813 = vrot.slane %v1765, 1
        %v1819 = vunpack.c.l.b16 %v1808
        %v1820 = vunpack.c.l.b16 %v1809
        %v1821 = vunpack.c.l.b16 %v1810
        %v1822 = vunpack.c.l.b16 %v1811
        %v1823 = vunpack.c.l.b16 %v1812
        %v1824 = vpack.c.b16 %v1820, %v1819
        %v1825 = vpack.c.b16 %v1822, %v1821
        %v1826 = vpack.c.b16 %v1823, %v1823
        %v1830 = vsel %vm378, %v1813, 0
        %v1833 = vsel %vm382, %v1826, 0
        %1835 = vmatpush.bf16.msra.mxu0 0
        %1836 = vmatpush.bf16.msra.mxu0 0
        %1837 = vmatpush.bf16.msra.mxu0 0
        %1838 = vmatpush.bf16.msra.mxu0 0
        %1839 = vmatpush.bf16.msra.mxu0 0
        %1840 = vmatpush.bf16.msra.mxu0 %v1833
        %1841 = vmatpush.bf16.msra.mxu0 %v1825
        %1842 = vmatpush.bf16.msra.mxu0 %v1824
        %1843 = vmatmul.bf16.gmra.mxu0 %v1830
        %v1844 = vpop.f32.mrf.mxu0
        %v1845 = vadd.f32 0.0, %v1844
        %v1846 = vpop.f32.mrf.mxu0
        %1847 = vdwg.mxu0
        %v1848 = vadd.f32 %v1807, %v1845
        %s1849 = scalar_lea.vmem %s312, 40
        %v1850 = vld [vmem:[%s1849] sm:$0xf]
        %v1851 = vld [vmem:[%s1849 + $0x4] sm:$0x1]
        %v1852 = vld [vmem:[%s617] sm:$0xf]
        %v1853 = vld [vmem:[%s617 + $0x4] sm:$0xf]
        %v1854 = vld [vmem:[%s617 + $0x8] sm:$0xf]
        %v1855 = vld [vmem:[%s617 + $0xc] sm:$0xf]
        %v1856 = vld [vmem:[%s617 + $0x10] sm:$0xf]
        %v1862 = vunpack.c.l.b16 %v1852
        %v1863 = vunpack.c.l.b16 %v1853
        %v1864 = vunpack.c.l.b16 %v1854
        %v1865 = vunpack.c.l.b16 %v1855
        %v1866 = vunpack.c.l.b16 %v1856
        %v1867 = vpack.c.b16 %v1863, %v1862
        %v1868 = vpack.c.b16 %v1865, %v1864
        %v1869 = vpack.c.b16 %v1866, %v1866
        %v1873 = vsel %vm378, %v1850, 0
        %v1876 = vsel %vm382, %v1869, 0
        %1878 = vmatpush.bf16.msra.mxu0 0
        %1879 = vmatpush.bf16.msra.mxu0 0
        %1880 = vmatpush.bf16.msra.mxu0 0
        %1881 = vmatpush.bf16.msra.mxu0 0
        %1882 = vmatpush.bf16.msra.mxu0 0
        %1883 = vmatpush.bf16.msra.mxu0 %v1876
        %1884 = vmatpush.bf16.msra.mxu0 %v1868
        %1885 = vmatpush.bf16.msra.mxu0 %v1867
        %1886 = vmatmul.bf16.gmra.mxu0 %v1873
        %v1887 = vpop.f32.mrf.mxu0
        %v1888 = vadd.f32 0.0, %v1887
        %v1889 = vpop.f32.mrf.mxu0
        %1890 = vdwg.mxu0
        %v1891 = vadd.f32 %v1848, %v1888
        %v1892 = vld [vmem:[%s658] sm:$0xf]
        %v1893 = vld [vmem:[%s658 + $0x4] sm:$0xf]
        %v1894 = vld [vmem:[%s658 + $0x8] sm:$0xf]
        %v1895 = vld [vmem:[%s658 + $0xc] sm:$0xf]
        %v1896 = vld [vmem:[%s658 + $0x10] sm:$0xf]
        %v1899 = vunpack.c.l.b16 %v1850
        %v1900 = vunpack.c.l.b16 %v1851
        %v1901 = vpack.c.b16 %v1900, %v1899
        %v1903 = vshrl.u32 %v1901, 16
        %v1905 = vshll.u32 %v1901, 16
        %v1907 = vrot.slane %v1905, 1
        %v1908 = vor.u32 %v1903, %v1907
        %v1914 = vunpack.c.l.b16 %v1892
        %v1915 = vunpack.c.l.b16 %v1893
        %v1916 = vunpack.c.l.b16 %v1894
        %v1917 = vunpack.c.l.b16 %v1895
        %v1918 = vunpack.c.l.b16 %v1896
        %v1919 = vpack.c.b16 %v1915, %v1914
        %v1920 = vpack.c.b16 %v1917, %v1916
        %v1921 = vpack.c.b16 %v1918, %v1918
        %v1925 = vsel %vm378, %v1908, 0
        %v1928 = vsel %vm382, %v1921, 0
        %1930 = vmatpush.bf16.msra.mxu0 0
        %1931 = vmatpush.bf16.msra.mxu0 0
        %1932 = vmatpush.bf16.msra.mxu0 0
        %1933 = vmatpush.bf16.msra.mxu0 0
        %1934 = vmatpush.bf16.msra.mxu0 0
        %1935 = vmatpush.bf16.msra.mxu0 %v1928
        %1936 = vmatpush.bf16.msra.mxu0 %v1920
        %1937 = vmatpush.bf16.msra.mxu0 %v1919
        %1938 = vmatmul.bf16.gmra.mxu0 %v1925
        %v1939 = vpop.f32.mrf.mxu0
        %v1940 = vadd.f32 0.0, %v1939
        %v1941 = vpop.f32.mrf.mxu0
        %1942 = vdwg.mxu0
        %v1943 = vadd.f32 %v1891, %v1940
        %v1944 = vld [vmem:[%s711] sm:$0xf]
        %v1945 = vld [vmem:[%s711 + $0x4] sm:$0xf]
        %v1946 = vld [vmem:[%s711 + $0x8] sm:$0xf]
        %v1947 = vld [vmem:[%s711 + $0xc] sm:$0xf]
        %v1948 = vld [vmem:[%s711 + $0x10] sm:$0xf]
        %v1949 = vrot.slane %v1901, 1
        %v1955 = vunpack.c.l.b16 %v1944
        %v1956 = vunpack.c.l.b16 %v1945
        %v1957 = vunpack.c.l.b16 %v1946
        %v1958 = vunpack.c.l.b16 %v1947
        %v1959 = vunpack.c.l.b16 %v1948
        %v1960 = vpack.c.b16 %v1956, %v1955
        %v1961 = vpack.c.b16 %v1958, %v1957
        %v1962 = vpack.c.b16 %v1959, %v1959
        %v1966 = vsel %vm378, %v1949, 0
        %v1969 = vsel %vm382, %v1962, 0
        %1971 = vmatpush.bf16.msra.mxu0 0
        %1972 = vmatpush.bf16.msra.mxu0 0
        %1973 = vmatpush.bf16.msra.mxu0 0
        %1974 = vmatpush.bf16.msra.mxu0 0
        %1975 = vmatpush.bf16.msra.mxu0 0
        %1976 = vmatpush.bf16.msra.mxu0 %v1969
        %1977 = vmatpush.bf16.msra.mxu0 %v1961
        %1978 = vmatpush.bf16.msra.mxu0 %v1960
        %1979 = vmatmul.bf16.gmra.mxu0 %v1966
        %v1980 = vpop.f32.mrf.mxu0
        %v1981 = vadd.f32 0.0, %v1980
        %v1982 = vpop.f32.mrf.mxu0
        %1983 = vdwg.mxu0
        %v1984 = vadd.f32 %v1943, %v1981
        %v1985 = vmul.f32 %v1984, %v754
        %v1986 = vadd.f32 %v1985, %v758
        %v1987 = vmax.f32 %v1986, 0.0
        %s1988 = scalar_lea.vmem %s297, 24 [#allocation2]
        %1989 = vst [vmem:[%s1988] sm:$0xff] %v1987
        %v1990 = vld [vmem:[%s1440] sm:$0xf]
        %v1991 = vld [vmem:[%s1440 + $0x4] sm:$0x1]
        %v1992 = vld [vmem:[%s2] sm:$0xf]
        %v1993 = vld [vmem:[%s2 + $0x4] sm:$0xf]
        %v1994 = vld [vmem:[%s2 + $0x8] sm:$0xf]
        %v1995 = vld [vmem:[%s2 + $0xc] sm:$0xf]
        %v1996 = vld [vmem:[%s2 + $0x10] sm:$0xf]
        %v1997 = vld [vmem:[%s345] sm:$0xf]
        %v1998 = vld [vmem:[%s345 + $0x4] sm:$0xf]
        %v1999 = vld [vmem:[%s345 + $0x8] sm:$0xf]
        %v2000 = vld [vmem:[%s345 + $0xc] sm:$0xf]
        %v2001 = vld [vmem:[%s345 + $0x10] sm:$0xf]
        %v2004 = vunpack.c.l.b16 %v1990
        %v2005 = vunpack.c.l.b16 %v1991
        %v2006 = vpack.c.b16 %v2005, %v2004
        %v2008 = vshrl.u32 %v2006, 16
        %v2010 = vshll.u32 %v2006, 16
        %v2012 = vrot.slane %v2010, 1
        %v2013 = vor.u32 %v2008, %v2012
        %v2019 = vunpack.c.l.b16 %v1997
        %v2020 = vunpack.c.l.b16 %v1998
        %v2021 = vunpack.c.l.b16 %v1999
        %v2022 = vunpack.c.l.b16 %v2000
        %v2023 = vunpack.c.l.b16 %v2001
        %v2024 = vpack.c.b16 %v2020, %v2019
        %v2025 = vpack.c.b16 %v2022, %v2021
        %v2026 = vpack.c.b16 %v2023, %v2023
        %v2030 = vsel %vm378, %v2013, 0
        %v2033 = vsel %vm382, %v2026, 0
        %2035 = vmatpush.bf16.msra.mxu0 0
        %2036 = vmatpush.bf16.msra.mxu0 0
        %2037 = vmatpush.bf16.msra.mxu0 0
        %2038 = vmatpush.bf16.msra.mxu0 0
        %2039 = vmatpush.bf16.msra.mxu0 0
        %2040 = vmatpush.bf16.msra.mxu0 %v2033
        %2041 = vmatpush.bf16.msra.mxu0 %v2025
        %2042 = vmatpush.bf16.msra.mxu0 %v2024
        %2043 = vmatmul.bf16.gmra.mxu0 %v2030
        %v2044 = vpop.f32.mrf.mxu0
        %v2045 = vadd.f32 0.0, %v2044
        %v2046 = vpop.f32.mrf.mxu0
        %2047 = vdwg.mxu0
        %v2053 = vunpack.c.l.b16 %v1992
        %v2054 = vunpack.c.l.b16 %v1993
        %v2055 = vunpack.c.l.b16 %v1994
        %v2056 = vunpack.c.l.b16 %v1995
        %v2057 = vunpack.c.l.b16 %v1996
        %v2058 = vpack.c.b16 %v2054, %v2053
        %v2059 = vpack.c.b16 %v2056, %v2055
        %v2060 = vpack.c.b16 %v2057, %v2057
        %v2064 = vsel %vm378, %v1990, 0
        %v2067 = vsel %vm382, %v2060, 0
        %2069 = vmatpush.bf16.msra.mxu0 0
        %2070 = vmatpush.bf16.msra.mxu0 0
        %2071 = vmatpush.bf16.msra.mxu0 0
        %2072 = vmatpush.bf16.msra.mxu0 0
        %2073 = vmatpush.bf16.msra.mxu0 0
        %2074 = vmatpush.bf16.msra.mxu0 %v2067
        %2075 = vmatpush.bf16.msra.mxu0 %v2059
        %2076 = vmatpush.bf16.msra.mxu0 %v2058
        %2077 = vmatmul.bf16.gmra.mxu0 %v2064
        %v2078 = vpop.f32.mrf.mxu0
        %v2079 = vadd.f32 %v2045, %v2078
        %v2080 = vpop.f32.mrf.mxu0
        %2081 = vdwg.mxu0
        %v2082 = vld [vmem:[%s433] sm:$0xf]
        %v2083 = vld [vmem:[%s433 + $0x4] sm:$0xf]
        %v2084 = vld [vmem:[%s433 + $0x8] sm:$0xf]
        %v2085 = vld [vmem:[%s433 + $0xc] sm:$0xf]
        %v2086 = vld [vmem:[%s433 + $0x10] sm:$0xf]
        %v2087 = vrot.slane %v2006, 1
        %v2093 = vunpack.c.l.b16 %v2082
        %v2094 = vunpack.c.l.b16 %v2083
        %v2095 = vunpack.c.l.b16 %v2084
        %v2096 = vunpack.c.l.b16 %v2085
        %v2097 = vunpack.c.l.b16 %v2086
        %v2098 = vpack.c.b16 %v2094, %v2093
        %v2099 = vpack.c.b16 %v2096, %v2095
        %v2100 = vpack.c.b16 %v2097, %v2097
        %v2104 = vsel %vm378, %v2087, 0
        %v2107 = vsel %vm382, %v2100, 0
        %2109 = vmatpush.bf16.msra.mxu0 0
        %2110 = vmatpush.bf16.msra.mxu0 0
        %2111 = vmatpush.bf16.msra.mxu0 0
        %2112 = vmatpush.bf16.msra.mxu0 0
        %2113 = vmatpush.bf16.msra.mxu0 0
        %2114 = vmatpush.bf16.msra.mxu0 %v2107
        %2115 = vmatpush.bf16.msra.mxu0 %v2099
        %2116 = vmatpush.bf16.msra.mxu0 %v2098
        %2117 = vmatmul.bf16.gmra.mxu0 %v2104
        %v2118 = vpop.f32.mrf.mxu0
        %v2119 = vadd.f32 0.0, %v2118
        %v2120 = vpop.f32.mrf.mxu0
        %2121 = vdwg.mxu0
        %v2122 = vadd.f32 %v2079, %v2119
        %v2123 = vld [vmem:[%s1849] sm:$0xf]
        %v2124 = vld [vmem:[%s1849 + $0x4] sm:$0x1]
        %v2125 = vld [vmem:[%s478] sm:$0xf]
        %v2126 = vld [vmem:[%s478 + $0x4] sm:$0xf]
        %v2127 = vld [vmem:[%s478 + $0x8] sm:$0xf]
        %v2128 = vld [vmem:[%s478 + $0xc] sm:$0xf]
        %v2129 = vld [vmem:[%s478 + $0x10] sm:$0xf]
        %v2135 = vunpack.c.l.b16 %v2125
        %v2136 = vunpack.c.l.b16 %v2126
        %v2137 = vunpack.c.l.b16 %v2127
        %v2138 = vunpack.c.l.b16 %v2128
        %v2139 = vunpack.c.l.b16 %v2129
        %v2140 = vpack.c.b16 %v2136, %v2135
        %v2141 = vpack.c.b16 %v2138, %v2137
        %v2142 = vpack.c.b16 %v2139, %v2139
        %v2146 = vsel %vm378, %v2123, 0
        %v2149 = vsel %vm382, %v2142, 0
        %2151 = vmatpush.bf16.msra.mxu0 0
        %2152 = vmatpush.bf16.msra.mxu0 0
        %2153 = vmatpush.bf16.msra.mxu0 0
        %2154 = vmatpush.bf16.msra.mxu0 0
        %2155 = vmatpush.bf16.msra.mxu0 0
        %2156 = vmatpush.bf16.msra.mxu0 %v2149
        %2157 = vmatpush.bf16.msra.mxu0 %v2141
        %2158 = vmatpush.bf16.msra.mxu0 %v2140
        %2159 = vmatmul.bf16.gmra.mxu0 %v2146
        %v2160 = vpop.f32.mrf.mxu0
        %v2161 = vadd.f32 0.0, %v2160
        %v2162 = vpop.f32.mrf.mxu0
        %2163 = vdwg.mxu0
        %v2164 = vadd.f32 %v2122, %v2161
        %v2165 = vld [vmem:[%s519] sm:$0xf]
        %v2166 = vld [vmem:[%s519 + $0x4] sm:$0xf]
        %v2167 = vld [vmem:[%s519 + $0x8] sm:$0xf]
        %v2168 = vld [vmem:[%s519 + $0xc] sm:$0xf]
        %v2169 = vld [vmem:[%s519 + $0x10] sm:$0xf]
        %v2172 = vunpack.c.l.b16 %v2123
        %v2173 = vunpack.c.l.b16 %v2124
        %v2174 = vpack.c.b16 %v2173, %v2172
        %v2176 = vshrl.u32 %v2174, 16
        %v2178 = vshll.u32 %v2174, 16
        %v2180 = vrot.slane %v2178, 1
        %v2181 = vor.u32 %v2176, %v2180
        %v2187 = vunpack.c.l.b16 %v2165
        %v2188 = vunpack.c.l.b16 %v2166
        %v2189 = vunpack.c.l.b16 %v2167
        %v2190 = vunpack.c.l.b16 %v2168
        %v2191 = vunpack.c.l.b16 %v2169
        %v2192 = vpack.c.b16 %v2188, %v2187
        %v2193 = vpack.c.b16 %v2190, %v2189
        %v2194 = vpack.c.b16 %v2191, %v2191
        %v2198 = vsel %vm378, %v2181, 0
        %v2201 = vsel %vm382, %v2194, 0
        %2203 = vmatpush.bf16.msra.mxu0 0
        %2204 = vmatpush.bf16.msra.mxu0 0
        %2205 = vmatpush.bf16.msra.mxu0 0
        %2206 = vmatpush.bf16.msra.mxu0 0
        %2207 = vmatpush.bf16.msra.mxu0 0
        %2208 = vmatpush.bf16.msra.mxu0 %v2201
        %2209 = vmatpush.bf16.msra.mxu0 %v2193
        %2210 = vmatpush.bf16.msra.mxu0 %v2192
        %2211 = vmatmul.bf16.gmra.mxu0 %v2198
        %v2212 = vpop.f32.mrf.mxu0
        %v2213 = vadd.f32 0.0, %v2212
        %v2214 = vpop.f32.mrf.mxu0
        %2215 = vdwg.mxu0
        %v2216 = vadd.f32 %v2164, %v2213
        %v2217 = vld [vmem:[%s572] sm:$0xf]
        %v2218 = vld [vmem:[%s572 + $0x4] sm:$0xf]
        %v2219 = vld [vmem:[%s572 + $0x8] sm:$0xf]
        %v2220 = vld [vmem:[%s572 + $0xc] sm:$0xf]
        %v2221 = vld [vmem:[%s572 + $0x10] sm:$0xf]
        %v2222 = vrot.slane %v2174, 1
        %v2228 = vunpack.c.l.b16 %v2217
        %v2229 = vunpack.c.l.b16 %v2218
        %v2230 = vunpack.c.l.b16 %v2219
        %v2231 = vunpack.c.l.b16 %v2220
        %v2232 = vunpack.c.l.b16 %v2221
        %v2233 = vpack.c.b16 %v2229, %v2228
        %v2234 = vpack.c.b16 %v2231, %v2230
        %v2235 = vpack.c.b16 %v2232, %v2232
        %v2239 = vsel %vm378, %v2222, 0
        %v2242 = vsel %vm382, %v2235, 0
        %2244 = vmatpush.bf16.msra.mxu0 0
        %2245 = vmatpush.bf16.msra.mxu0 0
        %2246 = vmatpush.bf16.msra.mxu0 0
        %2247 = vmatpush.bf16.msra.mxu0 0
        %2248 = vmatpush.bf16.msra.mxu0 0
        %2249 = vmatpush.bf16.msra.mxu0 %v2242
        %2250 = vmatpush.bf16.msra.mxu0 %v2234
        %2251 = vmatpush.bf16.msra.mxu0 %v2233
        %2252 = vmatmul.bf16.gmra.mxu0 %v2239
        %v2253 = vpop.f32.mrf.mxu0
        %v2254 = vadd.f32 0.0, %v2253
        %v2255 = vpop.f32.mrf.mxu0
        %2256 = vdwg.mxu0
        %v2257 = vadd.f32 %v2216, %v2254
        %s2258 = scalar_lea.vmem %s312, 48
        %v2259 = vld [vmem:[%s2258] sm:$0xf]
        %v2260 = vld [vmem:[%s2258 + $0x4] sm:$0x1]
        %v2261 = vld [vmem:[%s617] sm:$0xf]
        %v2262 = vld [vmem:[%s617 + $0x4] sm:$0xf]
        %v2263 = vld [vmem:[%s617 + $0x8] sm:$0xf]
        %v2264 = vld [vmem:[%s617 + $0xc] sm:$0xf]
        %v2265 = vld [vmem:[%s617 + $0x10] sm:$0xf]
        %v2271 = vunpack.c.l.b16 %v2261
        %v2272 = vunpack.c.l.b16 %v2262
        %v2273 = vunpack.c.l.b16 %v2263
        %v2274 = vunpack.c.l.b16 %v2264
        %v2275 = vunpack.c.l.b16 %v2265
        %v2276 = vpack.c.b16 %v2272, %v2271
        %v2277 = vpack.c.b16 %v2274, %v2273
        %v2278 = vpack.c.b16 %v2275, %v2275
        %v2282 = vsel %vm378, %v2259, 0
        %v2285 = vsel %vm382, %v2278, 0
        %2287 = vmatpush.bf16.msra.mxu0 0
        %2288 = vmatpush.bf16.msra.mxu0 0
        %2289 = vmatpush.bf16.msra.mxu0 0
        %2290 = vmatpush.bf16.msra.mxu0 0
        %2291 = vmatpush.bf16.msra.mxu0 0
        %2292 = vmatpush.bf16.msra.mxu0 %v2285
        %2293 = vmatpush.bf16.msra.mxu0 %v2277
        %2294 = vmatpush.bf16.msra.mxu0 %v2276
        %2295 = vmatmul.bf16.gmra.mxu0 %v2282
        %v2296 = vpop.f32.mrf.mxu0
        %v2297 = vadd.f32 0.0, %v2296
        %v2298 = vpop.f32.mrf.mxu0
        %2299 = vdwg.mxu0
        %v2300 = vadd.f32 %v2257, %v2297
        %v2301 = vld [vmem:[%s658] sm:$0xf]
        %v2302 = vld [vmem:[%s658 + $0x4] sm:$0xf]
        %v2303 = vld [vmem:[%s658 + $0x8] sm:$0xf]
        %v2304 = vld [vmem:[%s658 + $0xc] sm:$0xf]
        %v2305 = vld [vmem:[%s658 + $0x10] sm:$0xf]
        %v2308 = vunpack.c.l.b16 %v2259
        %v2309 = vunpack.c.l.b16 %v2260
        %v2310 = vpack.c.b16 %v2309, %v2308
        %v2312 = vshrl.u32 %v2310, 16
        %v2314 = vshll.u32 %v2310, 16
        %v2316 = vrot.slane %v2314, 1
        %v2317 = vor.u32 %v2312, %v2316
        %v2323 = vunpack.c.l.b16 %v2301
        %v2324 = vunpack.c.l.b16 %v2302
        %v2325 = vunpack.c.l.b16 %v2303
        %v2326 = vunpack.c.l.b16 %v2304
        %v2327 = vunpack.c.l.b16 %v2305
        %v2328 = vpack.c.b16 %v2324, %v2323
        %v2329 = vpack.c.b16 %v2326, %v2325
        %v2330 = vpack.c.b16 %v2327, %v2327
        %v2334 = vsel %vm378, %v2317, 0
        %v2337 = vsel %vm382, %v2330, 0
        %2339 = vmatpush.bf16.msra.mxu0 0
        %2340 = vmatpush.bf16.msra.mxu0 0
        %2341 = vmatpush.bf16.msra.mxu0 0
        %2342 = vmatpush.bf16.msra.mxu0 0
        %2343 = vmatpush.bf16.msra.mxu0 0
        %2344 = vmatpush.bf16.msra.mxu0 %v2337
        %2345 = vmatpush.bf16.msra.mxu0 %v2329
        %2346 = vmatpush.bf16.msra.mxu0 %v2328
        %2347 = vmatmul.bf16.gmra.mxu0 %v2334
        %v2348 = vpop.f32.mrf.mxu0
        %v2349 = vadd.f32 0.0, %v2348
        %v2350 = vpop.f32.mrf.mxu0
        %2351 = vdwg.mxu0
        %v2352 = vadd.f32 %v2300, %v2349
        %v2353 = vld [vmem:[%s711] sm:$0xf]
        %v2354 = vld [vmem:[%s711 + $0x4] sm:$0xf]
        %v2355 = vld [vmem:[%s711 + $0x8] sm:$0xf]
        %v2356 = vld [vmem:[%s711 + $0xc] sm:$0xf]
        %v2357 = vld [vmem:[%s711 + $0x10] sm:$0xf]
        %v2358 = vrot.slane %v2310, 1
        %v2364 = vunpack.c.l.b16 %v2353
        %v2365 = vunpack.c.l.b16 %v2354
        %v2366 = vunpack.c.l.b16 %v2355
        %v2367 = vunpack.c.l.b16 %v2356
        %v2368 = vunpack.c.l.b16 %v2357
        %v2369 = vpack.c.b16 %v2365, %v2364
        %v2370 = vpack.c.b16 %v2367, %v2366
        %v2371 = vpack.c.b16 %v2368, %v2368
        %v2375 = vsel %vm378, %v2358, 0
        %v2378 = vsel %vm382, %v2371, 0
        %2380 = vmatpush.bf16.msra.mxu0 0
        %2381 = vmatpush.bf16.msra.mxu0 0
        %2382 = vmatpush.bf16.msra.mxu0 0
        %2383 = vmatpush.bf16.msra.mxu0 0
        %2384 = vmatpush.bf16.msra.mxu0 0
        %2385 = vmatpush.bf16.msra.mxu0 %v2378
        %2386 = vmatpush.bf16.msra.mxu0 %v2370
        %2387 = vmatpush.bf16.msra.mxu0 %v2369
        %2388 = vmatmul.bf16.gmra.mxu0 %v2375
        %v2389 = vpop.f32.mrf.mxu0
        %v2390 = vadd.f32 0.0, %v2389
        %v2391 = vpop.f32.mrf.mxu0
        %2392 = vdwg.mxu0
        %v2393 = vadd.f32 %v2352, %v2390
        %v2394 = vmul.f32 %v2393, %v754
        %v2395 = vadd.f32 %v2394, %v758
        %v2396 = vmax.f32 %v2395, 0.0
        %s2397 = scalar_lea.vmem %s297, 32 [#allocation2]
        %2398 = vst [vmem:[%s2397] sm:$0xff] %v2396
        %v2399 = vld [vmem:[%s1849] sm:$0xf]
        %v2400 = vld [vmem:[%s1849 + $0x4] sm:$0x1]
        %v2401 = vld [vmem:[%s2] sm:$0xf]
        %v2402 = vld [vmem:[%s2 + $0x4] sm:$0xf]
        %v2403 = vld [vmem:[%s2 + $0x8] sm:$0xf]
        %v2404 = vld [vmem:[%s2 + $0xc] sm:$0xf]
        %v2405 = vld [vmem:[%s2 + $0x10] sm:$0xf]
        %v2406 = vld [vmem:[%s345] sm:$0xf]
        %v2407 = vld [vmem:[%s345 + $0x4] sm:$0xf]
        %v2408 = vld [vmem:[%s345 + $0x8] sm:$0xf]
        %v2409 = vld [vmem:[%s345 + $0xc] sm:$0xf]
        %v2410 = vld [vmem:[%s345 + $0x10] sm:$0xf]
        %v2413 = vunpack.c.l.b16 %v2399
        %v2414 = vunpack.c.l.b16 %v2400
        %v2415 = vpack.c.b16 %v2414, %v2413
        %v2417 = vshrl.u32 %v2415, 16
        %v2419 = vshll.u32 %v2415, 16
        %v2421 = vrot.slane %v2419, 1
        %v2422 = vor.u32 %v2417, %v2421
        %v2428 = vunpack.c.l.b16 %v2406
        %v2429 = vunpack.c.l.b16 %v2407
        %v2430 = vunpack.c.l.b16 %v2408
        %v2431 = vunpack.c.l.b16 %v2409
        %v2432 = vunpack.c.l.b16 %v2410
        %v2433 = vpack.c.b16 %v2429, %v2428
        %v2434 = vpack.c.b16 %v2431, %v2430
        %v2435 = vpack.c.b16 %v2432, %v2432
        %v2439 = vsel %vm378, %v2422, 0
        %v2442 = vsel %vm382, %v2435, 0
        %2444 = vmatpush.bf16.msra.mxu0 0
        %2445 = vmatpush.bf16.msra.mxu0 0
        %2446 = vmatpush.bf16.msra.mxu0 0
        %2447 = vmatpush.bf16.msra.mxu0 0
        %2448 = vmatpush.bf16.msra.mxu0 0
        %2449 = vmatpush.bf16.msra.mxu0 %v2442
        %2450 = vmatpush.bf16.msra.mxu0 %v2434
        %2451 = vmatpush.bf16.msra.mxu0 %v2433
        %2452 = vmatmul.bf16.gmra.mxu0 %v2439
        %v2453 = vpop.f32.mrf.mxu0
        %v2454 = vadd.f32 0.0, %v2453
        %v2455 = vpop.f32.mrf.mxu0
        %2456 = vdwg.mxu0
        %v2462 = vunpack.c.l.b16 %v2401
        %v2463 = vunpack.c.l.b16 %v2402
        %v2464 = vunpack.c.l.b16 %v2403
        %v2465 = vunpack.c.l.b16 %v2404
        %v2466 = vunpack.c.l.b16 %v2405
        %v2467 = vpack.c.b16 %v2463, %v2462
        %v2468 = vpack.c.b16 %v2465, %v2464
        %v2469 = vpack.c.b16 %v2466, %v2466
        %v2473 = vsel %vm378, %v2399, 0
        %v2476 = vsel %vm382, %v2469, 0
        %2478 = vmatpush.bf16.msra.mxu0 0
        %2479 = vmatpush.bf16.msra.mxu0 0
        %2480 = vmatpush.bf16.msra.mxu0 0
        %2481 = vmatpush.bf16.msra.mxu0 0
        %2482 = vmatpush.bf16.msra.mxu0 0
        %2483 = vmatpush.bf16.msra.mxu0 %v2476
        %2484 = vmatpush.bf16.msra.mxu0 %v2468
        %2485 = vmatpush.bf16.msra.mxu0 %v2467
        %2486 = vmatmul.bf16.gmra.mxu0 %v2473
        %v2487 = vpop.f32.mrf.mxu0
        %v2488 = vadd.f32 %v2454, %v2487
        %v2489 = vpop.f32.mrf.mxu0
        %2490 = vdwg.mxu0
        %v2491 = vld [vmem:[%s433] sm:$0xf]
        %v2492 = vld [vmem:[%s433 + $0x4] sm:$0xf]
        %v2493 = vld [vmem:[%s433 + $0x8] sm:$0xf]
        %v2494 = vld [vmem:[%s433 + $0xc] sm:$0xf]
        %v2495 = vld [vmem:[%s433 + $0x10] sm:$0xf]
        %v2496 = vrot.slane %v2415, 1
        %v2502 = vunpack.c.l.b16 %v2491
        %v2503 = vunpack.c.l.b16 %v2492
        %v2504 = vunpack.c.l.b16 %v2493
        %v2505 = vunpack.c.l.b16 %v2494
        %v2506 = vunpack.c.l.b16 %v2495
        %v2507 = vpack.c.b16 %v2503, %v2502
        %v2508 = vpack.c.b16 %v2505, %v2504
        %v2509 = vpack.c.b16 %v2506, %v2506
        %v2513 = vsel %vm378, %v2496, 0
        %v2516 = vsel %vm382, %v2509, 0
        %2518 = vmatpush.bf16.msra.mxu0 0
        %2519 = vmatpush.bf16.msra.mxu0 0
        %2520 = vmatpush.bf16.msra.mxu0 0
        %2521 = vmatpush.bf16.msra.mxu0 0
        %2522 = vmatpush.bf16.msra.mxu0 0
        %2523 = vmatpush.bf16.msra.mxu0 %v2516
        %2524 = vmatpush.bf16.msra.mxu0 %v2508
        %2525 = vmatpush.bf16.msra.mxu0 %v2507
        %2526 = vmatmul.bf16.gmra.mxu0 %v2513
        %v2527 = vpop.f32.mrf.mxu0
        %v2528 = vadd.f32 0.0, %v2527
        %v2529 = vpop.f32.mrf.mxu0
        %2530 = vdwg.mxu0
        %v2531 = vadd.f32 %v2488, %v2528
        %v2532 = vld [vmem:[%s2258] sm:$0xf]
        %v2533 = vld [vmem:[%s2258 + $0x4] sm:$0x1]
        %v2534 = vld [vmem:[%s478] sm:$0xf]
        %v2535 = vld [vmem:[%s478 + $0x4] sm:$0xf]
        %v2536 = vld [vmem:[%s478 + $0x8] sm:$0xf]
        %v2537 = vld [vmem:[%s478 + $0xc] sm:$0xf]
        %v2538 = vld [vmem:[%s478 + $0x10] sm:$0xf]
        %v2544 = vunpack.c.l.b16 %v2534
        %v2545 = vunpack.c.l.b16 %v2535
        %v2546 = vunpack.c.l.b16 %v2536
        %v2547 = vunpack.c.l.b16 %v2537
        %v2548 = vunpack.c.l.b16 %v2538
        %v2549 = vpack.c.b16 %v2545, %v2544
        %v2550 = vpack.c.b16 %v2547, %v2546
        %v2551 = vpack.c.b16 %v2548, %v2548
        %v2555 = vsel %vm378, %v2532, 0
        %v2558 = vsel %vm382, %v2551, 0
        %2560 = vmatpush.bf16.msra.mxu0 0
        %2561 = vmatpush.bf16.msra.mxu0 0
        %2562 = vmatpush.bf16.msra.mxu0 0
        %2563 = vmatpush.bf16.msra.mxu0 0
        %2564 = vmatpush.bf16.msra.mxu0 0
        %2565 = vmatpush.bf16.msra.mxu0 %v2558
        %2566 = vmatpush.bf16.msra.mxu0 %v2550
        %2567 = vmatpush.bf16.msra.mxu0 %v2549
        %2568 = vmatmul.bf16.gmra.mxu0 %v2555
        %v2569 = vpop.f32.mrf.mxu0
        %v2570 = vadd.f32 0.0, %v2569
        %v2571 = vpop.f32.mrf.mxu0
        %2572 = vdwg.mxu0
        %v2573 = vadd.f32 %v2531, %v2570
        %v2574 = vld [vmem:[%s519] sm:$0xf]
        %v2575 = vld [vmem:[%s519 + $0x4] sm:$0xf]
        %v2576 = vld [vmem:[%s519 + $0x8] sm:$0xf]
        %v2577 = vld [vmem:[%s519 + $0xc] sm:$0xf]
        %v2578 = vld [vmem:[%s519 + $0x10] sm:$0xf]
        %v2581 = vunpack.c.l.b16 %v2532
        %v2582 = vunpack.c.l.b16 %v2533
        %v2583 = vpack.c.b16 %v2582, %v2581
        %v2585 = vshrl.u32 %v2583, 16
        %v2587 = vshll.u32 %v2583, 16
        %v2589 = vrot.slane %v2587, 1
        %v2590 = vor.u32 %v2585, %v2589
        %v2596 = vunpack.c.l.b16 %v2574
        %v2597 = vunpack.c.l.b16 %v2575
        %v2598 = vunpack.c.l.b16 %v2576
        %v2599 = vunpack.c.l.b16 %v2577
        %v2600 = vunpack.c.l.b16 %v2578
        %v2601 = vpack.c.b16 %v2597, %v2596
        %v2602 = vpack.c.b16 %v2599, %v2598
        %v2603 = vpack.c.b16 %v2600, %v2600
        %v2607 = vsel %vm378, %v2590, 0
        %v2610 = vsel %vm382, %v2603, 0
        %2612 = vmatpush.bf16.msra.mxu0 0
        %2613 = vmatpush.bf16.msra.mxu0 0
        %2614 = vmatpush.bf16.msra.mxu0 0
        %2615 = vmatpush.bf16.msra.mxu0 0
        %2616 = vmatpush.bf16.msra.mxu0 0
        %2617 = vmatpush.bf16.msra.mxu0 %v2610
        %2618 = vmatpush.bf16.msra.mxu0 %v2602
        %2619 = vmatpush.bf16.msra.mxu0 %v2601
        %2620 = vmatmul.bf16.gmra.mxu0 %v2607
        %v2621 = vpop.f32.mrf.mxu0
        %v2622 = vadd.f32 0.0, %v2621
        %v2623 = vpop.f32.mrf.mxu0
        %2624 = vdwg.mxu0
        %v2625 = vadd.f32 %v2573, %v2622
        %v2626 = vld [vmem:[%s572] sm:$0xf]
        %v2627 = vld [vmem:[%s572 + $0x4] sm:$0xf]
        %v2628 = vld [vmem:[%s572 + $0x8] sm:$0xf]
        %v2629 = vld [vmem:[%s572 + $0xc] sm:$0xf]
        %v2630 = vld [vmem:[%s572 + $0x10] sm:$0xf]
        %v2631 = vrot.slane %v2583, 1
        %v2637 = vunpack.c.l.b16 %v2626
        %v2638 = vunpack.c.l.b16 %v2627
        %v2639 = vunpack.c.l.b16 %v2628
        %v2640 = vunpack.c.l.b16 %v2629
        %v2641 = vunpack.c.l.b16 %v2630
        %v2642 = vpack.c.b16 %v2638, %v2637
        %v2643 = vpack.c.b16 %v2640, %v2639
        %v2644 = vpack.c.b16 %v2641, %v2641
        %v2648 = vsel %vm378, %v2631, 0
        %v2651 = vsel %vm382, %v2644, 0
        %2653 = vmatpush.bf16.msra.mxu0 0
        %2654 = vmatpush.bf16.msra.mxu0 0
        %2655 = vmatpush.bf16.msra.mxu0 0
        %2656 = vmatpush.bf16.msra.mxu0 0
        %2657 = vmatpush.bf16.msra.mxu0 0
        %2658 = vmatpush.bf16.msra.mxu0 %v2651
        %2659 = vmatpush.bf16.msra.mxu0 %v2643
        %2660 = vmatpush.bf16.msra.mxu0 %v2642
        %2661 = vmatmul.bf16.gmra.mxu0 %v2648
        %v2662 = vpop.f32.mrf.mxu0
        %v2663 = vadd.f32 0.0, %v2662
        %v2664 = vpop.f32.mrf.mxu0
        %2665 = vdwg.mxu0
        %v2666 = vadd.f32 %v2625, %v2663
        %s2667 = scalar_lea.vmem %s312, 56
        %v2668 = vld [vmem:[%s2667] sm:$0xf]
        %v2669 = vld [vmem:[%s2667 + $0x4] sm:$0x1]
        %v2670 = vld [vmem:[%s617] sm:$0xf]
        %v2671 = vld [vmem:[%s617 + $0x4] sm:$0xf]
        %v2672 = vld [vmem:[%s617 + $0x8] sm:$0xf]
        %v2673 = vld [vmem:[%s617 + $0xc] sm:$0xf]
        %v2674 = vld [vmem:[%s617 + $0x10] sm:$0xf]
        %v2680 = vunpack.c.l.b16 %v2670
        %v2681 = vunpack.c.l.b16 %v2671
        %v2682 = vunpack.c.l.b16 %v2672
        %v2683 = vunpack.c.l.b16 %v2673
        %v2684 = vunpack.c.l.b16 %v2674
        %v2685 = vpack.c.b16 %v2681, %v2680
        %v2686 = vpack.c.b16 %v2683, %v2682
        %v2687 = vpack.c.b16 %v2684, %v2684
        %v2691 = vsel %vm378, %v2668, 0
        %v2694 = vsel %vm382, %v2687, 0
        %2696 = vmatpush.bf16.msra.mxu0 0
        %2697 = vmatpush.bf16.msra.mxu0 0
        %2698 = vmatpush.bf16.msra.mxu0 0
        %2699 = vmatpush.bf16.msra.mxu0 0
        %2700 = vmatpush.bf16.msra.mxu0 0
        %2701 = vmatpush.bf16.msra.mxu0 %v2694
        %2702 = vmatpush.bf16.msra.mxu0 %v2686
        %2703 = vmatpush.bf16.msra.mxu0 %v2685
        %2704 = vmatmul.bf16.gmra.mxu0 %v2691
        %v2705 = vpop.f32.mrf.mxu0
        %v2706 = vadd.f32 0.0, %v2705
        %v2707 = vpop.f32.mrf.mxu0
        %2708 = vdwg.mxu0
        %v2709 = vadd.f32 %v2666, %v2706
        %v2710 = vld [vmem:[%s658] sm:$0xf]
        %v2711 = vld [vmem:[%s658 + $0x4] sm:$0xf]
        %v2712 = vld [vmem:[%s658 + $0x8] sm:$0xf]
        %v2713 = vld [vmem:[%s658 + $0xc] sm:$0xf]
        %v2714 = vld [vmem:[%s658 + $0x10] sm:$0xf]
        %v2717 = vunpack.c.l.b16 %v2668
        %v2718 = vunpack.c.l.b16 %v2669
        %v2719 = vpack.c.b16 %v2718, %v2717
        %v2721 = vshrl.u32 %v2719, 16
        %v2723 = vshll.u32 %v2719, 16
        %v2725 = vrot.slane %v2723, 1
        %v2726 = vor.u32 %v2721, %v2725
        %v2732 = vunpack.c.l.b16 %v2710
        %v2733 = vunpack.c.l.b16 %v2711
        %v2734 = vunpack.c.l.b16 %v2712
        %v2735 = vunpack.c.l.b16 %v2713
        %v2736 = vunpack.c.l.b16 %v2714
        %v2737 = vpack.c.b16 %v2733, %v2732
        %v2738 = vpack.c.b16 %v2735, %v2734
        %v2739 = vpack.c.b16 %v2736, %v2736
        %v2743 = vsel %vm378, %v2726, 0
        %v2746 = vsel %vm382, %v2739, 0
        %2748 = vmatpush.bf16.msra.mxu0 0
        %2749 = vmatpush.bf16.msra.mxu0 0
        %2750 = vmatpush.bf16.msra.mxu0 0
        %2751 = vmatpush.bf16.msra.mxu0 0
        %2752 = vmatpush.bf16.msra.mxu0 0
        %2753 = vmatpush.bf16.msra.mxu0 %v2746
        %2754 = vmatpush.bf16.msra.mxu0 %v2738
        %2755 = vmatpush.bf16.msra.mxu0 %v2737
        %2756 = vmatmul.bf16.gmra.mxu0 %v2743
        %v2757 = vpop.f32.mrf.mxu0
        %v2758 = vadd.f32 0.0, %v2757
        %v2759 = vpop.f32.mrf.mxu0
        %2760 = vdwg.mxu0
        %v2761 = vadd.f32 %v2709, %v2758
        %v2762 = vld [vmem:[%s711] sm:$0xf]
        %v2763 = vld [vmem:[%s711 + $0x4] sm:$0xf]
        %v2764 = vld [vmem:[%s711 + $0x8] sm:$0xf]
        %v2765 = vld [vmem:[%s711 + $0xc] sm:$0xf]
        %v2766 = vld [vmem:[%s711 + $0x10] sm:$0xf]
        %v2767 = vrot.slane %v2719, 1
        %v2773 = vunpack.c.l.b16 %v2762
        %v2774 = vunpack.c.l.b16 %v2763
        %v2775 = vunpack.c.l.b16 %v2764
        %v2776 = vunpack.c.l.b16 %v2765
        %v2777 = vunpack.c.l.b16 %v2766
        %v2778 = vpack.c.b16 %v2774, %v2773
        %v2779 = vpack.c.b16 %v2776, %v2775
        %v2780 = vpack.c.b16 %v2777, %v2777
        %v2784 = vsel %vm378, %v2767, 0
        %v2787 = vsel %vm382, %v2780, 0
        %2789 = vmatpush.bf16.msra.mxu0 0
        %2790 = vmatpush.bf16.msra.mxu0 0
        %2791 = vmatpush.bf16.msra.mxu0 0
        %2792 = vmatpush.bf16.msra.mxu0 0
        %2793 = vmatpush.bf16.msra.mxu0 0
        %2794 = vmatpush.bf16.msra.mxu0 %v2787
        %2795 = vmatpush.bf16.msra.mxu0 %v2779
        %2796 = vmatpush.bf16.msra.mxu0 %v2778
        %2797 = vmatmul.bf16.gmra.mxu0 %v2784
        %v2798 = vpop.f32.mrf.mxu0
        %v2799 = vadd.f32 0.0, %v2798
        %v2800 = vpop.f32.mrf.mxu0
        %2801 = vdwg.mxu0
        %v2802 = vadd.f32 %v2761, %v2799
        %v2803 = vmul.f32 %v2802, %v754
        %v2804 = vadd.f32 %v2803, %v758
        %v2805 = vmax.f32 %v2804, 0.0
        %s2806 = scalar_lea.vmem %s297, 40 [#allocation2]
        %2807 = vst [vmem:[%s2806] sm:$0xff] %v2805
        %v2808 = vld [vmem:[%s2258] sm:$0xf]
        %v2809 = vld [vmem:[%s2258 + $0x4] sm:$0x1]
        %v2810 = vld [vmem:[%s2] sm:$0xf]
        %v2811 = vld [vmem:[%s2 + $0x4] sm:$0xf]
        %v2812 = vld [vmem:[%s2 + $0x8] sm:$0xf]
        %v2813 = vld [vmem:[%s2 + $0xc] sm:$0xf]
        %v2814 = vld [vmem:[%s2 + $0x10] sm:$0xf]
        %v2815 = vld [vmem:[%s345] sm:$0xf]
        %v2816 = vld [vmem:[%s345 + $0x4] sm:$0xf]
        %v2817 = vld [vmem:[%s345 + $0x8] sm:$0xf]
        %v2818 = vld [vmem:[%s345 + $0xc] sm:$0xf]
        %v2819 = vld [vmem:[%s345 + $0x10] sm:$0xf]
        %v2822 = vunpack.c.l.b16 %v2808
        %v2823 = vunpack.c.l.b16 %v2809
        %v2824 = vpack.c.b16 %v2823, %v2822
        %v2826 = vshrl.u32 %v2824, 16
        %v2828 = vshll.u32 %v2824, 16
        %v2830 = vrot.slane %v2828, 1
        %v2831 = vor.u32 %v2826, %v2830
        %v2837 = vunpack.c.l.b16 %v2815
        %v2838 = vunpack.c.l.b16 %v2816
        %v2839 = vunpack.c.l.b16 %v2817
        %v2840 = vunpack.c.l.b16 %v2818
        %v2841 = vunpack.c.l.b16 %v2819
        %v2842 = vpack.c.b16 %v2838, %v2837
        %v2843 = vpack.c.b16 %v2840, %v2839
        %v2844 = vpack.c.b16 %v2841, %v2841
        %v2848 = vsel %vm378, %v2831, 0
        %v2851 = vsel %vm382, %v2844, 0
        %2853 = vmatpush.bf16.msra.mxu0 0
        %2854 = vmatpush.bf16.msra.mxu0 0
        %2855 = vmatpush.bf16.msra.mxu0 0
        %2856 = vmatpush.bf16.msra.mxu0 0
        %2857 = vmatpush.bf16.msra.mxu0 0
        %2858 = vmatpush.bf16.msra.mxu0 %v2851
        %2859 = vmatpush.bf16.msra.mxu0 %v2843
        %2860 = vmatpush.bf16.msra.mxu0 %v2842
        %2861 = vmatmul.bf16.gmra.mxu0 %v2848
        %v2862 = vpop.f32.mrf.mxu0
        %v2863 = vadd.f32 0.0, %v2862
        %v2864 = vpop.f32.mrf.mxu0
        %2865 = vdwg.mxu0
        %v2871 = vunpack.c.l.b16 %v2810
        %v2872 = vunpack.c.l.b16 %v2811
        %v2873 = vunpack.c.l.b16 %v2812
        %v2874 = vunpack.c.l.b16 %v2813
        %v2875 = vunpack.c.l.b16 %v2814
        %v2876 = vpack.c.b16 %v2872, %v2871
        %v2877 = vpack.c.b16 %v2874, %v2873
        %v2878 = vpack.c.b16 %v2875, %v2875
        %v2882 = vsel %vm378, %v2808, 0
        %v2885 = vsel %vm382, %v2878, 0
        %2887 = vmatpush.bf16.msra.mxu0 0
        %2888 = vmatpush.bf16.msra.mxu0 0
        %2889 = vmatpush.bf16.msra.mxu0 0
        %2890 = vmatpush.bf16.msra.mxu0 0
        %2891 = vmatpush.bf16.msra.mxu0 0
        %2892 = vmatpush.bf16.msra.mxu0 %v2885
        %2893 = vmatpush.bf16.msra.mxu0 %v2877
        %2894 = vmatpush.bf16.msra.mxu0 %v2876
        %2895 = vmatmul.bf16.gmra.mxu0 %v2882
        %v2896 = vpop.f32.mrf.mxu0
        %v2897 = vadd.f32 %v2863, %v2896
        %v2898 = vpop.f32.mrf.mxu0
        %2899 = vdwg.mxu0
        %v2900 = vld [vmem:[%s433] sm:$0xf]
        %v2901 = vld [vmem:[%s433 + $0x4] sm:$0xf]
        %v2902 = vld [vmem:[%s433 + $0x8] sm:$0xf]
        %v2903 = vld [vmem:[%s433 + $0xc] sm:$0xf]
        %v2904 = vld [vmem:[%s433 + $0x10] sm:$0xf]
        %v2905 = vrot.slane %v2824, 1
        %v2911 = vunpack.c.l.b16 %v2900
        %v2912 = vunpack.c.l.b16 %v2901
        %v2913 = vunpack.c.l.b16 %v2902
        %v2914 = vunpack.c.l.b16 %v2903
        %v2915 = vunpack.c.l.b16 %v2904
        %v2916 = vpack.c.b16 %v2912, %v2911
        %v2917 = vpack.c.b16 %v2914, %v2913
        %v2918 = vpack.c.b16 %v2915, %v2915
        %v2922 = vsel %vm378, %v2905, 0
        %v2925 = vsel %vm382, %v2918, 0
        %2927 = vmatpush.bf16.msra.mxu0 0
        %2928 = vmatpush.bf16.msra.mxu0 0
        %2929 = vmatpush.bf16.msra.mxu0 0
        %2930 = vmatpush.bf16.msra.mxu0 0
        %2931 = vmatpush.bf16.msra.mxu0 0
        %2932 = vmatpush.bf16.msra.mxu0 %v2925
        %2933 = vmatpush.bf16.msra.mxu0 %v2917
        %2934 = vmatpush.bf16.msra.mxu0 %v2916
        %2935 = vmatmul.bf16.gmra.mxu0 %v2922
        %v2936 = vpop.f32.mrf.mxu0
        %v2937 = vadd.f32 0.0, %v2936
        %v2938 = vpop.f32.mrf.mxu0
        %2939 = vdwg.mxu0
        %v2940 = vadd.f32 %v2897, %v2937
        %v2941 = vld [vmem:[%s2667] sm:$0xf]
        %v2942 = vld [vmem:[%s2667 + $0x4] sm:$0x1]
        %v2943 = vld [vmem:[%s478] sm:$0xf]
        %v2944 = vld [vmem:[%s478 + $0x4] sm:$0xf]
        %v2945 = vld [vmem:[%s478 + $0x8] sm:$0xf]
        %v2946 = vld [vmem:[%s478 + $0xc] sm:$0xf]
        %v2947 = vld [vmem:[%s478 + $0x10] sm:$0xf]
        %v2953 = vunpack.c.l.b16 %v2943
        %v2954 = vunpack.c.l.b16 %v2944
        %v2955 = vunpack.c.l.b16 %v2945
        %v2956 = vunpack.c.l.b16 %v2946
        %v2957 = vunpack.c.l.b16 %v2947
        %v2958 = vpack.c.b16 %v2954, %v2953
        %v2959 = vpack.c.b16 %v2956, %v2955
        %v2960 = vpack.c.b16 %v2957, %v2957
        %v2964 = vsel %vm378, %v2941, 0
        %v2967 = vsel %vm382, %v2960, 0
        %2969 = vmatpush.bf16.msra.mxu0 0
        %2970 = vmatpush.bf16.msra.mxu0 0
        %2971 = vmatpush.bf16.msra.mxu0 0
        %2972 = vmatpush.bf16.msra.mxu0 0
        %2973 = vmatpush.bf16.msra.mxu0 0
        %2974 = vmatpush.bf16.msra.mxu0 %v2967
        %2975 = vmatpush.bf16.msra.mxu0 %v2959
        %2976 = vmatpush.bf16.msra.mxu0 %v2958
        %2977 = vmatmul.bf16.gmra.mxu0 %v2964
        %v2978 = vpop.f32.mrf.mxu0
        %v2979 = vadd.f32 0.0, %v2978
        %v2980 = vpop.f32.mrf.mxu0
        %2981 = vdwg.mxu0
        %v2982 = vadd.f32 %v2940, %v2979
        %v2983 = vld [vmem:[%s519] sm:$0xf]
        %v2984 = vld [vmem:[%s519 + $0x4] sm:$0xf]
        %v2985 = vld [vmem:[%s519 + $0x8] sm:$0xf]
        %v2986 = vld [vmem:[%s519 + $0xc] sm:$0xf]
        %v2987 = vld [vmem:[%s519 + $0x10] sm:$0xf]
        %v2990 = vunpack.c.l.b16 %v2941
        %v2991 = vunpack.c.l.b16 %v2942
        %v2992 = vpack.c.b16 %v2991, %v2990
        %v2994 = vshrl.u32 %v2992, 16
        %v2996 = vshll.u32 %v2992, 16
        %v2998 = vrot.slane %v2996, 1
        %v2999 = vor.u32 %v2994, %v2998
        %v3005 = vunpack.c.l.b16 %v2983
        %v3006 = vunpack.c.l.b16 %v2984
        %v3007 = vunpack.c.l.b16 %v2985
        %v3008 = vunpack.c.l.b16 %v2986
        %v3009 = vunpack.c.l.b16 %v2987
        %v3010 = vpack.c.b16 %v3006, %v3005
        %v3011 = vpack.c.b16 %v3008, %v3007
        %v3012 = vpack.c.b16 %v3009, %v3009
        %v3016 = vsel %vm378, %v2999, 0
        %v3019 = vsel %vm382, %v3012, 0
        %3021 = vmatpush.bf16.msra.mxu0 0
        %3022 = vmatpush.bf16.msra.mxu0 0
        %3023 = vmatpush.bf16.msra.mxu0 0
        %3024 = vmatpush.bf16.msra.mxu0 0
        %3025 = vmatpush.bf16.msra.mxu0 0
        %3026 = vmatpush.bf16.msra.mxu0 %v3019
        %3027 = vmatpush.bf16.msra.mxu0 %v3011
        %3028 = vmatpush.bf16.msra.mxu0 %v3010
        %3029 = vmatmul.bf16.gmra.mxu0 %v3016
        %v3030 = vpop.f32.mrf.mxu0
        %v3031 = vadd.f32 0.0, %v3030
        %v3032 = vpop.f32.mrf.mxu0
        %3033 = vdwg.mxu0
        %v3034 = vadd.f32 %v2982, %v3031
        %v3035 = vld [vmem:[%s572] sm:$0xf]
        %v3036 = vld [vmem:[%s572 + $0x4] sm:$0xf]
        %v3037 = vld [vmem:[%s572 + $0x8] sm:$0xf]
        %v3038 = vld [vmem:[%s572 + $0xc] sm:$0xf]
        %v3039 = vld [vmem:[%s572 + $0x10] sm:$0xf]
        %v3040 = vrot.slane %v2992, 1
        %v3046 = vunpack.c.l.b16 %v3035
        %v3047 = vunpack.c.l.b16 %v3036
        %v3048 = vunpack.c.l.b16 %v3037
        %v3049 = vunpack.c.l.b16 %v3038
        %v3050 = vunpack.c.l.b16 %v3039
        %v3051 = vpack.c.b16 %v3047, %v3046
        %v3052 = vpack.c.b16 %v3049, %v3048
        %v3053 = vpack.c.b16 %v3050, %v3050
        %v3057 = vsel %vm378, %v3040, 0
        %v3060 = vsel %vm382, %v3053, 0
        %3062 = vmatpush.bf16.msra.mxu0 0
        %3063 = vmatpush.bf16.msra.mxu0 0
        %3064 = vmatpush.bf16.msra.mxu0 0
        %3065 = vmatpush.bf16.msra.mxu0 0
        %3066 = vmatpush.bf16.msra.mxu0 0
        %3067 = vmatpush.bf16.msra.mxu0 %v3060
        %3068 = vmatpush.bf16.msra.mxu0 %v3052
        %3069 = vmatpush.bf16.msra.mxu0 %v3051
        %3070 = vmatmul.bf16.gmra.mxu0 %v3057
        %v3071 = vpop.f32.mrf.mxu0
        %v3072 = vadd.f32 0.0, %v3071
        %v3073 = vpop.f32.mrf.mxu0
        %3074 = vdwg.mxu0
        %v3075 = vadd.f32 %v3034, %v3072
        %v3076 = vld [vmem:[%s330] sm:$0xf]
        %v3077 = vld [vmem:[%s330 + $0x4] sm:$0x1]
        %v3078 = vld [vmem:[%s617] sm:$0xf]
        %v3079 = vld [vmem:[%s617 + $0x4] sm:$0xf]
        %v3080 = vld [vmem:[%s617 + $0x8] sm:$0xf]
        %v3081 = vld [vmem:[%s617 + $0xc] sm:$0xf]
        %v3082 = vld [vmem:[%s617 + $0x10] sm:$0xf]
        %v3088 = vunpack.c.l.b16 %v3078
        %v3089 = vunpack.c.l.b16 %v3079
        %v3090 = vunpack.c.l.b16 %v3080
        %v3091 = vunpack.c.l.b16 %v3081
        %v3092 = vunpack.c.l.b16 %v3082
        %v3093 = vpack.c.b16 %v3089, %v3088
        %v3094 = vpack.c.b16 %v3091, %v3090
        %v3095 = vpack.c.b16 %v3092, %v3092
        %v3099 = vsel %vm378, %v3076, 0
        %v3102 = vsel %vm382, %v3095, 0
        %3104 = vmatpush.bf16.msra.mxu0 0
        %3105 = vmatpush.bf16.msra.mxu0 0
        %3106 = vmatpush.bf16.msra.mxu0 0
        %3107 = vmatpush.bf16.msra.mxu0 0
        %3108 = vmatpush.bf16.msra.mxu0 0
        %3109 = vmatpush.bf16.msra.mxu0 %v3102
        %3110 = vmatpush.bf16.msra.mxu0 %v3094
        %3111 = vmatpush.bf16.msra.mxu0 %v3093
        %3112 = vmatmul.bf16.gmra.mxu0 %v3099
        %v3113 = vpop.f32.mrf.mxu0
        %v3114 = vadd.f32 0.0, %v3113
        %v3115 = vpop.f32.mrf.mxu0
        %3116 = vdwg.mxu0
        %v3117 = vadd.f32 %v3075, %v3114
        %v3118 = vld [vmem:[%s658] sm:$0xf]
        %v3119 = vld [vmem:[%s658 + $0x4] sm:$0xf]
        %v3120 = vld [vmem:[%s658 + $0x8] sm:$0xf]
        %v3121 = vld [vmem:[%s658 + $0xc] sm:$0xf]
        %v3122 = vld [vmem:[%s658 + $0x10] sm:$0xf]
        %v3125 = vunpack.c.l.b16 %v3076
        %v3126 = vunpack.c.l.b16 %v3077
        %v3127 = vpack.c.b16 %v3126, %v3125
        %v3129 = vshrl.u32 %v3127, 16
        %v3131 = vshll.u32 %v3127, 16
        %v3133 = vrot.slane %v3131, 1
        %v3134 = vor.u32 %v3129, %v3133
        %v3140 = vunpack.c.l.b16 %v3118
        %v3141 = vunpack.c.l.b16 %v3119
        %v3142 = vunpack.c.l.b16 %v3120
        %v3143 = vunpack.c.l.b16 %v3121
        %v3144 = vunpack.c.l.b16 %v3122
        %v3145 = vpack.c.b16 %v3141, %v3140
        %v3146 = vpack.c.b16 %v3143, %v3142
        %v3147 = vpack.c.b16 %v3144, %v3144
        %v3151 = vsel %vm378, %v3134, 0
        %v3154 = vsel %vm382, %v3147, 0
        %3156 = vmatpush.bf16.msra.mxu0 0
        %3157 = vmatpush.bf16.msra.mxu0 0
        %3158 = vmatpush.bf16.msra.mxu0 0
        %3159 = vmatpush.bf16.msra.mxu0 0
        %3160 = vmatpush.bf16.msra.mxu0 0
        %3161 = vmatpush.bf16.msra.mxu0 %v3154
        %3162 = vmatpush.bf16.msra.mxu0 %v3146
        %3163 = vmatpush.bf16.msra.mxu0 %v3145
        %3164 = vmatmul.bf16.gmra.mxu0 %v3151
        %v3165 = vpop.f32.mrf.mxu0
        %v3166 = vadd.f32 0.0, %v3165
        %v3167 = vpop.f32.mrf.mxu0
        %3168 = vdwg.mxu0
        %v3169 = vadd.f32 %v3117, %v3166
        %v3170 = vld [vmem:[%s711] sm:$0xf]
        %v3171 = vld [vmem:[%s711 + $0x4] sm:$0xf]
        %v3172 = vld [vmem:[%s711 + $0x8] sm:$0xf]
        %v3173 = vld [vmem:[%s711 + $0xc] sm:$0xf]
        %v3174 = vld [vmem:[%s711 + $0x10] sm:$0xf]
        %v3175 = vrot.slane %v3127, 1
        %v3181 = vunpack.c.l.b16 %v3170
        %v3182 = vunpack.c.l.b16 %v3171
        %v3183 = vunpack.c.l.b16 %v3172
        %v3184 = vunpack.c.l.b16 %v3173
        %v3185 = vunpack.c.l.b16 %v3174
        %v3186 = vpack.c.b16 %v3182, %v3181
        %v3187 = vpack.c.b16 %v3184, %v3183
        %v3188 = vpack.c.b16 %v3185, %v3185
        %v3192 = vsel %vm378, %v3175, 0
        %v3195 = vsel %vm382, %v3188, 0
        %3197 = vmatpush.bf16.msra.mxu0 0
        %3198 = vmatpush.bf16.msra.mxu0 0
        %3199 = vmatpush.bf16.msra.mxu0 0
        %3200 = vmatpush.bf16.msra.mxu0 0
        %3201 = vmatpush.bf16.msra.mxu0 0
        %3202 = vmatpush.bf16.msra.mxu0 %v3195
        %3203 = vmatpush.bf16.msra.mxu0 %v3187
        %3204 = vmatpush.bf16.msra.mxu0 %v3186
        %3205 = vmatmul.bf16.gmra.mxu0 %v3192
        %v3206 = vpop.f32.mrf.mxu0
        %v3207 = vadd.f32 0.0, %v3206
        %v3208 = vpop.f32.mrf.mxu0
        %3209 = vdwg.mxu0
        %v3210 = vadd.f32 %v3169, %v3207
        %v3211 = vmul.f32 %v3210, %v754
        %v3212 = vadd.f32 %v3211, %v758
        %v3213 = vmax.f32 %v3212, 0.0
        %s3214 = scalar_lea.vmem %s297, 48 [#allocation2]
        %3215 = vst [vmem:[%s3214] sm:$0xff] %v3213
        %v3216 = vld [vmem:[%s2667] sm:$0xf]
        %v3217 = vld [vmem:[%s2667 + $0x4] sm:$0x1]
        %v3218 = vld [vmem:[%s2] sm:$0xf]
        %v3219 = vld [vmem:[%s2 + $0x4] sm:$0xf]
        %v3220 = vld [vmem:[%s2 + $0x8] sm:$0xf]
        %v3221 = vld [vmem:[%s2 + $0xc] sm:$0xf]
        %v3222 = vld [vmem:[%s2 + $0x10] sm:$0xf]
        %v3223 = vld [vmem:[%s345] sm:$0xf]
        %v3224 = vld [vmem:[%s345 + $0x4] sm:$0xf]
        %v3225 = vld [vmem:[%s345 + $0x8] sm:$0xf]
        %v3226 = vld [vmem:[%s345 + $0xc] sm:$0xf]
        %v3227 = vld [vmem:[%s345 + $0x10] sm:$0xf]
        %v3230 = vunpack.c.l.b16 %v3216
        %v3231 = vunpack.c.l.b16 %v3217
        %v3232 = vpack.c.b16 %v3231, %v3230
        %v3234 = vshrl.u32 %v3232, 16
        %v3236 = vshll.u32 %v3232, 16
        %v3238 = vrot.slane %v3236, 1
        %v3239 = vor.u32 %v3234, %v3238
        %v3245 = vunpack.c.l.b16 %v3223
        %v3246 = vunpack.c.l.b16 %v3224
        %v3247 = vunpack.c.l.b16 %v3225
        %v3248 = vunpack.c.l.b16 %v3226
        %v3249 = vunpack.c.l.b16 %v3227
        %v3250 = vpack.c.b16 %v3246, %v3245
        %v3251 = vpack.c.b16 %v3248, %v3247
        %v3252 = vpack.c.b16 %v3249, %v3249
        %v3256 = vsel %vm378, %v3239, 0
        %v3259 = vsel %vm382, %v3252, 0
        %3261 = vmatpush.bf16.msra.mxu0 0
        %3262 = vmatpush.bf16.msra.mxu0 0
        %3263 = vmatpush.bf16.msra.mxu0 0
        %3264 = vmatpush.bf16.msra.mxu0 0
        %3265 = vmatpush.bf16.msra.mxu0 0
        %3266 = vmatpush.bf16.msra.mxu0 %v3259
        %3267 = vmatpush.bf16.msra.mxu0 %v3251
        %3268 = vmatpush.bf16.msra.mxu0 %v3250
        %3269 = vmatmul.bf16.gmra.mxu0 %v3256
        %v3270 = vpop.f32.mrf.mxu0
        %v3271 = vadd.f32 0.0, %v3270
        %v3272 = vpop.f32.mrf.mxu0
        %3273 = vdwg.mxu0
        %v3279 = vunpack.c.l.b16 %v3218
        %v3280 = vunpack.c.l.b16 %v3219
        %v3281 = vunpack.c.l.b16 %v3220
        %v3282 = vunpack.c.l.b16 %v3221
        %v3283 = vunpack.c.l.b16 %v3222
        %v3284 = vpack.c.b16 %v3280, %v3279
        %v3285 = vpack.c.b16 %v3282, %v3281
        %v3286 = vpack.c.b16 %v3283, %v3283
        %v3290 = vsel %vm378, %v3216, 0
        %v3293 = vsel %vm382, %v3286, 0
        %3295 = vmatpush.bf16.msra.mxu0 0
        %3296 = vmatpush.bf16.msra.mxu0 0
        %3297 = vmatpush.bf16.msra.mxu0 0
        %3298 = vmatpush.bf16.msra.mxu0 0
        %3299 = vmatpush.bf16.msra.mxu0 0
        %3300 = vmatpush.bf16.msra.mxu0 %v3293
        %3301 = vmatpush.bf16.msra.mxu0 %v3285
        %3302 = vmatpush.bf16.msra.mxu0 %v3284
        %3303 = vmatmul.bf16.gmra.mxu0 %v3290
        %v3304 = vpop.f32.mrf.mxu0
        %v3305 = vadd.f32 %v3271, %v3304
        %v3306 = vpop.f32.mrf.mxu0
        %3307 = vdwg.mxu0
        %v3308 = vld [vmem:[%s433] sm:$0xf]
        %v3309 = vld [vmem:[%s433 + $0x4] sm:$0xf]
        %v3310 = vld [vmem:[%s433 + $0x8] sm:$0xf]
        %v3311 = vld [vmem:[%s433 + $0xc] sm:$0xf]
        %v3312 = vld [vmem:[%s433 + $0x10] sm:$0xf]
        %v3313 = vrot.slane %v3232, 1
        %v3319 = vunpack.c.l.b16 %v3308
        %v3320 = vunpack.c.l.b16 %v3309
        %v3321 = vunpack.c.l.b16 %v3310
        %v3322 = vunpack.c.l.b16 %v3311
        %v3323 = vunpack.c.l.b16 %v3312
        %v3324 = vpack.c.b16 %v3320, %v3319
        %v3325 = vpack.c.b16 %v3322, %v3321
        %v3326 = vpack.c.b16 %v3323, %v3323
        %v3330 = vsel %vm378, %v3313, 0
        %v3333 = vsel %vm382, %v3326, 0
        %3335 = vmatpush.bf16.msra.mxu0 0
        %3336 = vmatpush.bf16.msra.mxu0 0
        %3337 = vmatpush.bf16.msra.mxu0 0
        %3338 = vmatpush.bf16.msra.mxu0 0
        %3339 = vmatpush.bf16.msra.mxu0 0
        %3340 = vmatpush.bf16.msra.mxu0 %v3333
        %3341 = vmatpush.bf16.msra.mxu0 %v3325
        %3342 = vmatpush.bf16.msra.mxu0 %v3324
        %3343 = vmatmul.bf16.gmra.mxu0 %v3330
        %v3344 = vpop.f32.mrf.mxu0
        %v3345 = vadd.f32 0.0, %v3344
        %v3346 = vpop.f32.mrf.mxu0
        %3347 = vdwg.mxu0
        %v3348 = vadd.f32 %v3305, %v3345
        %v3349 = vld [vmem:[%s330] sm:$0xf]
        %v3350 = vld [vmem:[%s330 + $0x4] sm:$0x1]
        %v3351 = vld [vmem:[%s478] sm:$0xf]
        %v3352 = vld [vmem:[%s478 + $0x4] sm:$0xf]
        %v3353 = vld [vmem:[%s478 + $0x8] sm:$0xf]
        %v3354 = vld [vmem:[%s478 + $0xc] sm:$0xf]
        %v3355 = vld [vmem:[%s478 + $0x10] sm:$0xf]
        %v3361 = vunpack.c.l.b16 %v3351
        %v3362 = vunpack.c.l.b16 %v3352
        %v3363 = vunpack.c.l.b16 %v3353
        %v3364 = vunpack.c.l.b16 %v3354
        %v3365 = vunpack.c.l.b16 %v3355
        %v3366 = vpack.c.b16 %v3362, %v3361
        %v3367 = vpack.c.b16 %v3364, %v3363
        %v3368 = vpack.c.b16 %v3365, %v3365
        %v3372 = vsel %vm378, %v3349, 0
        %v3375 = vsel %vm382, %v3368, 0
        %3377 = vmatpush.bf16.msra.mxu0 0
        %3378 = vmatpush.bf16.msra.mxu0 0
        %3379 = vmatpush.bf16.msra.mxu0 0
        %3380 = vmatpush.bf16.msra.mxu0 0
        %3381 = vmatpush.bf16.msra.mxu0 0
        %3382 = vmatpush.bf16.msra.mxu0 %v3375
        %3383 = vmatpush.bf16.msra.mxu0 %v3367
        %3384 = vmatpush.bf16.msra.mxu0 %v3366
        %3385 = vmatmul.bf16.gmra.mxu0 %v3372
        %v3386 = vpop.f32.mrf.mxu0
        %v3387 = vadd.f32 0.0, %v3386
        %v3388 = vpop.f32.mrf.mxu0
        %3389 = vdwg.mxu0
        %v3390 = vadd.f32 %v3348, %v3387
        %v3391 = vld [vmem:[%s519] sm:$0xf]
        %v3392 = vld [vmem:[%s519 + $0x4] sm:$0xf]
        %v3393 = vld [vmem:[%s519 + $0x8] sm:$0xf]
        %v3394 = vld [vmem:[%s519 + $0xc] sm:$0xf]
        %v3395 = vld [vmem:[%s519 + $0x10] sm:$0xf]
        %v3398 = vunpack.c.l.b16 %v3349
        %v3399 = vunpack.c.l.b16 %v3350
        %v3400 = vpack.c.b16 %v3399, %v3398
        %v3402 = vshrl.u32 %v3400, 16
        %v3404 = vshll.u32 %v3400, 16
        %v3406 = vrot.slane %v3404, 1
        %v3407 = vor.u32 %v3402, %v3406
        %v3413 = vunpack.c.l.b16 %v3391
        %v3414 = vunpack.c.l.b16 %v3392
        %v3415 = vunpack.c.l.b16 %v3393
        %v3416 = vunpack.c.l.b16 %v3394
        %v3417 = vunpack.c.l.b16 %v3395
        %v3418 = vpack.c.b16 %v3414, %v3413
        %v3419 = vpack.c.b16 %v3416, %v3415
        %v3420 = vpack.c.b16 %v3417, %v3417
        %v3424 = vsel %vm378, %v3407, 0
        %v3427 = vsel %vm382, %v3420, 0
        %3429 = vmatpush.bf16.msra.mxu0 0
        %3430 = vmatpush.bf16.msra.mxu0 0
        %3431 = vmatpush.bf16.msra.mxu0 0
        %3432 = vmatpush.bf16.msra.mxu0 0
        %3433 = vmatpush.bf16.msra.mxu0 0
        %3434 = vmatpush.bf16.msra.mxu0 %v3427
        %3435 = vmatpush.bf16.msra.mxu0 %v3419
        %3436 = vmatpush.bf16.msra.mxu0 %v3418
        %3437 = vmatmul.bf16.gmra.mxu0 %v3424
        %v3438 = vpop.f32.mrf.mxu0
        %v3439 = vadd.f32 0.0, %v3438
        %v3440 = vpop.f32.mrf.mxu0
        %3441 = vdwg.mxu0
        %v3442 = vadd.f32 %v3390, %v3439
        %v3443 = vld [vmem:[%s572] sm:$0xf]
        %v3444 = vld [vmem:[%s572 + $0x4] sm:$0xf]
        %v3445 = vld [vmem:[%s572 + $0x8] sm:$0xf]
        %v3446 = vld [vmem:[%s572 + $0xc] sm:$0xf]
        %v3447 = vld [vmem:[%s572 + $0x10] sm:$0xf]
        %v3448 = vrot.slane %v3400, 1
        %v3454 = vunpack.c.l.b16 %v3443
        %v3455 = vunpack.c.l.b16 %v3444
        %v3456 = vunpack.c.l.b16 %v3445
        %v3457 = vunpack.c.l.b16 %v3446
        %v3458 = vunpack.c.l.b16 %v3447
        %v3459 = vpack.c.b16 %v3455, %v3454
        %v3460 = vpack.c.b16 %v3457, %v3456
        %v3461 = vpack.c.b16 %v3458, %v3458
        %v3465 = vsel %vm378, %v3448, 0
        %v3468 = vsel %vm382, %v3461, 0
        %3470 = vmatpush.bf16.msra.mxu0 0
        %3471 = vmatpush.bf16.msra.mxu0 0
        %3472 = vmatpush.bf16.msra.mxu0 0
        %3473 = vmatpush.bf16.msra.mxu0 0
        %3474 = vmatpush.bf16.msra.mxu0 0
        %3475 = vmatpush.bf16.msra.mxu0 %v3468
        %3476 = vmatpush.bf16.msra.mxu0 %v3460
        %3477 = vmatpush.bf16.msra.mxu0 %v3459
        %3478 = vmatmul.bf16.gmra.mxu0 %v3465
        %v3479 = vpop.f32.mrf.mxu0
        %v3480 = vadd.f32 0.0, %v3479
        %v3481 = vpop.f32.mrf.mxu0
        %3482 = vdwg.mxu0
        %v3483 = vadd.f32 %v3442, %v3480
        %s3484 = scalar_lea.vmem %s330, 8
        %v3485 = vld [vmem:[%s3484] sm:$0xf]
        %v3486 = vld [vmem:[%s3484 + $0x4] sm:$0x1]
        %v3487 = vld [vmem:[%s617] sm:$0xf]
        %v3488 = vld [vmem:[%s617 + $0x4] sm:$0xf]
        %v3489 = vld [vmem:[%s617 + $0x8] sm:$0xf]
        %v3490 = vld [vmem:[%s617 + $0xc] sm:$0xf]
        %v3491 = vld [vmem:[%s617 + $0x10] sm:$0xf]
        %v3497 = vunpack.c.l.b16 %v3487
        %v3498 = vunpack.c.l.b16 %v3488
        %v3499 = vunpack.c.l.b16 %v3489
        %v3500 = vunpack.c.l.b16 %v3490
        %v3501 = vunpack.c.l.b16 %v3491
        %v3502 = vpack.c.b16 %v3498, %v3497
        %v3503 = vpack.c.b16 %v3500, %v3499
        %v3504 = vpack.c.b16 %v3501, %v3501
        %v3508 = vsel %vm378, %v3485, 0
        %v3511 = vsel %vm382, %v3504, 0
        %3513 = vmatpush.bf16.msra.mxu0 0
        %3514 = vmatpush.bf16.msra.mxu0 0
        %3515 = vmatpush.bf16.msra.mxu0 0
        %3516 = vmatpush.bf16.msra.mxu0 0
        %3517 = vmatpush.bf16.msra.mxu0 0
        %3518 = vmatpush.bf16.msra.mxu0 %v3511
        %3519 = vmatpush.bf16.msra.mxu0 %v3503
        %3520 = vmatpush.bf16.msra.mxu0 %v3502
        %3521 = vmatmul.bf16.gmra.mxu0 %v3508
        %v3522 = vpop.f32.mrf.mxu0
        %v3523 = vadd.f32 0.0, %v3522
        %v3524 = vpop.f32.mrf.mxu0
        %3525 = vdwg.mxu0
        %v3526 = vadd.f32 %v3483, %v3523
        %v3527 = vld [vmem:[%s658] sm:$0xf]
        %v3528 = vld [vmem:[%s658 + $0x4] sm:$0xf]
        %v3529 = vld [vmem:[%s658 + $0x8] sm:$0xf]
        %v3530 = vld [vmem:[%s658 + $0xc] sm:$0xf]
        %v3531 = vld [vmem:[%s658 + $0x10] sm:$0xf]
        %v3534 = vunpack.c.l.b16 %v3485
        %v3535 = vunpack.c.l.b16 %v3486
        %v3536 = vpack.c.b16 %v3535, %v3534
        %v3538 = vshrl.u32 %v3536, 16
        %v3540 = vshll.u32 %v3536, 16
        %v3542 = vrot.slane %v3540, 1
        %v3543 = vor.u32 %v3538, %v3542
        %v3549 = vunpack.c.l.b16 %v3527
        %v3550 = vunpack.c.l.b16 %v3528
        %v3551 = vunpack.c.l.b16 %v3529
        %v3552 = vunpack.c.l.b16 %v3530
        %v3553 = vunpack.c.l.b16 %v3531
        %v3554 = vpack.c.b16 %v3550, %v3549
        %v3555 = vpack.c.b16 %v3552, %v3551
        %v3556 = vpack.c.b16 %v3553, %v3553
        %v3560 = vsel %vm378, %v3543, 0
        %v3563 = vsel %vm382, %v3556, 0
        %3565 = vmatpush.bf16.msra.mxu0 0
        %3566 = vmatpush.bf16.msra.mxu0 0
        %3567 = vmatpush.bf16.msra.mxu0 0
        %3568 = vmatpush.bf16.msra.mxu0 0
        %3569 = vmatpush.bf16.msra.mxu0 0
        %3570 = vmatpush.bf16.msra.mxu0 %v3563
        %3571 = vmatpush.bf16.msra.mxu0 %v3555
        %3572 = vmatpush.bf16.msra.mxu0 %v3554
        %3573 = vmatmul.bf16.gmra.mxu0 %v3560
        %v3574 = vpop.f32.mrf.mxu0
        %v3575 = vadd.f32 0.0, %v3574
        %v3576 = vpop.f32.mrf.mxu0
        %3577 = vdwg.mxu0
        %v3578 = vadd.f32 %v3526, %v3575
        %v3579 = vld [vmem:[%s711] sm:$0xf]
        %v3580 = vld [vmem:[%s711 + $0x4] sm:$0xf]
        %v3581 = vld [vmem:[%s711 + $0x8] sm:$0xf]
        %v3582 = vld [vmem:[%s711 + $0xc] sm:$0xf]
        %v3583 = vld [vmem:[%s711 + $0x10] sm:$0xf]
        %v3584 = vrot.slane %v3536, 1
        %v3590 = vunpack.c.l.b16 %v3579
        %v3591 = vunpack.c.l.b16 %v3580
        %v3592 = vunpack.c.l.b16 %v3581
        %v3593 = vunpack.c.l.b16 %v3582
        %v3594 = vunpack.c.l.b16 %v3583
        %v3595 = vpack.c.b16 %v3591, %v3590
        %v3596 = vpack.c.b16 %v3593, %v3592
        %v3597 = vpack.c.b16 %v3594, %v3594
        %v3601 = vsel %vm378, %v3584, 0
        %v3604 = vsel %vm382, %v3597, 0
        %3606 = vmatpush.bf16.msra.mxu0 0
        %3607 = vmatpush.bf16.msra.mxu0 0
        %3608 = vmatpush.bf16.msra.mxu0 0
        %3609 = vmatpush.bf16.msra.mxu0 0
        %3610 = vmatpush.bf16.msra.mxu0 0
        %3611 = vmatpush.bf16.msra.mxu0 %v3604
        %3612 = vmatpush.bf16.msra.mxu0 %v3596
        %3613 = vmatpush.bf16.msra.mxu0 %v3595
        %3614 = vmatmul.bf16.gmra.mxu0 %v3601
        %v3615 = vpop.f32.mrf.mxu0
        %v3616 = vadd.f32 0.0, %v3615
        %v3617 = vpop.f32.mrf.mxu0
        %3618 = vdwg.mxu0
        %v3619 = vadd.f32 %v3578, %v3616
        %v3620 = vmul.f32 %v3619, %v754
        %v3621 = vadd.f32 %v3620, %v758
        %v3622 = vmax.f32 %v3621, 0.0
        %s3623 = scalar_lea.vmem %s297, 56 [#allocation2]
        %3624 = vst [vmem:[%s3623] sm:$0xff] %v3622
        %s3625 = sand.u32 %s164, 1
        %s3626 = scalar_lea.sflag [#allocation3], %s3625
        %s3627 = sand.u32 %s164, 1
        %s3628 = smul.addr %s3627, 64
        %s3629 = scalar_lea.vmem [#allocation2], %s3628
        // Predicated region
        $region41: #{tpu_custom_call.1} parent=39 // pred_check
          %p3630 = pneg %p174
        $region42: #{tpu_custom_call.1} parent=39 // pred_check_branch
          %3632 = sbr.rel (%p3630) target = $region44
        $region43: #{tpu_custom_call.1} parent=39 // pred_region
          %s3633 = smul.u32 8, %s24
          %3635 = vsyncadd %s3626, 0
          %s3636 = smul.addr %s23, 8
          %s3637 = sadd.s32 %s3633, %s3636
          %s3638 = smul.addr %s3637, 8
          %s3639 = scalar_lea.hbm %s5, %s3638
          %s3640 = sshll.u32 %s3629, 4
          %s3641 = int_to_ptr.vmem [resolvable:$true] %s3640
          %s3642 = sshll.u32 %s3639, 4
          %s3643 = int_to_ptr.hbm [resolvable:$true] %s3642
          %3648 = dma.vmem_to_hbm [thread:$0]  %s3641, 1024, %s3643, %s3626, 128, 128, 8
        $region44: #{tpu_custom_call.1} parent=39 // pred_fallthru
          _
      $region40: #{tpu_custom_call.1} parent=5 // pred_fallthru
        _
      %p3649 = scmp.le.s32.totalorder 2, %s14
      // Predicated region
      $region45: #{tpu_custom_call.1} parent=5 // pred_check
        %p3650 = pneg %p3649
      $region46: #{tpu_custom_call.1} parent=5 // pred_check_branch
        %3652 = sbr.rel (%p3650) target = $region48
      $region47: #{tpu_custom_call.1} parent=5 // pred_region
        %s3653 = ssub.s32 %s14, 2
        // Predicated region
        $region49: #{tpu_custom_call.1} parent=47 // pred_check
          %p3654 = pneg %p180
        $region50: #{tpu_custom_call.1} parent=47 // pred_check_branch
          %3656 = sbr.rel (%p3654) target = $region52
        $region51: #{tpu_custom_call.1} parent=47 // pred_region
          %s3657 = sand.u32 %s165, 1
          %s3658 = scalar_lea.sflag [#allocation3], %s3657
          %s3659 = sand.u32 %s165, 1
          %s3660 = smul.addr %s3659, 64
          %s3661 = scalar_lea.vmem [#allocation2], %s3660
          %3663 = dma.done %s3658, 1024
        $region52: #{tpu_custom_call.1} parent=47 // pred_fallthru
          _
      $region48: #{tpu_custom_call.1} parent=5 // pred_fallthru
        _
    $region6: #{tpu_custom_call.1} parent=1 // loop_footer
      %s18 = sadd.s32 1, %s14
    $region7: #{tpu_custom_call.1} parent=1 // loop_footer_branch
      %13 = sbr.rel target = $region3
    $region8: #{tpu_custom_call.1} parent=1 // loop_exit
      _
    %3664 = vsyncpa [#allocation3], 1
    %s3665 = scalar_lea.sflag [#allocation3], 1
    %3666 = vsyncpa %s3665, 1

</llo_original>
